<compile_context>
chip_gen: v7x
topology: tpu7x:2x2x1
jax: 0.10.0
libtpu: 0.0.40
codegen_flags: <defaults>
</compile_context>

<pallas_src>
import functools

import jax
import jax.numpy as jnp
import numpy as np
from jax.experimental import pallas as pl
from jax.experimental.pallas import tpu as pltpu


# ----------------------------- Pallas kernel --------------------------------

def _supact(h, gamma_row, beta_row):
    # Supact: mult = gamma + sigmoid(beta * x) * (1 - gamma); return mult * x
    inv = jax.nn.sigmoid(beta_row * h)          # sigmoid -> EUP slot (cheap)
    mult = gamma_row + inv * (1.0 - gamma_row)
    return mult * h


def resmlp_kernel(
    # VMEM inputs
    x_ref,          # (TILE_B, D_in)
    w0_ref,         # (D_in, H)
    b0_ref,         # (1, H)
    w1_ref,         # (N, H, H)   ResBlock.layer1 weights
    b1_ref,         # (N, H)
    g1_ref,         # (N, H)      ResBlock.act1 gamma
    be1_ref,        # (N, H)      ResBlock.act1 beta
    w2_ref,         # (N, H, H)   ResBlock.layer2 weights
    b2_ref,         # (N, H)
    g2_ref,         # (N, H)      ResBlock.act2 gamma
    be2_ref,        # (N, H)      ResBlock.act2 beta
    gs_ref,         # (N, H)      outer Supact gamma (after each ResBlock)
    bs_ref,         # (N, H)      outer Supact beta
    wout_ref,       # (H, D_out)
    bout_ref,       # (1, D_out)
    # SMEM inputs (scalar Affine parameters)
    n1g_ref,        # (N,)  ResBlock.norm1 gain
    n1b_ref,        # (N,)  ResBlock.norm1 bias
    n2g_ref,        # (N,)  ResBlock.norm2 gain
    n2b_ref,        # (N,)  ResBlock.norm2 bias
    fg_ref,         # (1,)  final Affine gain
    fb_ref,         # (1,)  final Affine bias
    # output
    o_ref,          # (TILE_B, D_out)
):
    n_layer = w1_ref.shape[0]

    # Input Linear: (TILE_B, D_in) @ (D_in, H) + b
    h = jnp.dot(x_ref[...], w0_ref[...],
                preferred_element_type=jnp.float32) + b0_ref[...]

    # Statically unrolled layer loop (N_layer is small & known at trace time).
    # Per-layer parameters are read as *static slices of the Refs* each
    # iteration (free views) instead of materializing the full (N, H, H)
    # stacks before the loop.
    for n in range(n_layer):
        w1n = w1_ref[n]                       # (H, H) static slice
        b1n = b1_ref[n][None, :]              # (1, H)
        g1n = g1_ref[n][None, :]
        be1n = be1_ref[n][None, :]
        w2n = w2_ref[n]
        b2n = b2_ref[n][None, :]
        g2n = g2_ref[n][None, :]
        be2n = be2_ref[n][None, :]
        gsn = gs_ref[n][None, :]
        bsn = bs_ref[n][None, :]

        xskip = h
        # o1 = act1(layer1(norm1(x)))
        t = h * n1g_ref[n] + n1b_ref[n]
        t = jnp.dot(t, w1n, preferred_element_type=jnp.float32) + b1n
        o1 = _supact(t, g1n, be1n)
        # o2 = act2(layer2(norm2(o1))) + xskip
        t = o1 * n2g_ref[n] + n2b_ref[n]
        t = jnp.dot(t, w2n, preferred_element_type=jnp.float32) + b2n
        o2 = _supact(t, g2n, be2n) + xskip
        # outer Supact appended after the ResBlock in the Sequential
        h = _supact(o2, gsn, bsn)

    # Output Linear + final Affine (scalar gain/bias), folded into one
    # FMA-shaped expression: (h @ Wout) * fg + (bout * fg + fb)
    fg = fg_ref[0]
    fb = fb_ref[0]
    out = jnp.dot(h, wout_ref[...], preferred_element_type=jnp.float32)
    o_ref[...] = out * fg + (bout_ref[...] * fg + fb)


# ------------------------------ Wrapper --------------------------------------

def _round_up(x, m):
    return ((x + m - 1) // m) * m


def resmlp_forward(x, params, tile_b=128):
    (w0, b0, w1, b1, g1, be1, w2, b2, g2, be2, gs, bs, wout, bout,
     n1g, n1b, n2g, n2b, fg, fb) = params

    B, D_in = x.shape
    H = w0.shape[1]
    D_out = wout.shape[1]
    N = w1.shape[0]

    # Pick a batch tile: multiple of 8 sublanes, no larger than the padded batch.
    tile_b = max(8, min(int(tile_b), _round_up(B, 8)))
    tile_b = _round_up(tile_b, 8)
    Bp = _round_up(B, tile_b)
    if Bp != B:
        x = jnp.pad(x, ((0, Bp - B), (0, 0)))
    grid_b = Bp // tile_b

    vmem_full = lambda arr: pl.BlockSpec(          # full-extent, resident block
        arr.shape, lambda i: (0,) * arr.ndim,
        memory_space=pltpu.MemorySpace.VMEM)
    smem = pl.BlockSpec(memory_space=pltpu.MemorySpace.SMEM)

    in_specs = [
        pl.BlockSpec((tile_b, D_in), lambda i: (i, 0),
                     memory_space=pltpu.MemorySpace.VMEM),     # x (batch-tiled)
        vmem_full(w0), vmem_full(b0),
        vmem_full(w1), vmem_full(b1), vmem_full(g1), vmem_full(be1),
        vmem_full(w2), vmem_full(b2), vmem_full(g2), vmem_full(be2),
        vmem_full(gs), vmem_full(bs),
        vmem_full(wout), vmem_full(bout),
        smem, smem, smem, smem, smem, smem,
    ]
    out_spec = pl.BlockSpec((tile_b, D_out), lambda i: (i, 0),
                            memory_space=pltpu.MemorySpace.VMEM)

    # VMEM budget: resident params + double-buffered x/out tiles + activation
    # working set + slack.  Sized from the real arrays so the same wrapper is
    # portable to v7x's 64 MiB VMEM.
    param_bytes = sum(int(np.prod(p.shape)) * 4 for p in params)
    io_bytes = 2 * (tile_b * D_in + tile_b * D_out) * 4
    act_bytes = 8 * tile_b * H * 4
    vmem_limit = min(100 << 20, param_bytes + io_bytes + act_bytes + (8 << 20))

    cost = pl.CostEstimate(
        flops=2 * Bp * (D_in * H + 2 * N * H * H + H * D_out),
        transcendentals=3 * N * Bp * H,          # sigmoids in Supact
        bytes_accessed=param_bytes + Bp * (D_in + D_out) * 4,
    )

    out = pl.pallas_call(
        resmlp_kernel,
        out_shape=jax.ShapeDtypeStruct((Bp, D_out), jnp.float32),
        grid_spec=pltpu.PrefetchScalarGridSpec(
            num_scalar_prefetch=0,
            grid=(grid_b,),
            in_specs=in_specs,
            out_specs=out_spec,
        ),
        compiler_params=pltpu.CompilerParams(
            dimension_semantics=("parallel",),
            vmem_limit_bytes=int(vmem_limit),
        ),
        cost_estimate=cost,
    )(x, w0, b0, w1, b1, g1, be1, w2, b2, g2, be2, gs, bs, wout, bout,
      n1g, n1b, n2g, n2b, fg, fb)

    return out[:B]


# --------------------------- Pure-JAX reference -------------------------------

def _supact_ref(x, gamma, beta):
    inv = jax.nn.sigmoid(beta * x)
    mult = gamma + inv * (1.0 - gamma)
    return mult * x


def resmlp_reference(x, params):
    (w0, b0, w1, b1, g1, be1, w2, b2, g2, be2, gs, bs, wout, bout,
     n1g, n1b, n2g, n2b, fg, fb) = params
    h = x @ w0 + b0
    for n in range(w1.shape[0]):
        xskip = h
        t = h * n1g[n] + n1b[n]
        o1 = _supact_ref(t @ w1[n] + b1[n], g1[n], be1[n])
        t = o1 * n2g[n] + n2b[n]
        o2 = _supact_ref(t @ w2[n] + b2[n], g2[n], be2[n]) + xskip
        h = _supact_ref(o2, gs[n], bs[n])
    out = h @ wout + bout
    return out * fg[0] + fb[0]


# ------------------------------- Main -----------------------------------------

def make_params(key, input_dim, output_dim, int_dim_param, n_layer):
    H = int_dim_param * 128
    ks = jax.random.split(key, 24)
    normal = lambda k, shape, s=0.05: (s * jax.random.normal(k, shape)).astype(jnp.float32)

    w0 = normal(ks[0], (input_dim, H))
    b0 = normal(ks[1], (1, H))
    w1 = normal(ks[2], (n_layer, H, H))
    b1 = normal(ks[3], (n_layer, H))
    g1 = 1.0 + normal(ks[4], (n_layer, H))     # Supact gamma ~ ones
    be1 = normal(ks[5], (n_layer, H))          # Supact beta  ~ zeros
    w2 = normal(ks[6], (n_layer, H, H))
    b2 = normal(ks[7], (n_layer, H))
    g2 = 1.0 + normal(ks[8], (n_layer, H))
    be2 = normal(ks[9], (n_layer, H))
    gs = 1.0 + normal(ks[10], (n_layer, H))
    bs = normal(ks[11], (n_layer, H))
    wout = normal(ks[12], (H, output_dim))
    bout = normal(ks[13], (1, output_dim))
    n1g = 1.0 + normal(ks[14], (n_layer,))     # Affine gain ~ ones
    n1b = normal(ks[15], (n_layer,))           # Affine bias ~ zeros
    n2g = 1.0 + normal(ks[16], (n_layer,))
    n2b = normal(ks[17], (n_layer,))
    fg = 1.0 + normal(ks[18], (1,))
    fb = normal(ks[19], (1,))
    return (w0, b0, w1, b1, g1, be1, w2, b2, g2, be2, gs, bs, wout, bout,
            n1g, n1b, n2g, n2b, fg, fb)


if __name__ == "__main__":
    # ResMLP(input_dim=16, output_dim=8, int_dim=1, N_layer=2)  ->  hidden = 128
    # Batch of 256 -> two 128-row batch tiles (exercises the parallel grid).
    B, input_dim, output_dim, int_dim_param, n_layer = 256, 16, 8, 1, 2

    key = jax.random.PRNGKey(0)
    kx, kp = jax.random.split(key)
    x = jax.random.normal(kx, (B, input_dim), dtype=jnp.float32)
    params = make_params(kp, input_dim, output_dim, int_dim_param, n_layer)

    fwd = jax.jit(functools.partial(resmlp_forward, tile_b=128))
    out = fwd(x, params)
    out = jax.block_until_ready(out)

    ref = resmlp_reference(x, params)
    np.testing.assert_allclose(np.asarray(out), np.asarray(ref),
                               rtol=1e-5, atol=1e-5)
    print("KERNEL_OK")
</pallas_src>

<mosaic_0001>
module attributes {stable_mosaic.version = 11 : i64} {
  func.func @resmlp_kernel(%arg0: i32, %arg1: memref<128x16xf32, #tpu.memory_space<vmem>>, %arg2: memref<16x128xf32, #tpu.memory_space<vmem>>, %arg3: memref<1x128xf32, #tpu.memory_space<vmem>>, %arg4: memref<2x128x128xf32, #tpu.memory_space<vmem>>, %arg5: memref<2x128xf32, #tpu.memory_space<vmem>>, %arg6: memref<2x128xf32, #tpu.memory_space<vmem>>, %arg7: memref<2x128xf32, #tpu.memory_space<vmem>>, %arg8: memref<2x128x128xf32, #tpu.memory_space<vmem>>, %arg9: memref<2x128xf32, #tpu.memory_space<vmem>>, %arg10: memref<2x128xf32, #tpu.memory_space<vmem>>, %arg11: memref<2x128xf32, #tpu.memory_space<vmem>>, %arg12: memref<2x128xf32, #tpu.memory_space<vmem>>, %arg13: memref<2x128xf32, #tpu.memory_space<vmem>>, %arg14: memref<128x8xf32, #tpu.memory_space<vmem>>, %arg15: memref<1x8xf32, #tpu.memory_space<vmem>>, %arg16: memref<2xf32, #tpu.memory_space<smem>>, %arg17: memref<2xf32, #tpu.memory_space<smem>>, %arg18: memref<2xf32, #tpu.memory_space<smem>>, %arg19: memref<2xf32, #tpu.memory_space<smem>>, %arg20: memref<1xf32, #tpu.memory_space<smem>>, %arg21: memref<1xf32, #tpu.memory_space<smem>>, %arg22: memref<128x8xf32, #tpu.memory_space<vmem>>) attributes {dimension_semantics = [#tpu.dimension_semantics<parallel>], iteration_bounds = array<i64: 2>, scalar_prefetch = 0 : i64, scratch_operands = 0 : i64, tpu.core_type = #tpu.core_type<tc>, window_params = [{transform_indices = @transform_0, window_bounds = array<i64: 128, 16>}, {pipeline_mode = #tpu.pipeline_mode<synchronous>, transform_indices = @transform_1, window_bounds = array<i64: 16, 128>}, {pipeline_mode = #tpu.pipeline_mode<synchronous>, transform_indices = @transform_2, window_bounds = array<i64: 1, 128>}, {pipeline_mode = #tpu.pipeline_mode<synchronous>, transform_indices = @transform_3, window_bounds = array<i64: 2, 128, 128>}, {pipeline_mode = #tpu.pipeline_mode<synchronous>, transform_indices = @transform_4, window_bounds = array<i64: 2, 128>}, {pipeline_mode = #tpu.pipeline_mode<synchronous>, transform_indices = @transform_5, window_bounds = array<i64: 2, 128>}, {pipeline_mode = #tpu.pipeline_mode<synchronous>, transform_indices = @transform_6, window_bounds = array<i64: 2, 128>}, {pipeline_mode = #tpu.pipeline_mode<synchronous>, transform_indices = @transform_7, window_bounds = array<i64: 2, 128, 128>}, {pipeline_mode = #tpu.pipeline_mode<synchronous>, transform_indices = @transform_8, window_bounds = array<i64: 2, 128>}, {pipeline_mode = #tpu.pipeline_mode<synchronous>, transform_indices = @transform_9, window_bounds = array<i64: 2, 128>}, {pipeline_mode = #tpu.pipeline_mode<synchronous>, transform_indices = @transform_10, window_bounds = array<i64: 2, 128>}, {pipeline_mode = #tpu.pipeline_mode<synchronous>, transform_indices = @transform_11, window_bounds = array<i64: 2, 128>}, {pipeline_mode = #tpu.pipeline_mode<synchronous>, transform_indices = @transform_12, window_bounds = array<i64: 2, 128>}, {pipeline_mode = #tpu.pipeline_mode<synchronous>, transform_indices = @transform_13, window_bounds = array<i64: 128, 8>}, {pipeline_mode = #tpu.pipeline_mode<synchronous>, transform_indices = @transform_14, window_bounds = array<i64: 1, 8>}, {transform_indices = @transform_15, window_bounds = array<i64: 2>}, {transform_indices = @transform_16, window_bounds = array<i64: 2>}, {transform_indices = @transform_17, window_bounds = array<i64: 2>}, {transform_indices = @transform_18, window_bounds = array<i64: 2>}, {transform_indices = @transform_19, window_bounds = array<i64: 1>}, {transform_indices = @transform_20, window_bounds = array<i64: 1>}, {transform_indices = @transform_21, window_bounds = array<i64: 128, 8>}]} {
    %c0 = arith.constant 0 : index
    %c0_0 = arith.constant 0 : index
    %0 = vector.load %arg1[%c0, %c0_0] : memref<128x16xf32, #tpu.memory_space<vmem>>, vector<128x16xf32>
    %c0_1 = arith.constant 0 : index
    %c0_2 = arith.constant 0 : index
    %1 = vector.load %arg2[%c0_1, %c0_2] : memref<16x128xf32, #tpu.memory_space<vmem>>, vector<16x128xf32>
    %cst = arith.constant dense<0.000000e+00> : vector<128x128xf32>
    %2 = tpu.matmul %0, %1, %cst {dimension_numbers = #tpu.dot_dimension_numbers<[1], [0], [0], [1], [0, 0, 1, 1], [], []>} : vector<128x16xf32>, vector<16x128xf32>, vector<128x128xf32> -> vector<128x128xf32>
    %c0_3 = arith.constant 0 : index
    %c0_4 = arith.constant 0 : index
    %3 = vector.load %arg3[%c0_3, %c0_4] : memref<1x128xf32, #tpu.memory_space<vmem>>, vector<1x128xf32>
    %4 = vector.broadcast %3 : vector<1x128xf32> to vector<128x128xf32>
    %5 = arith.addf %2, %4 : vector<128x128xf32>
    %c0_5 = arith.constant 0 : index
    %c0_6 = arith.constant 0 : index
    %c0_7 = arith.constant 0 : index
    %6 = vector.load %arg4[%c0_5, %c0_6, %c0_7] : memref<2x128x128xf32, #tpu.memory_space<vmem>>, vector<1x128x128xf32>
    %7 = vector.shape_cast %6 : vector<1x128x128xf32> to vector<128x128xf32>
    %c0_8 = arith.constant 0 : index
    %c0_9 = arith.constant 0 : index
    %8 = vector.load %arg5[%c0_8, %c0_9] : memref<2x128xf32, #tpu.memory_space<vmem>>, vector<1x128xf32>
    %9 = vector.shape_cast %8 : vector<1x128xf32> to vector<128xf32>
    %10 = vector.shape_cast %9 : vector<128xf32> to vector<1x128xf32>
    %c0_10 = arith.constant 0 : index
    %c0_11 = arith.constant 0 : index
    %11 = vector.load %arg6[%c0_10, %c0_11] : memref<2x128xf32, #tpu.memory_space<vmem>>, vector<1x128xf32>
    %12 = vector.shape_cast %11 : vector<1x128xf32> to vector<128xf32>
    %13 = vector.shape_cast %12 : vector<128xf32> to vector<1x128xf32>
    %c0_12 = arith.constant 0 : index
    %c0_13 = arith.constant 0 : index
    %14 = vector.load %arg7[%c0_12, %c0_13] : memref<2x128xf32, #tpu.memory_space<vmem>>, vector<1x128xf32>
    %15 = vector.shape_cast %14 : vector<1x128xf32> to vector<128xf32>
    %16 = vector.shape_cast %15 : vector<128xf32> to vector<1x128xf32>
    %c0_14 = arith.constant 0 : index
    %c0_15 = arith.constant 0 : index
    %c0_16 = arith.constant 0 : index
    %17 = vector.load %arg8[%c0_14, %c0_15, %c0_16] : memref<2x128x128xf32, #tpu.memory_space<vmem>>, vector<1x128x128xf32>
    %18 = vector.shape_cast %17 : vector<1x128x128xf32> to vector<128x128xf32>
    %c0_17 = arith.constant 0 : index
    %c0_18 = arith.constant 0 : index
    %19 = vector.load %arg9[%c0_17, %c0_18] : memref<2x128xf32, #tpu.memory_space<vmem>>, vector<1x128xf32>
    %20 = vector.shape_cast %19 : vector<1x128xf32> to vector<128xf32>
    %21 = vector.shape_cast %20 : vector<128xf32> to vector<1x128xf32>
    %c0_19 = arith.constant 0 : index
    %c0_20 = arith.constant 0 : index
    %22 = vector.load %arg10[%c0_19, %c0_20] : memref<2x128xf32, #tpu.memory_space<vmem>>, vector<1x128xf32>
    %23 = vector.shape_cast %22 : vector<1x128xf32> to vector<128xf32>
    %24 = vector.shape_cast %23 : vector<128xf32> to vector<1x128xf32>
    %c0_21 = arith.constant 0 : index
    %c0_22 = arith.constant 0 : index
    %25 = vector.load %arg11[%c0_21, %c0_22] : memref<2x128xf32, #tpu.memory_space<vmem>>, vector<1x128xf32>
    %26 = vector.shape_cast %25 : vector<1x128xf32> to vector<128xf32>
    %27 = vector.shape_cast %26 : vector<128xf32> to vector<1x128xf32>
    %c0_23 = arith.constant 0 : index
    %c0_24 = arith.constant 0 : index
    %28 = vector.load %arg12[%c0_23, %c0_24] : memref<2x128xf32, #tpu.memory_space<vmem>>, vector<1x128xf32>
    %29 = vector.shape_cast %28 : vector<1x128xf32> to vector<128xf32>
    %30 = vector.shape_cast %29 : vector<128xf32> to vector<1x128xf32>
    %c0_25 = arith.constant 0 : index
    %c0_26 = arith.constant 0 : index
    %31 = vector.load %arg13[%c0_25, %c0_26] : memref<2x128xf32, #tpu.memory_space<vmem>>, vector<1x128xf32>
    %32 = vector.shape_cast %31 : vector<1x128xf32> to vector<128xf32>
    %33 = vector.shape_cast %32 : vector<128xf32> to vector<1x128xf32>
    %c0_27 = arith.constant 0 : index
    %34 = memref.load %arg16[%c0_27] : memref<2xf32, #tpu.memory_space<smem>>
    %35 = vector.broadcast %34 : f32 to vector<128x128xf32>
    %36 = arith.mulf %5, %35 : vector<128x128xf32>
    %c0_28 = arith.constant 0 : index
    %37 = memref.load %arg17[%c0_28] : memref<2xf32, #tpu.memory_space<smem>>
    %38 = vector.broadcast %37 : f32 to vector<128x128xf32>
    %39 = arith.addf %36, %38 : vector<128x128xf32>
    %cst_29 = arith.constant dense<0.000000e+00> : vector<128x128xf32>
    %40 = tpu.matmul %39, %7, %cst_29 {dimension_numbers = #tpu.dot_dimension_numbers<[1], [0], [0], [1], [0, 0, 1, 1], [], []>} : vector<128x128xf32>, vector<128x128xf32>, vector<128x128xf32> -> vector<128x128xf32>
    %41 = vector.broadcast %10 : vector<1x128xf32> to vector<128x128xf32>
    %42 = arith.addf %40, %41 : vector<128x128xf32>
    %43 = vector.broadcast %16 : vector<1x128xf32> to vector<128x128xf32>
    %44 = arith.mulf %43, %42 : vector<128x128xf32>
    %45 = arith.negf %44 : vector<128x128xf32>
    %46 = math.exp %45 : vector<128x128xf32>
    %cst_30 = arith.constant 1.000000e+00 : f32
    %47 = vector.broadcast %cst_30 : f32 to vector<128x128xf32>
    %48 = arith.addf %47, %46 : vector<128x128xf32>
    %49 = arith.divf %47, %48 : vector<128x128xf32>
    %cst_31 = arith.constant 1.000000e+00 : f32
    %50 = vector.broadcast %cst_31 : f32 to vector<1x128xf32>
    %51 = arith.subf %50, %13 : vector<1x128xf32>
    %52 = vector.broadcast %51 : vector<1x128xf32> to vector<128x128xf32>
    %53 = arith.mulf %49, %52 : vector<128x128xf32>
    %54 = vector.broadcast %13 : vector<1x128xf32> to vector<128x128xf32>
    %55 = arith.addf %54, %53 : vector<128x128xf32>
    %56 = arith.mulf %55, %42 : vector<128x128xf32>
    %c0_32 = arith.constant 0 : index
    %57 = memref.load %arg18[%c0_32] : memref<2xf32, #tpu.memory_space<smem>>
    %58 = vector.broadcast %57 : f32 to vector<128x128xf32>
    %59 = arith.mulf %56, %58 : vector<128x128xf32>
    %c0_33 = arith.constant 0 : index
    %60 = memref.load %arg19[%c0_33] : memref<2xf32, #tpu.memory_space<smem>>
    %61 = vector.broadcast %60 : f32 to vector<128x128xf32>
    %62 = arith.addf %59, %61 : vector<128x128xf32>
    %cst_34 = arith.constant dense<0.000000e+00> : vector<128x128xf32>
    %63 = tpu.matmul %62, %18, %cst_34 {dimension_numbers = #tpu.dot_dimension_numbers<[1], [0], [0], [1], [0, 0, 1, 1], [], []>} : vector<128x128xf32>, vector<128x128xf32>, vector<128x128xf32> -> vector<128x128xf32>
    %64 = vector.broadcast %21 : vector<1x128xf32> to vector<128x128xf32>
    %65 = arith.addf %63, %64 : vector<128x128xf32>
    %66 = vector.broadcast %27 : vector<1x128xf32> to vector<128x128xf32>
    %67 = arith.mulf %66, %65 : vector<128x128xf32>
    %68 = arith.negf %67 : vector<128x128xf32>
    %69 = math.exp %68 : vector<128x128xf32>
    %cst_35 = arith.constant 1.000000e+00 : f32
    %70 = vector.broadcast %cst_35 : f32 to vector<128x128xf32>
    %71 = arith.addf %70, %69 : vector<128x128xf32>
    %72 = arith.divf %70, %71 : vector<128x128xf32>
    %cst_36 = arith.constant 1.000000e+00 : f32
    %73 = vector.broadcast %cst_36 : f32 to vector<1x128xf32>
    %74 = arith.subf %73, %24 : vector<1x128xf32>
    %75 = vector.broadcast %74 : vector<1x128xf32> to vector<128x128xf32>
    %76 = arith.mulf %72, %75 : vector<128x128xf32>
    %77 = vector.broadcast %24 : vector<1x128xf32> to vector<128x128xf32>
    %78 = arith.addf %77, %76 : vector<128x128xf32>
    %79 = arith.mulf %78, %65 : vector<128x128xf32>
    %80 = arith.addf %79, %5 : vector<128x128xf32>
    %81 = vector.broadcast %33 : vector<1x128xf32> to vector<128x128xf32>
    %82 = arith.mulf %81, %80 : vector<128x128xf32>
    %83 = arith.negf %82 : vector<128x128xf32>
    %84 = math.exp %83 : vector<128x128xf32>
    %cst_37 = arith.constant 1.000000e+00 : f32
    %85 = vector.broadcast %cst_37 : f32 to vector<128x128xf32>
    %86 = arith.addf %85, %84 : vector<128x128xf32>
    %87 = arith.divf %85, %86 : vector<128x128xf32>
    %cst_38 = arith.constant 1.000000e+00 : f32
    %88 = vector.broadcast %cst_38 : f32 to vector<1x128xf32>
    %89 = arith.subf %88, %30 : vector<1x128xf32>
    %90 = vector.broadcast %89 : vector<1x128xf32> to vector<128x128xf32>
    %91 = arith.mulf %87, %90 : vector<128x128xf32>
    %92 = vector.broadcast %30 : vector<1x128xf32> to vector<128x128xf32>
    %93 = arith.addf %92, %91 : vector<128x128xf32>
    %94 = arith.mulf %93, %80 : vector<128x128xf32>
    %c1 = arith.constant 1 : index
    %c0_39 = arith.constant 0 : index
    %c0_40 = arith.constant 0 : index
    %95 = vector.load %arg4[%c1, %c0_39, %c0_40] : memref<2x128x128xf32, #tpu.memory_space<vmem>>, vector<1x128x128xf32>
    %96 = vector.shape_cast %95 : vector<1x128x128xf32> to vector<128x128xf32>
    %c1_41 = arith.constant 1 : index
    %c0_42 = arith.constant 0 : index
    %97 = vector.load %arg5[%c1_41, %c0_42] : memref<2x128xf32, #tpu.memory_space<vmem>>, vector<1x128xf32>
    %98 = vector.shape_cast %97 : vector<1x128xf32> to vector<128xf32>
    %99 = vector.shape_cast %98 : vector<128xf32> to vector<1x128xf32>
    %c1_43 = arith.constant 1 : index
    %c0_44 = arith.constant 0 : index
    %100 = vector.load %arg6[%c1_43, %c0_44] : memref<2x128xf32, #tpu.memory_space<vmem>>, vector<1x128xf32>
    %101 = vector.shape_cast %100 : vector<1x128xf32> to vector<128xf32>
    %102 = vector.shape_cast %101 : vector<128xf32> to vector<1x128xf32>
    %c1_45 = arith.constant 1 : index
    %c0_46 = arith.constant 0 : index
    %103 = vector.load %arg7[%c1_45, %c0_46] : memref<2x128xf32, #tpu.memory_space<vmem>>, vector<1x128xf32>
    %104 = vector.shape_cast %103 : vector<1x128xf32> to vector<128xf32>
    %105 = vector.shape_cast %104 : vector<128xf32> to vector<1x128xf32>
    %c1_47 = arith.constant 1 : index
    %c0_48 = arith.constant 0 : index
    %c0_49 = arith.constant 0 : index
    %106 = vector.load %arg8[%c1_47, %c0_48, %c0_49] : memref<2x128x128xf32, #tpu.memory_space<vmem>>, vector<1x128x128xf32>
    %107 = vector.shape_cast %106 : vector<1x128x128xf32> to vector<128x128xf32>
    %c1_50 = arith.constant 1 : index
    %c0_51 = arith.constant 0 : index
    %108 = vector.load %arg9[%c1_50, %c0_51] : memref<2x128xf32, #tpu.memory_space<vmem>>, vector<1x128xf32>
    %109 = vector.shape_cast %108 : vector<1x128xf32> to vector<128xf32>
    %110 = vector.shape_cast %109 : vector<128xf32> to vector<1x128xf32>
    %c1_52 = arith.constant 1 : index
    %c0_53 = arith.constant 0 : index
    %111 = vector.load %arg10[%c1_52, %c0_53] : memref<2x128xf32, #tpu.memory_space<vmem>>, vector<1x128xf32>
    %112 = vector.shape_cast %111 : vector<1x128xf32> to vector<128xf32>
    %113 = vector.shape_cast %112 : vector<128xf32> to vector<1x128xf32>
    %c1_54 = arith.constant 1 : index
    %c0_55 = arith.constant 0 : index
    %114 = vector.load %arg11[%c1_54, %c0_55] : memref<2x128xf32, #tpu.memory_space<vmem>>, vector<1x128xf32>
    %115 = vector.shape_cast %114 : vector<1x128xf32> to vector<128xf32>
    %116 = vector.shape_cast %115 : vector<128xf32> to vector<1x128xf32>
    %c1_56 = arith.constant 1 : index
    %c0_57 = arith.constant 0 : index
    %117 = vector.load %arg12[%c1_56, %c0_57] : memref<2x128xf32, #tpu.memory_space<vmem>>, vector<1x128xf32>
    %118 = vector.shape_cast %117 : vector<1x128xf32> to vector<128xf32>
    %119 = vector.shape_cast %118 : vector<128xf32> to vector<1x128xf32>
    %c1_58 = arith.constant 1 : index
    %c0_59 = arith.constant 0 : index
    %120 = vector.load %arg13[%c1_58, %c0_59] : memref<2x128xf32, #tpu.memory_space<vmem>>, vector<1x128xf32>
    %121 = vector.shape_cast %120 : vector<1x128xf32> to vector<128xf32>
    %122 = vector.shape_cast %121 : vector<128xf32> to vector<1x128xf32>
    %c1_60 = arith.constant 1 : index
    %123 = memref.load %arg16[%c1_60] : memref<2xf32, #tpu.memory_space<smem>>
    %124 = vector.broadcast %123 : f32 to vector<128x128xf32>
    %125 = arith.mulf %94, %124 : vector<128x128xf32>
    %c1_61 = arith.constant 1 : index
    %126 = memref.load %arg17[%c1_61] : memref<2xf32, #tpu.memory_space<smem>>
    %127 = vector.broadcast %126 : f32 to vector<128x128xf32>
    %128 = arith.addf %125, %127 : vector<128x128xf32>
    %cst_62 = arith.constant dense<0.000000e+00> : vector<128x128xf32>
    %129 = tpu.matmul %128, %96, %cst_62 {dimension_numbers = #tpu.dot_dimension_numbers<[1], [0], [0], [1], [0, 0, 1, 1], [], []>} : vector<128x128xf32>, vector<128x128xf32>, vector<128x128xf32> -> vector<128x128xf32>
    %130 = vector.broadcast %99 : vector<1x128xf32> to vector<128x128xf32>
    %131 = arith.addf %129, %130 : vector<128x128xf32>
    %132 = vector.broadcast %105 : vector<1x128xf32> to vector<128x128xf32>
    %133 = arith.mulf %132, %131 : vector<128x128xf32>
    %134 = arith.negf %133 : vector<128x128xf32>
    %135 = math.exp %134 : vector<128x128xf32>
    %cst_63 = arith.constant 1.000000e+00 : f32
    %136 = vector.broadcast %cst_63 : f32 to vector<128x128xf32>
    %137 = arith.addf %136, %135 : vector<128x128xf32>
    %138 = arith.divf %136, %137 : vector<128x128xf32>
    %cst_64 = arith.constant 1.000000e+00 : f32
    %139 = vector.broadcast %cst_64 : f32 to vector<1x128xf32>
    %140 = arith.subf %139, %102 : vector<1x128xf32>
    %141 = vector.broadcast %140 : vector<1x128xf32> to vector<128x128xf32>
    %142 = arith.mulf %138, %141 : vector<128x128xf32>
    %143 = vector.broadcast %102 : vector<1x128xf32> to vector<128x128xf32>
    %144 = arith.addf %143, %142 : vector<128x128xf32>
    %145 = arith.mulf %144, %131 : vector<128x128xf32>
    %c1_65 = arith.constant 1 : index
    %146 = memref.load %arg18[%c1_65] : memref<2xf32, #tpu.memory_space<smem>>
    %147 = vector.broadcast %146 : f32 to vector<128x128xf32>
    %148 = arith.mulf %145, %147 : vector<128x128xf32>
    %c1_66 = arith.constant 1 : index
    %149 = memref.load %arg19[%c1_66] : memref<2xf32, #tpu.memory_space<smem>>
    %150 = vector.broadcast %149 : f32 to vector<128x128xf32>
    %151 = arith.addf %148, %150 : vector<128x128xf32>
    %cst_67 = arith.constant dense<0.000000e+00> : vector<128x128xf32>
    %152 = tpu.matmul %151, %107, %cst_67 {dimension_numbers = #tpu.dot_dimension_numbers<[1], [0], [0], [1], [0, 0, 1, 1], [], []>} : vector<128x128xf32>, vector<128x128xf32>, vector<128x128xf32> -> vector<128x128xf32>
    %153 = vector.broadcast %110 : vector<1x128xf32> to vector<128x128xf32>
    %154 = arith.addf %152, %153 : vector<128x128xf32>
    %155 = vector.broadcast %116 : vector<1x128xf32> to vector<128x128xf32>
    %156 = arith.mulf %155, %154 : vector<128x128xf32>
    %157 = arith.negf %156 : vector<128x128xf32>
    %158 = math.exp %157 : vector<128x128xf32>
    %cst_68 = arith.constant 1.000000e+00 : f32
    %159 = vector.broadcast %cst_68 : f32 to vector<128x128xf32>
    %160 = arith.addf %159, %158 : vector<128x128xf32>
    %161 = arith.divf %159, %160 : vector<128x128xf32>
    %cst_69 = arith.constant 1.000000e+00 : f32
    %162 = vector.broadcast %cst_69 : f32 to vector<1x128xf32>
    %163 = arith.subf %162, %113 : vector<1x128xf32>
    %164 = vector.broadcast %163 : vector<1x128xf32> to vector<128x128xf32>
    %165 = arith.mulf %161, %164 : vector<128x128xf32>
    %166 = vector.broadcast %113 : vector<1x128xf32> to vector<128x128xf32>
    %167 = arith.addf %166, %165 : vector<128x128xf32>
    %168 = arith.mulf %167, %154 : vector<128x128xf32>
    %169 = arith.addf %168, %94 : vector<128x128xf32>
    %170 = vector.broadcast %122 : vector<1x128xf32> to vector<128x128xf32>
    %171 = arith.mulf %170, %169 : vector<128x128xf32>
    %172 = arith.negf %171 : vector<128x128xf32>
    %173 = math.exp %172 : vector<128x128xf32>
    %cst_70 = arith.constant 1.000000e+00 : f32
    %174 = vector.broadcast %cst_70 : f32 to vector<128x128xf32>
    %175 = arith.addf %174, %173 : vector<128x128xf32>
    %176 = arith.divf %174, %175 : vector<128x128xf32>
    %cst_71 = arith.constant 1.000000e+00 : f32
    %177 = vector.broadcast %cst_71 : f32 to vector<1x128xf32>
    %178 = arith.subf %177, %119 : vector<1x128xf32>
    %179 = vector.broadcast %178 : vector<1x128xf32> to vector<128x128xf32>
    %180 = arith.mulf %176, %179 : vector<128x128xf32>
    %181 = vector.broadcast %119 : vector<1x128xf32> to vector<128x128xf32>
    %182 = arith.addf %181, %180 : vector<128x128xf32>
    %183 = arith.mulf %182, %169 : vector<128x128xf32>
    %c0_72 = arith.constant 0 : index
    %184 = memref.load %arg20[%c0_72] : memref<1xf32, #tpu.memory_space<smem>>
    %c0_73 = arith.constant 0 : index
    %185 = memref.load %arg21[%c0_73] : memref<1xf32, #tpu.memory_space<smem>>
    %c0_74 = arith.constant 0 : index
    %c0_75 = arith.constant 0 : index
    %186 = vector.load %arg14[%c0_74, %c0_75] : memref<128x8xf32, #tpu.memory_space<vmem>>, vector<128x8xf32>
    %cst_76 = arith.constant dense<0.000000e+00> : vector<128x8xf32>
    %187 = tpu.matmul %183, %186, %cst_76 {dimension_numbers = #tpu.dot_dimension_numbers<[1], [0], [0], [1], [0, 0, 1, 1], [], []>} : vector<128x128xf32>, vector<128x8xf32>, vector<128x8xf32> -> vector<128x8xf32>
    %188 = vector.broadcast %184 : f32 to vector<128x8xf32>
    %189 = arith.mulf %187, %188 : vector<128x8xf32>
    %c0_77 = arith.constant 0 : index
    %c0_78 = arith.constant 0 : index
    %190 = vector.load %arg15[%c0_77, %c0_78] : memref<1x8xf32, #tpu.memory_space<vmem>>, vector<1x8xf32>
    %191 = vector.broadcast %184 : f32 to vector<1x8xf32>
    %192 = arith.mulf %190, %191 : vector<1x8xf32>
    %193 = vector.broadcast %185 : f32 to vector<1x8xf32>
    %194 = arith.addf %192, %193 : vector<1x8xf32>
    %195 = vector.broadcast %194 : vector<1x8xf32> to vector<128x8xf32>
    %196 = arith.addf %189, %195 : vector<128x8xf32>
    %c0_79 = arith.constant 0 : index
    %c0_80 = arith.constant 0 : index
    %197 = vector.load %arg22[%c0_79, %c0_80] : memref<128x8xf32, #tpu.memory_space<vmem>>, vector<128x8xf32>
    tpu.vector_store %arg22[%c0_79, %c0_80], %196 {strides = array<i32>} : memref<128x8xf32, #tpu.memory_space<vmem>>, vector<128x8xf32>,
    return
  }
  func.func @transform_0(%arg0: i32) -> (i32, i32) {
    %c0_i32 = arith.constant 0 : i32
    %c0_i32_0 = arith.constant 0 : i32
    return %arg0, %c0_i32 : i32, i32
  }
  func.func @transform_1(%arg0: i32) -> (i32, i32) {
    %c0_i32 = arith.constant 0 : i32
    %c0_i32_0 = arith.constant 0 : i32
    %c0_i32_1 = arith.constant 0 : i32
    return %c0_i32, %c0_i32_0 : i32, i32
  }
  func.func @transform_2(%arg0: i32) -> (i32, i32) {
    %c0_i32 = arith.constant 0 : i32
    %c0_i32_0 = arith.constant 0 : i32
    %c0_i32_1 = arith.constant 0 : i32
    return %c0_i32, %c0_i32_0 : i32, i32
  }
  func.func @transform_3(%arg0: i32) -> (i32, i32, i32) {
    %c0_i32 = arith.constant 0 : i32
    %c0_i32_0 = arith.constant 0 : i32
    %c0_i32_1 = arith.constant 0 : i32
    %c0_i32_2 = arith.constant 0 : i32
    return %c0_i32, %c0_i32_0, %c0_i32_1 : i32, i32, i32
  }
  func.func @transform_4(%arg0: i32) -> (i32, i32) {
    %c0_i32 = arith.constant 0 : i32
    %c0_i32_0 = arith.constant 0 : i32
    %c0_i32_1 = arith.constant 0 : i32
    return %c0_i32, %c0_i32_0 : i32, i32
  }
  func.func @transform_5(%arg0: i32) -> (i32, i32) {
    %c0_i32 = arith.constant 0 : i32
    %c0_i32_0 = arith.constant 0 : i32
    %c0_i32_1 = arith.constant 0 : i32
    return %c0_i32, %c0_i32_0 : i32, i32
  }
  func.func @transform_6(%arg0: i32) -> (i32, i32) {
    %c0_i32 = arith.constant 0 : i32
    %c0_i32_0 = arith.constant 0 : i32
    %c0_i32_1 = arith.constant 0 : i32
    return %c0_i32, %c0_i32_0 : i32, i32
  }
  func.func @transform_7(%arg0: i32) -> (i32, i32, i32) {
    %c0_i32 = arith.constant 0 : i32
    %c0_i32_0 = arith.constant 0 : i32
    %c0_i32_1 = arith.constant 0 : i32
    %c0_i32_2 = arith.constant 0 : i32
    return %c0_i32, %c0_i32_0, %c0_i32_1 : i32, i32, i32
  }
  func.func @transform_8(%arg0: i32) -> (i32, i32) {
    %c0_i32 = arith.constant 0 : i32
    %c0_i32_0 = arith.constant 0 : i32
    %c0_i32_1 = arith.constant 0 : i32
    return %c0_i32, %c0_i32_0 : i32, i32
  }
  func.func @transform_9(%arg0: i32) -> (i32, i32) {
    %c0_i32 = arith.constant 0 : i32
    %c0_i32_0 = arith.constant 0 : i32
    %c0_i32_1 = arith.constant 0 : i32
    return %c0_i32, %c0_i32_0 : i32, i32
  }
  func.func @transform_10(%arg0: i32) -> (i32, i32) {
    %c0_i32 = arith.constant 0 : i32
    %c0_i32_0 = arith.constant 0 : i32
    %c0_i32_1 = arith.constant 0 : i32
    return %c0_i32, %c0_i32_0 : i32, i32
  }
  func.func @transform_11(%arg0: i32) -> (i32, i32) {
    %c0_i32 = arith.constant 0 : i32
    %c0_i32_0 = arith.constant 0 : i32
    %c0_i32_1 = arith.constant 0 : i32
    return %c0_i32, %c0_i32_0 : i32, i32
  }
  func.func @transform_12(%arg0: i32) -> (i32, i32) {
    %c0_i32 = arith.constant 0 : i32
    %c0_i32_0 = arith.constant 0 : i32
    %c0_i32_1 = arith.constant 0 : i32
    return %c0_i32, %c0_i32_0 : i32, i32
  }
  func.func @transform_13(%arg0: i32) -> (i32, i32) {
    %c0_i32 = arith.constant 0 : i32
    %c0_i32_0 = arith.constant 0 : i32
    %c0_i32_1 = arith.constant 0 : i32
    return %c0_i32, %c0_i32_0 : i32, i32
  }
  func.func @transform_14(%arg0: i32) -> (i32, i32) {
    %c0_i32 = arith.constant 0 : i32
    %c0_i32_0 = arith.constant 0 : i32
    %c0_i32_1 = arith.constant 0 : i32
    return %c0_i32, %c0_i32_0 : i32, i32
  }
  func.func @transform_15(%arg0: i32) -> i32 {
    %c0_i32 = arith.constant 0 : i32
    %c0_i32_0 = arith.constant 0 : i32
    return %c0_i32 : i32
  }
  func.func @transform_16(%arg0: i32) -> i32 {
    %c0_i32 = arith.constant 0 : i32
    %c0_i32_0 = arith.constant 0 : i32
    return %c0_i32 : i32
  }
  func.func @transform_17(%arg0: i32) -> i32 {
    %c0_i32 = arith.constant 0 : i32
    %c0_i32_0 = arith.constant 0 : i32
    return %c0_i32 : i32
  }
  func.func @transform_18(%arg0: i32) -> i32 {
    %c0_i32 = arith.constant 0 : i32
    %c0_i32_0 = arith.constant 0 : i32
    return %c0_i32 : i32
  }
  func.func @transform_19(%arg0: i32) -> i32 {
    %c0_i32 = arith.constant 0 : i32
    %c0_i32_0 = arith.constant 0 : i32
    return %c0_i32 : i32
  }
  func.func @transform_20(%arg0: i32) -> i32 {
    %c0_i32 = arith.constant 0 : i32
    %c0_i32_0 = arith.constant 0 : i32
    return %c0_i32 : i32
  }
  func.func @transform_21(%arg0: i32) -> (i32, i32) {
    %c0_i32 = arith.constant 0 : i32
    %c0_i32_0 = arith.constant 0 : i32
    return %arg0, %c0_i32 : i32, i32
  }
}

</mosaic_0001>

<llo_original>
// kernel: resmlp_forward.1
$region0: #{resmlp_forward.1}
  #allocation0 [shape = 'u32[]', space=smem, size = 0x4, offset = 0x4, fixed_abs, tag = 'smem constant byte address 0x4 - core index']
  #allocation1 [shape = 'u32[144,128]{1,0:T(1,128)}', space=vmem, size = 0x12000, scoped, tag = 'internal scratch']
  #allocation2 [shape = 'f32[1]{0:T(128)S(6)}', space=smem, size = 0x200, scoped, tag = 'scoped memory for resmlp_forward.1']
  #allocation3 [shape = 'f32[1]{0:T(128)S(6)}', space=smem, size = 0x200, scoped, tag = 'scoped memory for resmlp_forward.1']
  %s0 = inlined_call_operand.vmem [shape: f32[256,16], index: 0, kind: input, shape index: {}]
  %s1 = inlined_call_operand.vmem [shape: f32[16,128], index: 1, kind: input, shape index: {}]
  %s2 = inlined_call_operand.vmem [shape: f32[1,128], index: 2, kind: input, shape index: {}]
  %s3 = inlined_call_operand.vmem [shape: f32[2,128,128], index: 3, kind: input, shape index: {}]
  %s4 = inlined_call_operand.vmem [shape: f32[2,128], index: 4, kind: input, shape index: {}]
  %s5 = inlined_call_operand.vmem [shape: f32[2,128], index: 5, kind: input, shape index: {}]
  %s6 = inlined_call_operand.vmem [shape: f32[2,128], index: 6, kind: input, shape index: {}]
  %s7 = inlined_call_operand.hbm [shape: f32[2,128,128], index: 7, kind: input, shape index: {}]
  %s8 = inlined_call_operand.vmem [shape: f32[2,128], index: 8, kind: input, shape index: {}]
  %s9 = inlined_call_operand.vmem [shape: f32[2,128], index: 9, kind: input, shape index: {}]
  %s10 = inlined_call_operand.vmem [shape: f32[2,128], index: 10, kind: input, shape index: {}]
  %s11 = inlined_call_operand.vmem [shape: f32[2,128], index: 11, kind: input, shape index: {}]
  %s12 = inlined_call_operand.vmem [shape: f32[2,128], index: 12, kind: input, shape index: {}]
  %s13 = inlined_call_operand.vmem [shape: f32[128,8], index: 13, kind: input, shape index: {}]
  %s14 = inlined_call_operand.vmem [shape: f32[1,8], index: 14, kind: input, shape index: {}]
  %s15 = inlined_call_operand.vmem [shape: f32[2], index: 15, kind: input, shape index: {}]
  %s16 = inlined_call_operand.vmem [shape: f32[2], index: 16, kind: input, shape index: {}]
  %s17 = inlined_call_operand.vmem [shape: f32[2], index: 17, kind: input, shape index: {}]
  %s18 = inlined_call_operand.vmem [shape: f32[2], index: 18, kind: input, shape index: {}]
  %s19 = inlined_call_operand.<no memory space> [shape: f32[1], index: 19, kind: input, shape index: {}]
  %s20 = inlined_call_operand.<no memory space> [shape: f32[1], index: 20, kind: input, shape index: {}]
  %s21 = inlined_call_operand.vmem [shape: f32[256,8], index: 21, kind: output, shape index: {}]
  %s22 = sld [smem:[#allocation0]]
  $region137: #{resmlp_forward.1} parent=0
    _
  %s24 = ssub.s32 1, %s22
  %s25 = scalar_select 0, %s24, %s22
  %26 = sst [smem:[#allocation2]] %s19
  %27 = sst [smem:[#allocation3]] %s20
  $region1: #{resmlp_forward.1} parent=0
    #allocation4 [shape = 'u8[131072]{0}', space=vmem, size = 0x20000, scoped, tag = 'input window, operand 7, single buffered']
    #allocation5 [shape = 's32[2]{0}', space=sflag, size = 0x8, scoped, tag = 'scoped memory for resmlp_forward.1']
    #allocation6 [shape = 's32[2]{0}', space=sflag, size = 0x8, scoped, tag = 'scoped memory for resmlp_forward.1']
    #allocation7 [shape = 'u8[512]{0}', space=smem, size = 0x200, scoped, tag = 'input window, operand 15, single buffered']
    #allocation8 [shape = 'u8[512]{0}', space=smem, size = 0x200, scoped, tag = 'input window, operand 16, single buffered']
    #allocation9 [shape = 's32[1]{0}', space=sflag, size = 0x4, scoped, tag = 'scoped memory for resmlp_forward.1']
    #allocation10 [shape = 'u8[512]{0}', space=smem, size = 0x200, scoped, tag = 'input window, operand 17, single buffered']
    #allocation11 [shape = 'u8[512]{0}', space=smem, size = 0x200, scoped, tag = 'input window, operand 18, single buffered']
    #allocation12 [shape = 's32[1]{0}', space=sflag, size = 0x4, scoped, tag = 'scoped memory for resmlp_forward.1']
    %28 = vsyncpa [#allocation5], 0
    %29 = vsyncpa [#allocation6], 0
    %30 = vsyncpa [#allocation9], 0
    %31 = vsyncpa [#allocation12], 0
    loop: start=0, step=1, limit=4
    $region2: #{resmlp_forward.1} parent=1 // loop_pre_header
      _
    $region3: #{resmlp_forward.1} parent=1 // loop_header
      %s33 = sphi 0, %s37
      %p34 = scmp.ge.s32.totalorder %s33, 4
      %s43 = sphi 0, %s45
      %s46 = sphi 0, %s43
      %s47 = sphi 0, %s46
      %s63 = sphi 0, %s47
      %s67 = sphi 0, %s67
      %s69 = sphi 0, %s67
      %s70 = sphi 0, %s69
      %s84 = sphi 0, %s70
      %s88 = sphi 0, %s88
      %s90 = sphi 0, %s88
      %s91 = sphi 0, %s90
      %s105 = sphi 0, %s91
      %s109 = sphi 0, %s109
      %s111 = sphi 0, %s109
      %s112 = sphi 0, %s111
      %s126 = sphi 0, %s112
      %s130 = sphi 0, %s130
      %s132 = sphi 0, %s130
      %s133 = sphi 0, %s132
      %s147 = sphi 0, %s133
      %s151 = sphi 0, %s151
      %s153 = sphi 0, %s151
      %s154 = sphi 0, %s153
      %s168 = sphi 0, %s154
      %s172 = sphi 0, %s172
      %s174 = sphi 0, %s172
      %s175 = sphi 0, %s174
      %s189 = sphi 0, %s175
      %s193 = sphi 0, %s193
      %s195 = sphi 0, %s193
      %s196 = sphi 0, %s195
      %s210 = sphi 0, %s196
      %s214 = sphi 0, %s214
      %s216 = sphi 0, %s214
      %s217 = sphi 0, %s216
      %s231 = sphi 0, %s217
      %s235 = sphi 0, %s235
      %s237 = sphi 0, %s235
      %s238 = sphi 0, %s237
      %s252 = sphi 0, %s238
      %s256 = sphi 0, %s256
      %s258 = sphi 0, %s256
      %s259 = sphi 0, %s258
      %s273 = sphi 0, %s259
      %s277 = sphi 0, %s277
      %s279 = sphi 0, %s277
      %s280 = sphi 0, %s279
      %s294 = sphi 0, %s280
      %s298 = sphi 0, %s298
      %s300 = sphi 0, %s298
      %s301 = sphi 0, %s300
      %s315 = sphi 0, %s301
      %s319 = sphi 0, %s319
      %s321 = sphi 0, %s319
      %s322 = sphi 0, %s321
      %s336 = sphi 0, %s322
      %s340 = sphi 0, %s340
      %s342 = sphi 0, %s340
      %s343 = sphi 0, %s342
      %s357 = sphi 0, %s343
      %s361 = sphi 0, %s361
      %s363 = sphi 0, %s361
      %s364 = sphi 0, %s363
      %s378 = sphi 0, %s364
      %s382 = sphi 0, %s382
      %s384 = sphi 0, %s382
      %s385 = sphi 0, %s384
      %s399 = sphi 0, %s385
      %s403 = sphi 0, %s403
      %s405 = sphi 0, %s403
      %s406 = sphi 0, %s405
      %s420 = sphi 0, %s406
      %s424 = sphi 0, %s424
      %s426 = sphi 0, %s424
      %s427 = sphi 0, %s426
      %s441 = sphi 0, %s427
      %s445 = sphi 0, %s445
      %s447 = sphi 0, %s445
      %s448 = sphi 0, %s447
      %s462 = sphi 0, %s448
      %s466 = sphi 0, %s466
      %s468 = sphi 0, %s466
      %s469 = sphi 0, %s468
      %s483 = sphi 0, %s469
      %s489 = sphi 0, %s491
      %s492 = sphi 0, %s489
      %s493 = sphi 0, %s492
      %s509 = sphi 0, %s493
    $region4: #{resmlp_forward.1} parent=1 // loop_header_branch
      %36 = sbr.rel (%p34) target = $region8
    $region5: #{resmlp_forward.1} parent=1 // loop_body
      %s38 = ssub.s32 %s33, 1
      %s39 = ssub.s32 %s33, 2
      %s40 = sadd.s32 %s33, 1
      %s41 = ssub.s32 %s33, %s40
      %p42 = scmp.eq.s32.totalorder %s41, 0
      %s44 = sadd.s32 %s43, 1
      %s45 = scalar_select %p42, %s43, %s44
      %p48 = pneg %p42
      %p49 = scmp.eq.s32.totalorder %s33, 1
      %p50 = por %p48, %p49
      %p51 = scmp.ne.s32.totalorder %s43, %s46
      %p52 = scmp.eq.s32.totalorder %s33, 0
      %p53 = por %p51, %p52
      %p54 = scmp.ne.s32.totalorder %s43, %s46
      %p55 = scmp.eq.s32.totalorder %s38, 1
      %p56 = por %p54, %p55
      %p57 = scmp.ne.s32.totalorder %s46, %s47
      %p58 = scmp.eq.s32.totalorder %s38, 0
      %p59 = por %p57, %p58
      %p60 = scmp.ne.s32.totalorder %s46, %s47
      %p61 = scmp.eq.s32.totalorder %s39, 1
      %p62 = por %p60, %p61
      %p64 = scmp.ne.s32.totalorder %s47, %s63
      %p65 = scmp.eq.s32.totalorder %s39, 0
      %p66 = por %p64, %p65
      %s68 = sadd.s32 %s67, 1
      %p71 = scmp.eq.s32.totalorder %s33, 1
      %p72 = scmp.ne.s32.totalorder %s67, %s69
      %p73 = scmp.eq.s32.totalorder %s33, 0
      %p74 = por %p72, %p73
      %p75 = scmp.ne.s32.totalorder %s67, %s69
      %p76 = scmp.eq.s32.totalorder %s38, 1
      %p77 = por %p75, %p76
      %p78 = scmp.ne.s32.totalorder %s69, %s70
      %p79 = scmp.eq.s32.totalorder %s38, 0
      %p80 = por %p78, %p79
      %p81 = scmp.ne.s32.totalorder %s69, %s70
      %p82 = scmp.eq.s32.totalorder %s39, 1
      %p83 = por %p81, %p82
      %p85 = scmp.ne.s32.totalorder %s70, %s84
      %p86 = scmp.eq.s32.totalorder %s39, 0
      %p87 = por %p85, %p86
      %s89 = sadd.s32 %s88, 1
      %p92 = scmp.eq.s32.totalorder %s33, 1
      %p93 = scmp.ne.s32.totalorder %s88, %s90
      %p94 = scmp.eq.s32.totalorder %s33, 0
      %p95 = por %p93, %p94
      %p96 = scmp.ne.s32.totalorder %s88, %s90
      %p97 = scmp.eq.s32.totalorder %s38, 1
      %p98 = por %p96, %p97
      %p99 = scmp.ne.s32.totalorder %s90, %s91
      %p100 = scmp.eq.s32.totalorder %s38, 0
      %p101 = por %p99, %p100
      %p102 = scmp.ne.s32.totalorder %s90, %s91
      %p103 = scmp.eq.s32.totalorder %s39, 1
      %p104 = por %p102, %p103
      %p106 = scmp.ne.s32.totalorder %s91, %s105
      %p107 = scmp.eq.s32.totalorder %s39, 0
      %p108 = por %p106, %p107
      %s110 = sadd.s32 %s109, 1
      %p113 = scmp.eq.s32.totalorder %s33, 1
      %p114 = scmp.ne.s32.totalorder %s109, %s111
      %p115 = scmp.eq.s32.totalorder %s33, 0
      %p116 = por %p114, %p115
      %p117 = scmp.ne.s32.totalorder %s109, %s111
      %p118 = scmp.eq.s32.totalorder %s38, 1
      %p119 = por %p117, %p118
      %p120 = scmp.ne.s32.totalorder %s111, %s112
      %p121 = scmp.eq.s32.totalorder %s38, 0
      %p122 = por %p120, %p121
      %p123 = scmp.ne.s32.totalorder %s111, %s112
      %p124 = scmp.eq.s32.totalorder %s39, 1
      %p125 = por %p123, %p124
      %p127 = scmp.ne.s32.totalorder %s112, %s126
      %p128 = scmp.eq.s32.totalorder %s39, 0
      %p129 = por %p127, %p128
      %s131 = sadd.s32 %s130, 1
      %p134 = scmp.eq.s32.totalorder %s33, 1
      %p135 = scmp.ne.s32.totalorder %s130, %s132
      %p136 = scmp.eq.s32.totalorder %s33, 0
      %p137 = por %p135, %p136
      %p138 = scmp.ne.s32.totalorder %s130, %s132
      %p139 = scmp.eq.s32.totalorder %s38, 1
      %p140 = por %p138, %p139
      %p141 = scmp.ne.s32.totalorder %s132, %s133
      %p142 = scmp.eq.s32.totalorder %s38, 0
      %p143 = por %p141, %p142
      %p144 = scmp.ne.s32.totalorder %s132, %s133
      %p145 = scmp.eq.s32.totalorder %s39, 1
      %p146 = por %p144, %p145
      %p148 = scmp.ne.s32.totalorder %s133, %s147
      %p149 = scmp.eq.s32.totalorder %s39, 0
      %p150 = por %p148, %p149
      %s152 = sadd.s32 %s151, 1
      %p155 = scmp.eq.s32.totalorder %s33, 1
      %p156 = scmp.ne.s32.totalorder %s151, %s153
      %p157 = scmp.eq.s32.totalorder %s33, 0
      %p158 = por %p156, %p157
      %p159 = scmp.ne.s32.totalorder %s151, %s153
      %p160 = scmp.eq.s32.totalorder %s38, 1
      %p161 = por %p159, %p160
      %p162 = scmp.ne.s32.totalorder %s153, %s154
      %p163 = scmp.eq.s32.totalorder %s38, 0
      %p164 = por %p162, %p163
      %p165 = scmp.ne.s32.totalorder %s153, %s154
      %p166 = scmp.eq.s32.totalorder %s39, 1
      %p167 = por %p165, %p166
      %p169 = scmp.ne.s32.totalorder %s154, %s168
      %p170 = scmp.eq.s32.totalorder %s39, 0
      %p171 = por %p169, %p170
      %s173 = sadd.s32 %s172, 1
      %p176 = scmp.eq.s32.totalorder %s33, 1
      %p177 = scmp.ne.s32.totalorder %s172, %s174
      %p178 = scmp.eq.s32.totalorder %s33, 0
      %p179 = por %p177, %p178
      %p180 = scmp.ne.s32.totalorder %s172, %s174
      %p181 = scmp.eq.s32.totalorder %s38, 1
      %p182 = por %p180, %p181
      %p183 = scmp.ne.s32.totalorder %s174, %s175
      %p184 = scmp.eq.s32.totalorder %s38, 0
      %p185 = por %p183, %p184
      %p186 = scmp.ne.s32.totalorder %s174, %s175
      %p187 = scmp.eq.s32.totalorder %s39, 1
      %p188 = por %p186, %p187
      %p190 = scmp.ne.s32.totalorder %s175, %s189
      %p191 = scmp.eq.s32.totalorder %s39, 0
      %p192 = por %p190, %p191
      %s194 = sadd.s32 %s193, 1
      %p197 = scmp.eq.s32.totalorder %s33, 1
      %p198 = scmp.ne.s32.totalorder %s193, %s195
      %p199 = scmp.eq.s32.totalorder %s33, 0
      %p200 = por %p198, %p199
      %p201 = scmp.ne.s32.totalorder %s193, %s195
      %p202 = scmp.eq.s32.totalorder %s38, 1
      %p203 = por %p201, %p202
      %p204 = scmp.ne.s32.totalorder %s195, %s196
      %p205 = scmp.eq.s32.totalorder %s38, 0
      %p206 = por %p204, %p205
      %p207 = scmp.ne.s32.totalorder %s195, %s196
      %p208 = scmp.eq.s32.totalorder %s39, 1
      %p209 = por %p207, %p208
      %p211 = scmp.ne.s32.totalorder %s196, %s210
      %p212 = scmp.eq.s32.totalorder %s39, 0
      %p213 = por %p211, %p212
      %s215 = sadd.s32 %s214, 1
      %p218 = scmp.eq.s32.totalorder %s33, 1
      %p219 = scmp.ne.s32.totalorder %s214, %s216
      %p220 = scmp.eq.s32.totalorder %s33, 0
      %p221 = por %p219, %p220
      %p222 = scmp.ne.s32.totalorder %s214, %s216
      %p223 = scmp.eq.s32.totalorder %s38, 1
      %p224 = por %p222, %p223
      %p225 = scmp.ne.s32.totalorder %s216, %s217
      %p226 = scmp.eq.s32.totalorder %s38, 0
      %p227 = por %p225, %p226
      %p228 = scmp.ne.s32.totalorder %s216, %s217
      %p229 = scmp.eq.s32.totalorder %s39, 1
      %p230 = por %p228, %p229
      %p232 = scmp.ne.s32.totalorder %s217, %s231
      %p233 = scmp.eq.s32.totalorder %s39, 0
      %p234 = por %p232, %p233
      %s236 = sadd.s32 %s235, 1
      %p239 = scmp.eq.s32.totalorder %s33, 1
      %p240 = scmp.ne.s32.totalorder %s235, %s237
      %p241 = scmp.eq.s32.totalorder %s33, 0
      %p242 = por %p240, %p241
      %p243 = scmp.ne.s32.totalorder %s235, %s237
      %p244 = scmp.eq.s32.totalorder %s38, 1
      %p245 = por %p243, %p244
      %p246 = scmp.ne.s32.totalorder %s237, %s238
      %p247 = scmp.eq.s32.totalorder %s38, 0
      %p248 = por %p246, %p247
      %p249 = scmp.ne.s32.totalorder %s237, %s238
      %p250 = scmp.eq.s32.totalorder %s39, 1
      %p251 = por %p249, %p250
      %p253 = scmp.ne.s32.totalorder %s238, %s252
      %p254 = scmp.eq.s32.totalorder %s39, 0
      %p255 = por %p253, %p254
      %s257 = sadd.s32 %s256, 1
      %p260 = scmp.eq.s32.totalorder %s33, 1
      %p261 = scmp.ne.s32.totalorder %s256, %s258
      %p262 = scmp.eq.s32.totalorder %s33, 0
      %p263 = por %p261, %p262
      %p264 = scmp.ne.s32.totalorder %s256, %s258
      %p265 = scmp.eq.s32.totalorder %s38, 1
      %p266 = por %p264, %p265
      %p267 = scmp.ne.s32.totalorder %s258, %s259
      %p268 = scmp.eq.s32.totalorder %s38, 0
      %p269 = por %p267, %p268
      %p270 = scmp.ne.s32.totalorder %s258, %s259
      %p271 = scmp.eq.s32.totalorder %s39, 1
      %p272 = por %p270, %p271
      %p274 = scmp.ne.s32.totalorder %s259, %s273
      %p275 = scmp.eq.s32.totalorder %s39, 0
      %p276 = por %p274, %p275
      %s278 = sadd.s32 %s277, 1
      %p281 = scmp.eq.s32.totalorder %s33, 1
      %p282 = scmp.ne.s32.totalorder %s277, %s279
      %p283 = scmp.eq.s32.totalorder %s33, 0
      %p284 = por %p282, %p283
      %p285 = scmp.ne.s32.totalorder %s277, %s279
      %p286 = scmp.eq.s32.totalorder %s38, 1
      %p287 = por %p285, %p286
      %p288 = scmp.ne.s32.totalorder %s279, %s280
      %p289 = scmp.eq.s32.totalorder %s38, 0
      %p290 = por %p288, %p289
      %p291 = scmp.ne.s32.totalorder %s279, %s280
      %p292 = scmp.eq.s32.totalorder %s39, 1
      %p293 = por %p291, %p292
      %p295 = scmp.ne.s32.totalorder %s280, %s294
      %p296 = scmp.eq.s32.totalorder %s39, 0
      %p297 = por %p295, %p296
      %s299 = sadd.s32 %s298, 1
      %p302 = scmp.eq.s32.totalorder %s33, 1
      %p303 = scmp.ne.s32.totalorder %s298, %s300
      %p304 = scmp.eq.s32.totalorder %s33, 0
      %p305 = por %p303, %p304
      %p306 = scmp.ne.s32.totalorder %s298, %s300
      %p307 = scmp.eq.s32.totalorder %s38, 1
      %p308 = por %p306, %p307
      %p309 = scmp.ne.s32.totalorder %s300, %s301
      %p310 = scmp.eq.s32.totalorder %s38, 0
      %p311 = por %p309, %p310
      %p312 = scmp.ne.s32.totalorder %s300, %s301
      %p313 = scmp.eq.s32.totalorder %s39, 1
      %p314 = por %p312, %p313
      %p316 = scmp.ne.s32.totalorder %s301, %s315
      %p317 = scmp.eq.s32.totalorder %s39, 0
      %p318 = por %p316, %p317
      %s320 = sadd.s32 %s319, 1
      %p323 = scmp.eq.s32.totalorder %s33, 1
      %p324 = scmp.ne.s32.totalorder %s319, %s321
      %p325 = scmp.eq.s32.totalorder %s33, 0
      %p326 = por %p324, %p325
      %p327 = scmp.ne.s32.totalorder %s319, %s321
      %p328 = scmp.eq.s32.totalorder %s38, 1
      %p329 = por %p327, %p328
      %p330 = scmp.ne.s32.totalorder %s321, %s322
      %p331 = scmp.eq.s32.totalorder %s38, 0
      %p332 = por %p330, %p331
      %p333 = scmp.ne.s32.totalorder %s321, %s322
      %p334 = scmp.eq.s32.totalorder %s39, 1
      %p335 = por %p333, %p334
      %p337 = scmp.ne.s32.totalorder %s322, %s336
      %p338 = scmp.eq.s32.totalorder %s39, 0
      %p339 = por %p337, %p338
      %s341 = sadd.s32 %s340, 1
      %p344 = scmp.eq.s32.totalorder %s33, 1
      %p345 = scmp.ne.s32.totalorder %s340, %s342
      %p346 = scmp.eq.s32.totalorder %s33, 0
      %p347 = por %p345, %p346
      %p348 = scmp.ne.s32.totalorder %s340, %s342
      %p349 = scmp.eq.s32.totalorder %s38, 1
      %p350 = por %p348, %p349
      %p351 = scmp.ne.s32.totalorder %s342, %s343
      %p352 = scmp.eq.s32.totalorder %s38, 0
      %p353 = por %p351, %p352
      %p354 = scmp.ne.s32.totalorder %s342, %s343
      %p355 = scmp.eq.s32.totalorder %s39, 1
      %p356 = por %p354, %p355
      %p358 = scmp.ne.s32.totalorder %s343, %s357
      %p359 = scmp.eq.s32.totalorder %s39, 0
      %p360 = por %p358, %p359
      %s362 = sadd.s32 %s361, 1
      %p365 = scmp.eq.s32.totalorder %s33, 1
      %p366 = scmp.ne.s32.totalorder %s361, %s363
      %p367 = scmp.eq.s32.totalorder %s33, 0
      %p368 = por %p366, %p367
      %p369 = scmp.ne.s32.totalorder %s361, %s363
      %p370 = scmp.eq.s32.totalorder %s38, 1
      %p371 = por %p369, %p370
      %p372 = scmp.ne.s32.totalorder %s363, %s364
      %p373 = scmp.eq.s32.totalorder %s38, 0
      %p374 = por %p372, %p373
      %p375 = scmp.ne.s32.totalorder %s363, %s364
      %p376 = scmp.eq.s32.totalorder %s39, 1
      %p377 = por %p375, %p376
      %p379 = scmp.ne.s32.totalorder %s364, %s378
      %p380 = scmp.eq.s32.totalorder %s39, 0
      %p381 = por %p379, %p380
      %s383 = sadd.s32 %s382, 1
      %p386 = scmp.eq.s32.totalorder %s33, 1
      %p387 = scmp.ne.s32.totalorder %s382, %s384
      %p388 = scmp.eq.s32.totalorder %s33, 0
      %p389 = por %p387, %p388
      %p390 = scmp.ne.s32.totalorder %s382, %s384
      %p391 = scmp.eq.s32.totalorder %s38, 1
      %p392 = por %p390, %p391
      %p393 = scmp.ne.s32.totalorder %s384, %s385
      %p394 = scmp.eq.s32.totalorder %s38, 0
      %p395 = por %p393, %p394
      %p396 = scmp.ne.s32.totalorder %s384, %s385
      %p397 = scmp.eq.s32.totalorder %s39, 1
      %p398 = por %p396, %p397
      %p400 = scmp.ne.s32.totalorder %s385, %s399
      %p401 = scmp.eq.s32.totalorder %s39, 0
      %p402 = por %p400, %p401
      %s404 = sadd.s32 %s403, 1
      %p407 = scmp.eq.s32.totalorder %s33, 1
      %p408 = scmp.ne.s32.totalorder %s403, %s405
      %p409 = scmp.eq.s32.totalorder %s33, 0
      %p410 = por %p408, %p409
      %p411 = scmp.ne.s32.totalorder %s403, %s405
      %p412 = scmp.eq.s32.totalorder %s38, 1
      %p413 = por %p411, %p412
      %p414 = scmp.ne.s32.totalorder %s405, %s406
      %p415 = scmp.eq.s32.totalorder %s38, 0
      %p416 = por %p414, %p415
      %p417 = scmp.ne.s32.totalorder %s405, %s406
      %p418 = scmp.eq.s32.totalorder %s39, 1
      %p419 = por %p417, %p418
      %p421 = scmp.ne.s32.totalorder %s406, %s420
      %p422 = scmp.eq.s32.totalorder %s39, 0
      %p423 = por %p421, %p422
      %s425 = sadd.s32 %s424, 1
      %p428 = scmp.eq.s32.totalorder %s33, 1
      %p429 = scmp.ne.s32.totalorder %s424, %s426
      %p430 = scmp.eq.s32.totalorder %s33, 0
      %p431 = por %p429, %p430
      %p432 = scmp.ne.s32.totalorder %s424, %s426
      %p433 = scmp.eq.s32.totalorder %s38, 1
      %p434 = por %p432, %p433
      %p435 = scmp.ne.s32.totalorder %s426, %s427
      %p436 = scmp.eq.s32.totalorder %s38, 0
      %p437 = por %p435, %p436
      %p438 = scmp.ne.s32.totalorder %s426, %s427
      %p439 = scmp.eq.s32.totalorder %s39, 1
      %p440 = por %p438, %p439
      %p442 = scmp.ne.s32.totalorder %s427, %s441
      %p443 = scmp.eq.s32.totalorder %s39, 0
      %p444 = por %p442, %p443
      %s446 = sadd.s32 %s445, 1
      %p449 = scmp.eq.s32.totalorder %s33, 1
      %p450 = scmp.ne.s32.totalorder %s445, %s447
      %p451 = scmp.eq.s32.totalorder %s33, 0
      %p452 = por %p450, %p451
      %p453 = scmp.ne.s32.totalorder %s445, %s447
      %p454 = scmp.eq.s32.totalorder %s38, 1
      %p455 = por %p453, %p454
      %p456 = scmp.ne.s32.totalorder %s447, %s448
      %p457 = scmp.eq.s32.totalorder %s38, 0
      %p458 = por %p456, %p457
      %p459 = scmp.ne.s32.totalorder %s447, %s448
      %p460 = scmp.eq.s32.totalorder %s39, 1
      %p461 = por %p459, %p460
      %p463 = scmp.ne.s32.totalorder %s448, %s462
      %p464 = scmp.eq.s32.totalorder %s39, 0
      %p465 = por %p463, %p464
      %s467 = sadd.s32 %s466, 1
      %p470 = scmp.eq.s32.totalorder %s33, 1
      %p471 = scmp.ne.s32.totalorder %s466, %s468
      %p472 = scmp.eq.s32.totalorder %s33, 0
      %p473 = por %p471, %p472
      %p474 = scmp.ne.s32.totalorder %s466, %s468
      %p475 = scmp.eq.s32.totalorder %s38, 1
      %p476 = por %p474, %p475
      %p477 = scmp.ne.s32.totalorder %s468, %s469
      %p478 = scmp.eq.s32.totalorder %s38, 0
      %p479 = por %p477, %p478
      %p480 = scmp.ne.s32.totalorder %s468, %s469
      %p481 = scmp.eq.s32.totalorder %s39, 1
      %p482 = por %p480, %p481
      %p484 = scmp.ne.s32.totalorder %s469, %s483
      %p485 = scmp.eq.s32.totalorder %s39, 0
      %p486 = por %p484, %p485
      %s487 = ssub.s32 %s33, %s40
      %p488 = scmp.eq.s32.totalorder %s487, 0
      %s490 = sadd.s32 %s489, 1
      %s491 = scalar_select %p488, %s489, %s490
      %p494 = pneg %p488
      %p495 = scmp.eq.s32.totalorder %s33, 1
      %p496 = por %p494, %p495
      %p497 = scmp.ne.s32.totalorder %s489, %s492
      %p498 = scmp.eq.s32.totalorder %s33, 0
      %p499 = por %p497, %p498
      %p500 = scmp.ne.s32.totalorder %s489, %s492
      %p501 = scmp.eq.s32.totalorder %s38, 1
      %p502 = por %p500, %p501
      %p503 = scmp.ne.s32.totalorder %s492, %s493
      %p504 = scmp.eq.s32.totalorder %s38, 0
      %p505 = por %p503, %p504
      %p506 = scmp.ne.s32.totalorder %s492, %s493
      %p507 = scmp.eq.s32.totalorder %s39, 1
      %p508 = por %p506, %p507
      %p510 = scmp.ne.s32.totalorder %s493, %s509
      %p511 = scmp.eq.s32.totalorder %s39, 0
      %p512 = por %p510, %p511
      %p513 = scmp.le.s32.totalorder 1, %s33
      %p514 = scmp.lt.s32.totalorder %s33, 3
      %p515 = pnand %p513, %p514
      %p516 = pneg %p515
      // Predicated region
      $region9: #{resmlp_forward.1} parent=5 // pred_check
        _
      $region10: #{resmlp_forward.1} parent=5 // pred_check_branch
        %518 = sbr.rel (%p515) target = $region12
      $region11: #{resmlp_forward.1} parent=5 // pred_region
        %s519 = ssub.s32 %s33, 1
        // Predicated region
        $region13: #{resmlp_forward.1} parent=11 // pred_check
          %p520 = pneg %p80
        $region14: #{resmlp_forward.1} parent=11 // pred_check_branch
          %522 = sbr.rel (%p520) target = $region16
        $region15: #{resmlp_forward.1} parent=11 // pred_region
          _
        $region16: #{resmlp_forward.1} parent=11 // pred_fallthru
          _
        // Predicated region
        $region17: #{resmlp_forward.1} parent=11 // pred_check
          %p523 = pneg %p101
        $region18: #{resmlp_forward.1} parent=11 // pred_check_branch
          %525 = sbr.rel (%p523) target = $region20
        $region19: #{resmlp_forward.1} parent=11 // pred_region
          _
        $region20: #{resmlp_forward.1} parent=11 // pred_fallthru
          _
        // Predicated region
        $region21: #{resmlp_forward.1} parent=11 // pred_check
          %p526 = pneg %p122
        $region22: #{resmlp_forward.1} parent=11 // pred_check_branch
          %528 = sbr.rel (%p526) target = $region24
        $region23: #{resmlp_forward.1} parent=11 // pred_region
          _
        $region24: #{resmlp_forward.1} parent=11 // pred_fallthru
          _
        // Predicated region
        $region25: #{resmlp_forward.1} parent=11 // pred_check
          %p529 = pneg %p143
        $region26: #{resmlp_forward.1} parent=11 // pred_check_branch
          %531 = sbr.rel (%p529) target = $region28
        $region27: #{resmlp_forward.1} parent=11 // pred_region
          _
        $region28: #{resmlp_forward.1} parent=11 // pred_fallthru
          _
        // Predicated region
        $region29: #{resmlp_forward.1} parent=11 // pred_check
          %p532 = pneg %p164
        $region30: #{resmlp_forward.1} parent=11 // pred_check_branch
          %534 = sbr.rel (%p532) target = $region32
        $region31: #{resmlp_forward.1} parent=11 // pred_region
          _
        $region32: #{resmlp_forward.1} parent=11 // pred_fallthru
          _
        // Predicated region
        $region33: #{resmlp_forward.1} parent=11 // pred_check
          %p535 = pneg %p185
        $region34: #{resmlp_forward.1} parent=11 // pred_check_branch
          %537 = sbr.rel (%p535) target = $region36
        $region35: #{resmlp_forward.1} parent=11 // pred_region
          _
        $region36: #{resmlp_forward.1} parent=11 // pred_fallthru
          _
        // Predicated region
        $region37: #{resmlp_forward.1} parent=11 // pred_check
          %p538 = pneg %p206
        $region38: #{resmlp_forward.1} parent=11 // pred_check_branch
          %540 = sbr.rel (%p538) target = $region40
        $region39: #{resmlp_forward.1} parent=11 // pred_region
          %s542 = ssub.s32 4096, 4096
          %543 = vsyncadd [#allocation5], %s542
          %s544 = sshll.u32 [#allocation4], 4
          %s545 = int_to_ptr.vmem [resolvable:$true] %s544
          %550 = dma.hbm_to_vmem [thread:$0]  %s7, 4096, %s545, [#allocation5], 128, 128, 8
        $region40: #{resmlp_forward.1} parent=11 // pred_fallthru
          _
        // Predicated region
        $region41: #{resmlp_forward.1} parent=11 // pred_check
          %p551 = pneg %p227
        $region42: #{resmlp_forward.1} parent=11 // pred_check_branch
          %553 = sbr.rel (%p551) target = $region44
        $region43: #{resmlp_forward.1} parent=11 // pred_region
          _
        $region44: #{resmlp_forward.1} parent=11 // pred_fallthru
          _
        // Predicated region
        $region45: #{resmlp_forward.1} parent=11 // pred_check
          %p554 = pneg %p248
        $region46: #{resmlp_forward.1} parent=11 // pred_check_branch
          %556 = sbr.rel (%p554) target = $region48
        $region47: #{resmlp_forward.1} parent=11 // pred_region
          _
        $region48: #{resmlp_forward.1} parent=11 // pred_fallthru
          _
        // Predicated region
        $region49: #{resmlp_forward.1} parent=11 // pred_check
          %p557 = pneg %p269
        $region50: #{resmlp_forward.1} parent=11 // pred_check_branch
          %559 = sbr.rel (%p557) target = $region52
        $region51: #{resmlp_forward.1} parent=11 // pred_region
          _
        $region52: #{resmlp_forward.1} parent=11 // pred_fallthru
          _
        // Predicated region
        $region53: #{resmlp_forward.1} parent=11 // pred_check
          %p560 = pneg %p290
        $region54: #{resmlp_forward.1} parent=11 // pred_check_branch
          %562 = sbr.rel (%p560) target = $region56
        $region55: #{resmlp_forward.1} parent=11 // pred_region
          _
        $region56: #{resmlp_forward.1} parent=11 // pred_fallthru
          _
        // Predicated region
        $region57: #{resmlp_forward.1} parent=11 // pred_check
          %p563 = pneg %p311
        $region58: #{resmlp_forward.1} parent=11 // pred_check_branch
          %565 = sbr.rel (%p563) target = $region60
        $region59: #{resmlp_forward.1} parent=11 // pred_region
          _
        $region60: #{resmlp_forward.1} parent=11 // pred_fallthru
          _
        // Predicated region
        $region61: #{resmlp_forward.1} parent=11 // pred_check
          %p566 = pneg %p332
        $region62: #{resmlp_forward.1} parent=11 // pred_check_branch
          %568 = sbr.rel (%p566) target = $region64
        $region63: #{resmlp_forward.1} parent=11 // pred_region
          _
        $region64: #{resmlp_forward.1} parent=11 // pred_fallthru
          _
        // Predicated region
        $region65: #{resmlp_forward.1} parent=11 // pred_check
          %p569 = pneg %p353
        $region66: #{resmlp_forward.1} parent=11 // pred_check_branch
          %571 = sbr.rel (%p569) target = $region68
        $region67: #{resmlp_forward.1} parent=11 // pred_region
          _
        $region68: #{resmlp_forward.1} parent=11 // pred_fallthru
          _
        // Predicated region
        $region69: #{resmlp_forward.1} parent=11 // pred_check
          %p572 = pneg %p374
        $region70: #{resmlp_forward.1} parent=11 // pred_check_branch
          %574 = sbr.rel (%p572) target = $region72
        $region71: #{resmlp_forward.1} parent=11 // pred_region
          %s576 = ssub.s32 16, 16
          %577 = vsyncadd [#allocation6], %s576
          %s579 = sshll.u32 %s15, 4
          %s580 = int_to_ptr.vmem [resolvable:$true] %s579
          %582 = dma.vmem_to_smem %s580, 16, [#allocation7], [#allocation6]
        $region72: #{resmlp_forward.1} parent=11 // pred_fallthru
          _
        // Predicated region
        $region73: #{resmlp_forward.1} parent=11 // pred_check
          %p583 = pneg %p395
        $region74: #{resmlp_forward.1} parent=11 // pred_check_branch
          %585 = sbr.rel (%p583) target = $region76
        $region75: #{resmlp_forward.1} parent=11 // pred_region
          %s587 = ssub.s32 16, 16
          %588 = vsyncadd [#allocation9], %s587
          %s590 = sshll.u32 %s16, 4
          %s591 = int_to_ptr.vmem [resolvable:$true] %s590
          %593 = dma.vmem_to_smem %s591, 16, [#allocation8], [#allocation9]
        $region76: #{resmlp_forward.1} parent=11 // pred_fallthru
          _
        // Predicated region
        $region77: #{resmlp_forward.1} parent=11 // pred_check
          %p594 = pneg %p416
        $region78: #{resmlp_forward.1} parent=11 // pred_check_branch
          %596 = sbr.rel (%p594) target = $region80
        $region79: #{resmlp_forward.1} parent=11 // pred_region
          %s598 = ssub.s32 16, 16
          %599 = vsyncadd [#allocation9], %s598
          %s601 = sshll.u32 %s17, 4
          %s602 = int_to_ptr.vmem [resolvable:$true] %s601
          %604 = dma.vmem_to_smem %s602, 16, [#allocation10], [#allocation9]
        $region80: #{resmlp_forward.1} parent=11 // pred_fallthru
          _
        // Predicated region
        $region81: #{resmlp_forward.1} parent=11 // pred_check
          %p605 = pneg %p437
        $region82: #{resmlp_forward.1} parent=11 // pred_check_branch
          %607 = sbr.rel (%p605) target = $region84
        $region83: #{resmlp_forward.1} parent=11 // pred_region
          %s609 = ssub.s32 16, 16
          %610 = vsyncadd [#allocation12], %s609
          %s612 = sshll.u32 %s18, 4
          %s613 = int_to_ptr.vmem [resolvable:$true] %s612
          %615 = dma.vmem_to_smem %s613, 16, [#allocation11], [#allocation12]
        $region84: #{resmlp_forward.1} parent=11 // pred_fallthru
          _
        // Predicated region
        $region85: #{resmlp_forward.1} parent=11 // pred_check
          %p616 = pneg %p458
        $region86: #{resmlp_forward.1} parent=11 // pred_check_branch
          %618 = sbr.rel (%p616) target = $region88
        $region87: #{resmlp_forward.1} parent=11 // pred_region
          _
        $region88: #{resmlp_forward.1} parent=11 // pred_fallthru
          _
        // Predicated region
        $region89: #{resmlp_forward.1} parent=11 // pred_check
          %p619 = pneg %p479
        $region90: #{resmlp_forward.1} parent=11 // pred_check_branch
          %621 = sbr.rel (%p619) target = $region92
        $region91: #{resmlp_forward.1} parent=11 // pred_region
          _
        $region92: #{resmlp_forward.1} parent=11 // pred_fallthru
          _
      $region12: #{resmlp_forward.1} parent=5 // pred_fallthru
        _
      %p622 = scmp.lt.s32.totalorder %s33, 2
      // Predicated region
      $region93: #{resmlp_forward.1} parent=5 // pred_check
        %p623 = pneg %p622
      $region94: #{resmlp_forward.1} parent=5 // pred_check_branch
        %625 = sbr.rel (%p623) target = $region96
      $region95: #{resmlp_forward.1} parent=5 // pred_region
        // Predicated region
        $region97: #{resmlp_forward.1} parent=95 // pred_check
          %p626 = pneg %p53
        $region98: #{resmlp_forward.1} parent=95 // pred_check_branch
          %628 = sbr.rel (%p626) target = $region100
        $region99: #{resmlp_forward.1} parent=95 // pred_region
          %s629 = smul.u32 16, %s33
          %p630 = scmp.lt.s32.totalorder %s629, 31
          %s631 = scalar_select %p630, %s629, 31
          %s632 = smul.addr %s631, 8
          %s633 = scalar_lea.vmem %s0, %s632
          %s634 = smul.u32 16, %s33
        $region100: #{resmlp_forward.1} parent=95 // pred_fallthru
          _
      $region96: #{resmlp_forward.1} parent=5 // pred_fallthru
        _
      %p635 = scmp.le.s32.totalorder 1, %s33
      %p636 = scmp.lt.s32.totalorder %s33, 3
      %p637 = pnand %p635, %p636
      %p638 = pneg %p637
      // Predicated region
      $region101: #{resmlp_forward.1} parent=5 // pred_check
        _
      $region102: #{resmlp_forward.1} parent=5 // pred_check_branch
        %640 = sbr.rel (%p637) target = $region104
      $region103: #{resmlp_forward.1} parent=5 // pred_region
        %s641 = ssub.s32 %s33, 1
        // Predicated region
        $region105: #{resmlp_forward.1} parent=103 // pred_check
          %p642 = pneg %p206
        $region106: #{resmlp_forward.1} parent=103 // pred_check_branch
          %644 = sbr.rel (%p642) target = $region108
        $region107: #{resmlp_forward.1} parent=103 // pred_region
          %645 = dma.done [#allocation5], 4096
        $region108: #{resmlp_forward.1} parent=103 // pred_fallthru
          _
        // Predicated region
        $region109: #{resmlp_forward.1} parent=103 // pred_check
          %p646 = pneg %p374
        $region110: #{resmlp_forward.1} parent=103 // pred_check_branch
          %648 = sbr.rel (%p646) target = $region112
        $region111: #{resmlp_forward.1} parent=103 // pred_region
          %649 = dma.done [#allocation6], 16
        $region112: #{resmlp_forward.1} parent=103 // pred_fallthru
          _
        // Predicated region
        $region113: #{resmlp_forward.1} parent=103 // pred_check
          %p650 = pneg %p395
        $region114: #{resmlp_forward.1} parent=103 // pred_check_branch
          %652 = sbr.rel (%p650) target = $region116
        $region115: #{resmlp_forward.1} parent=103 // pred_region
          %653 = dma.done [#allocation9], 16
        $region116: #{resmlp_forward.1} parent=103 // pred_fallthru
          _
        // Predicated region
        $region117: #{resmlp_forward.1} parent=103 // pred_check
          %p654 = pneg %p416
        $region118: #{resmlp_forward.1} parent=103 // pred_check_branch
          %656 = sbr.rel (%p654) target = $region120
        $region119: #{resmlp_forward.1} parent=103 // pred_region
          %657 = dma.done [#allocation9], 16
        $region120: #{resmlp_forward.1} parent=103 // pred_fallthru
          _
        // Predicated region
        $region121: #{resmlp_forward.1} parent=103 // pred_check
          %p658 = pneg %p437
        $region122: #{resmlp_forward.1} parent=103 // pred_check_branch
          %660 = sbr.rel (%p658) target = $region124
        $region123: #{resmlp_forward.1} parent=103 // pred_region
          %661 = dma.done [#allocation12], 16
        $region124: #{resmlp_forward.1} parent=103 // pred_fallthru
          _
        %662 = sfence
        %s663 = smul.u32 16, %s38
        %p664 = scmp.lt.s32.totalorder %s663, 31
        %s665 = scalar_select %p664, %s663, 31
        %s666 = smul.addr %s665, 8
        %s667 = scalar_lea.vmem %s0, %s666
        %p668 = pneg %p59
        %p669 = pneg %p56
        %p670 = pneg %p80
        %p671 = pneg %p77
        %p672 = pneg %p101
        %p673 = pneg %p98
        %p674 = pneg %p122
        %p675 = pneg %p119
        %p676 = pneg %p143
        %p677 = pneg %p140
        %p678 = pneg %p164
        %p679 = pneg %p161
        %p680 = pneg %p185
        %p681 = pneg %p182
        %p682 = pneg %p206
        %p683 = pneg %p203
        %p684 = pneg %p227
        %p685 = pneg %p224
        %p686 = pneg %p248
        %p687 = pneg %p245
        %p688 = pneg %p269
        %p689 = pneg %p266
        %p690 = pneg %p290
        %p691 = pneg %p287
        %p692 = pneg %p311
        %p693 = pneg %p308
        %p694 = pneg %p332
        %p695 = pneg %p329
        %p696 = pneg %p353
        %p697 = pneg %p350
        %p698 = pneg %p374
        %p699 = pneg %p371
        %p700 = pneg %p395
        %p701 = pneg %p392
        %p702 = pneg %p416
        %p703 = pneg %p413
        %p704 = pneg %p437
        %p705 = pneg %p434
        %p706 = pneg %p458
        %p707 = pneg %p455
        %p708 = pneg %p479
        %p709 = pneg %p476
        %p710 = pneg %p505
        %p711 = pneg %p502
        %s712 = smul.u32 16, %s38
        %p713 = scmp.lt.s32.totalorder %s712, 31
        %s714 = scalar_select %p713, %s712, 31
        %s715 = smul.addr %s714, 8
        %s716 = scalar_lea.vmem %s21, %s715
        %s717 = smul.u32 16, %s38
        %p718 = scmp.lt.s32.totalorder %s717, 31
        %s719 = scalar_select %p718, %s717, 31
        %s720 = smul.addr %s719, 8
        %s721 = scalar_lea.vmem %s0, %s720
        %s722 = smul.u32 16, %s38
        %s723 = smul.u32 16, %s38
        %p724 = scmp.lt.s32.totalorder %s723, 31
        %s725 = scalar_select %p724, %s723, 31
        %s726 = smul.addr %s725, 8
        %s727 = scalar_lea.vmem %s21, %s726
        %s728 = smul.u32 16, %s38
        %v729 = vld [vmem:[%s721] sm:$0xff]
        %v730 = vld [vmem:[%s721 + $0x8] sm:$0xff]
        %v731 = vld [vmem:[%s721 + $0x10] sm:$0xff]
        %v732 = vld [vmem:[%s721 + $0x18] sm:$0xff]
        %v733 = vld [vmem:[%s721 + $0x20] sm:$0xff]
        %v734 = vld [vmem:[%s721 + $0x28] sm:$0xff]
        %v735 = vld [vmem:[%s721 + $0x30] sm:$0xff]
        %v736 = vld [vmem:[%s721 + $0x38] sm:$0xff]
        %v737 = vld [vmem:[%s721 + $0x40] sm:$0xff]
        %v738 = vld [vmem:[%s721 + $0x48] sm:$0xff]
        %v739 = vld [vmem:[%s721 + $0x50] sm:$0xff]
        %v740 = vld [vmem:[%s721 + $0x58] sm:$0xff]
        %v741 = vld [vmem:[%s721 + $0x60] sm:$0xff]
        %v742 = vld [vmem:[%s721 + $0x68] sm:$0xff]
        %v743 = vld [vmem:[%s721 + $0x70] sm:$0xff]
        %v744 = vld [vmem:[%s721 + $0x78] sm:$0xff]
        %v745 = vld [vmem:[%s1] sm:$0xff]
        %v746 = vld [vmem:[%s1 + $0x8] sm:$0xff]
        %v747 = vld [vmem:[%s2] sm:$0x1]
        %v749 = vlaneseq
        %v750 = vshrl.u32 %v749, 7
        %v751 = vsub.s32 0, %v750
        %v752 = vrot.slane %v747, %v751
        %vm754 = vcmask 130048
        %v756 = vsel %vm754, %v729, 0
        %v759 = vsel %vm754, %v730, 0
        %v762 = vsel %vm754, %v731, 0
        %v765 = vsel %vm754, %v732, 0
        %v768 = vsel %vm754, %v733, 0
        %v771 = vsel %vm754, %v734, 0
        %v774 = vsel %vm754, %v735, 0
        %v777 = vsel %vm754, %v736, 0
        %v780 = vsel %vm754, %v737, 0
        %v783 = vsel %vm754, %v738, 0
        %v786 = vsel %vm754, %v739, 0
        %v789 = vsel %vm754, %v740, 0
        %v792 = vsel %vm754, %v741, 0
        %v795 = vsel %vm754, %v742, 0
        %v798 = vsel %vm754, %v743, 0
        %v801 = vsel %vm754, %v744, 0
        %803 = vmatprep.subr.mxu0 0.0
        %804 = vmatpush1.msra.mxu0 %v745
        %805 = vmatprep.subr.mxu0 0.0
        %806 = vmatpush1.msra.mxu0 %v746
        %807 = vmatprep.subr.mxu0 0.0
        %808 = vmatpush1.msra.mxu0 0.0
        %809 = vmatprep.subr.mxu0 0.0
        %810 = vmatpush1.msra.mxu0 0.0
        %811 = vmatprep.subr.mxu0 0.0
        %812 = vmatpush1.msra.mxu0 0.0
        %813 = vmatprep.subr.mxu0 0.0
        %814 = vmatpush1.msra.mxu0 0.0
        %815 = vmatprep.subr.mxu0 0.0
        %816 = vmatpush1.msra.mxu0 0.0
        %817 = vmatprep.subr.mxu0 0.0
        %818 = vmatpush1.msra.mxu0 0.0
        %819 = vmatprep.subr.mxu0 0.0
        %820 = vmatpush1.msra.mxu0 0.0
        %821 = vmatprep.subr.mxu0 0.0
        %822 = vmatpush1.msra.mxu0 0.0
        %823 = vmatprep.subr.mxu0 0.0
        %824 = vmatpush1.msra.mxu0 0.0
        %825 = vmatprep.subr.mxu0 0.0
        %826 = vmatpush1.msra.mxu0 0.0
        %827 = vmatprep.subr.mxu0 0.0
        %828 = vmatpush1.msra.mxu0 0.0
        %829 = vmatprep.subr.mxu0 0.0
        %830 = vmatpush1.msra.mxu0 0.0
        %831 = vmatprep.subr.mxu0 0.0
        %832 = vmatpush1.msra.mxu0 0.0
        %833 = vmatprep.subr.mxu0 0.0
        %834 = vmatpush1.msra.mxu0 0.0
        %835 = vmatprep.subr.mxu0 0.0
        %836 = vmatpush1.msra.mxu0 0.0
        %837 = vmatprep.subr.mxu0 0.0
        %838 = vmatpush1.msra.mxu0 0.0
        %839 = vmatprep.subr.mxu0 0.0
        %840 = vmatpush1.msra.mxu0 0.0
        %841 = vmatprep.subr.mxu0 0.0
        %842 = vmatpush1.msra.mxu0 0.0
        %843 = vmatprep.subr.mxu0 0.0
        %844 = vmatpush1.msra.mxu0 0.0
        %845 = vmatprep.subr.mxu0 0.0
        %846 = vmatpush1.msra.mxu0 0.0
        %847 = vmatprep.subr.mxu0 0.0
        %848 = vmatpush1.msra.mxu0 0.0
        %849 = vmatprep.subr.mxu0 0.0
        %850 = vmatpush1.msra.mxu0 0.0
        %851 = vmatprep.subr.mxu0 0.0
        %852 = vmatpush1.msra.mxu0 0.0
        %853 = vmatprep.subr.mxu0 0.0
        %854 = vmatpush1.msra.mxu0 0.0
        %855 = vmatprep.subr.mxu0 0.0
        %856 = vmatpush1.msra.mxu0 0.0
        %857 = vmatprep.subr.mxu0 0.0
        %858 = vmatpush1.msra.mxu0 0.0
        %859 = vmatprep.subr.mxu0 0.0
        %860 = vmatpush1.msra.mxu0 0.0
        %861 = vmatprep.subr.mxu0 0.0
        %862 = vmatpush1.msra.mxu0 0.0
        %863 = vmatprep.subr.mxu0 0.0
        %864 = vmatpush1.msra.mxu0 0.0
        %865 = vmatprep.subr.mxu0 0.0
        %866 = vmatpush1.msra.mxu0 0.0
        %867 = vmatprep.mubr.f32.mxu0 0.0
        %868 = vmatmul.mubr.f32.gmra.mrb[0].mxu0 %v756
        %v869 = vpop.f32.mrb[0].mxu0
        %v870 = vadd.f32 %v752, %v869
        %v871 = vpop.f32.mrb[0].mxu0
        %872 = vmatprep.mubr.f32.mxu0 0.0
        %873 = vmatmul.mubr.f32.gmra.mrb[0].mxu0 %v759
        %v874 = vpop.f32.mrb[0].mxu0
        %v875 = vadd.f32 %v752, %v874
        %v876 = vpop.f32.mrb[0].mxu0
        %877 = vmatprep.mubr.f32.mxu0 0.0
        %878 = vmatmul.mubr.f32.gmra.mrb[0].mxu0 %v762
        %v879 = vpop.f32.mrb[0].mxu0
        %v880 = vadd.f32 %v752, %v879
        %v881 = vpop.f32.mrb[0].mxu0
        %882 = vmatprep.mubr.f32.mxu0 0.0
        %883 = vmatmul.mubr.f32.gmra.mrb[0].mxu0 %v765
        %v884 = vpop.f32.mrb[0].mxu0
        %v885 = vadd.f32 %v752, %v884
        %v886 = vpop.f32.mrb[0].mxu0
        %887 = vmatprep.mubr.f32.mxu0 0.0
        %888 = vmatmul.mubr.f32.gmra.mrb[0].mxu0 %v768
        %v889 = vpop.f32.mrb[0].mxu0
        %v890 = vadd.f32 %v752, %v889
        %v891 = vpop.f32.mrb[0].mxu0
        %892 = vmatprep.mubr.f32.mxu0 0.0
        %893 = vmatmul.mubr.f32.gmra.mrb[0].mxu0 %v771
        %v894 = vpop.f32.mrb[0].mxu0
        %v895 = vadd.f32 %v752, %v894
        %v896 = vpop.f32.mrb[0].mxu0
        %897 = vmatprep.mubr.f32.mxu0 0.0
        %898 = vmatmul.mubr.f32.gmra.mrb[0].mxu0 %v774
        %v899 = vpop.f32.mrb[0].mxu0
        %v900 = vadd.f32 %v752, %v899
        %v901 = vpop.f32.mrb[0].mxu0
        %902 = vmatprep.mubr.f32.mxu0 0.0
        %903 = vmatmul.mubr.f32.gmra.mrb[0].mxu0 %v777
        %v904 = vpop.f32.mrb[0].mxu0
        %v905 = vadd.f32 %v752, %v904
        %v906 = vpop.f32.mrb[0].mxu0
        %907 = vmatprep.mubr.f32.mxu0 0.0
        %908 = vmatmul.mubr.f32.gmra.mrb[0].mxu0 %v780
        %v909 = vpop.f32.mrb[0].mxu0
        %v910 = vadd.f32 %v752, %v909
        %v911 = vpop.f32.mrb[0].mxu0
        %912 = vmatprep.mubr.f32.mxu0 0.0
        %913 = vmatmul.mubr.f32.gmra.mrb[0].mxu0 %v783
        %v914 = vpop.f32.mrb[0].mxu0
        %v915 = vadd.f32 %v752, %v914
        %v916 = vpop.f32.mrb[0].mxu0
        %917 = vmatprep.mubr.f32.mxu0 0.0
        %918 = vmatmul.mubr.f32.gmra.mrb[0].mxu0 %v786
        %v919 = vpop.f32.mrb[0].mxu0
        %v920 = vadd.f32 %v752, %v919
        %v921 = vpop.f32.mrb[0].mxu0
        %922 = vmatprep.mubr.f32.mxu0 0.0
        %923 = vmatmul.mubr.f32.gmra.mrb[0].mxu0 %v789
        %v924 = vpop.f32.mrb[0].mxu0
        %v925 = vadd.f32 %v752, %v924
        %v926 = vpop.f32.mrb[0].mxu0
        %927 = vmatprep.mubr.f32.mxu0 0.0
        %928 = vmatmul.mubr.f32.gmra.mrb[0].mxu0 %v792
        %v929 = vpop.f32.mrb[0].mxu0
        %v930 = vadd.f32 %v752, %v929
        %v931 = vpop.f32.mrb[0].mxu0
        %932 = vmatprep.mubr.f32.mxu0 0.0
        %933 = vmatmul.mubr.f32.gmra.mrb[0].mxu0 %v795
        %v934 = vpop.f32.mrb[0].mxu0
        %v935 = vadd.f32 %v752, %v934
        %v936 = vpop.f32.mrb[0].mxu0
        %937 = vmatprep.mubr.f32.mxu0 0.0
        %938 = vmatmul.mubr.f32.gmra.mrb[0].mxu0 %v798
        %v939 = vpop.f32.mrb[0].mxu0
        %v940 = vadd.f32 %v752, %v939
        %v941 = vpop.f32.mrb[0].mxu0
        %942 = vmatprep.mubr.f32.mxu0 0.0
        %943 = vmatmul.mubr.f32.gmra.mrb[0].mxu0 %v801
        %v944 = vpop.f32.mrb[0].mxu0
        %v945 = vadd.f32 %v752, %v944
        %v946 = vpop.f32.mrb[0].mxu0
        %947 = vdwg.mxu0
        %v948 = vld [vmem:[%s3] sm:$0xff]
        %v949 = vld [vmem:[%s3 + $0x8] sm:$0xff]
        %v950 = vld [vmem:[%s3 + $0x10] sm:$0xff]
        %v951 = vld [vmem:[%s3 + $0x18] sm:$0xff]
        %v952 = vld [vmem:[%s3 + $0x20] sm:$0xff]
        %v953 = vld [vmem:[%s3 + $0x28] sm:$0xff]
        %v954 = vld [vmem:[%s3 + $0x30] sm:$0xff]
        %v955 = vld [vmem:[%s3 + $0x38] sm:$0xff]
        %v956 = vld [vmem:[%s3 + $0x40] sm:$0xff]
        %v957 = vld [vmem:[%s3 + $0x48] sm:$0xff]
        %v958 = vld [vmem:[%s3 + $0x50] sm:$0xff]
        %v959 = vld [vmem:[%s3 + $0x58] sm:$0xff]
        %v960 = vld [vmem:[%s3 + $0x60] sm:$0xff]
        %v961 = vld [vmem:[%s3 + $0x68] sm:$0xff]
        %v962 = vld [vmem:[%s3 + $0x70] sm:$0xff]
        %v963 = vld [vmem:[%s3 + $0x78] sm:$0xff]
        %v964 = vld [vmem:[%s4] sm:$0x1]
        %v965 = vld [vmem:[%s5] sm:$0x1]
        %v966 = vld [vmem:[%s6] sm:$0x1]
        %v967 = vld [vmem:[#allocation4] sm:$0xff]
        %v968 = vld [vmem:[#allocation4 + $0x8] sm:$0xff]
        %v969 = vld [vmem:[#allocation4 + $0x10] sm:$0xff]
        %v970 = vld [vmem:[#allocation4 + $0x18] sm:$0xff]
        %v971 = vld [vmem:[#allocation4 + $0x20] sm:$0xff]
        %v972 = vld [vmem:[#allocation4 + $0x28] sm:$0xff]
        %v973 = vld [vmem:[#allocation4 + $0x30] sm:$0xff]
        %v974 = vld [vmem:[#allocation4 + $0x38] sm:$0xff]
        %v975 = vld [vmem:[#allocation4 + $0x40] sm:$0xff]
        %v976 = vld [vmem:[#allocation4 + $0x48] sm:$0xff]
        %v977 = vld [vmem:[#allocation4 + $0x50] sm:$0xff]
        %v978 = vld [vmem:[#allocation4 + $0x58] sm:$0xff]
        %v979 = vld [vmem:[#allocation4 + $0x60] sm:$0xff]
        %v980 = vld [vmem:[#allocation4 + $0x68] sm:$0xff]
        %v981 = vld [vmem:[#allocation4 + $0x70] sm:$0xff]
        %v982 = vld [vmem:[#allocation4 + $0x78] sm:$0xff]
        %v983 = vld [vmem:[%s8] sm:$0x1]
        %v984 = vld [vmem:[%s9] sm:$0x1]
        %v985 = vld [vmem:[%s10] sm:$0x1]
        %v986 = vld [vmem:[%s11] sm:$0x1]
        %v987 = vld [vmem:[%s12] sm:$0x1]
        %s988 = sld [smem:[#allocation7]]
        %v989 = vstv %s988
        %v990 = vmul.f32 %v870, %v989
        %v991 = vmul.f32 %v875, %v989
        %v992 = vmul.f32 %v880, %v989
        %v993 = vmul.f32 %v885, %v989
        %v994 = vmul.f32 %v890, %v989
        %v995 = vmul.f32 %v895, %v989
        %v996 = vmul.f32 %v900, %v989
        %v997 = vmul.f32 %v905, %v989
        %v998 = vmul.f32 %v910, %v989
        %v999 = vmul.f32 %v915, %v989
        %v1000 = vmul.f32 %v920, %v989
        %v1001 = vmul.f32 %v925, %v989
        %v1002 = vmul.f32 %v930, %v989
        %v1003 = vmul.f32 %v935, %v989
        %v1004 = vmul.f32 %v940, %v989
        %v1005 = vmul.f32 %v945, %v989
        %s1006 = sld [smem:[#allocation8]]
        %v1007 = vstv %s1006
        %v1008 = vadd.f32 %v990, %v1007
        %v1009 = vadd.f32 %v991, %v1007
        %v1010 = vadd.f32 %v992, %v1007
        %v1011 = vadd.f32 %v993, %v1007
        %v1012 = vadd.f32 %v994, %v1007
        %v1013 = vadd.f32 %v995, %v1007
        %v1014 = vadd.f32 %v996, %v1007
        %v1015 = vadd.f32 %v997, %v1007
        %v1016 = vadd.f32 %v998, %v1007
        %v1017 = vadd.f32 %v999, %v1007
        %v1018 = vadd.f32 %v1000, %v1007
        %v1019 = vadd.f32 %v1001, %v1007
        %v1020 = vadd.f32 %v1002, %v1007
        %v1021 = vadd.f32 %v1003, %v1007
        %v1022 = vadd.f32 %v1004, %v1007
        %v1023 = vadd.f32 %v1005, %v1007
        %v1024 = vlaneseq
        %v1025 = vshrl.u32 %v1024, 7
        %v1026 = vsub.s32 0, %v1025
        %v1027 = vrot.slane %v964, %v1026
        %1028 = vmatprep.subr.mxu0 0.0
        %1029 = vmatpush1.msra.mxu0 %v948
        %1030 = vmatprep.subr.mxu0 0.0
        %1031 = vmatpush1.msra.mxu0 %v949
        %1032 = vmatprep.subr.mxu0 0.0
        %1033 = vmatpush1.msra.mxu0 %v950
        %1034 = vmatprep.subr.mxu0 0.0
        %1035 = vmatpush1.msra.mxu0 %v951
        %1036 = vmatprep.subr.mxu0 0.0
        %1037 = vmatpush1.msra.mxu0 %v952
        %1038 = vmatprep.subr.mxu0 0.0
        %1039 = vmatpush1.msra.mxu0 %v953
        %1040 = vmatprep.subr.mxu0 0.0
        %1041 = vmatpush1.msra.mxu0 %v954
        %1042 = vmatprep.subr.mxu0 0.0
        %1043 = vmatpush1.msra.mxu0 %v955
        %1044 = vmatprep.subr.mxu0 0.0
        %1045 = vmatpush1.msra.mxu0 %v956
        %1046 = vmatprep.subr.mxu0 0.0
        %1047 = vmatpush1.msra.mxu0 %v957
        %1048 = vmatprep.subr.mxu0 0.0
        %1049 = vmatpush1.msra.mxu0 %v958
        %1050 = vmatprep.subr.mxu0 0.0
        %1051 = vmatpush1.msra.mxu0 %v959
        %1052 = vmatprep.subr.mxu0 0.0
        %1053 = vmatpush1.msra.mxu0 %v960
        %1054 = vmatprep.subr.mxu0 0.0
        %1055 = vmatpush1.msra.mxu0 %v961
        %1056 = vmatprep.subr.mxu0 0.0
        %1057 = vmatpush1.msra.mxu0 %v962
        %1058 = vmatprep.subr.mxu0 0.0
        %1059 = vmatpush1.msra.mxu0 %v963
        %1060 = vmatprep.subr.mxu0 0.0
        %1061 = vmatpush1.msra.mxu0 0.0
        %1062 = vmatprep.subr.mxu0 0.0
        %1063 = vmatpush1.msra.mxu0 0.0
        %1064 = vmatprep.subr.mxu0 0.0
        %1065 = vmatpush1.msra.mxu0 0.0
        %1066 = vmatprep.subr.mxu0 0.0
        %1067 = vmatpush1.msra.mxu0 0.0
        %1068 = vmatprep.subr.mxu0 0.0
        %1069 = vmatpush1.msra.mxu0 0.0
        %1070 = vmatprep.subr.mxu0 0.0
        %1071 = vmatpush1.msra.mxu0 0.0
        %1072 = vmatprep.subr.mxu0 0.0
        %1073 = vmatpush1.msra.mxu0 0.0
        %1074 = vmatprep.subr.mxu0 0.0
        %1075 = vmatpush1.msra.mxu0 0.0
        %1076 = vmatprep.subr.mxu0 0.0
        %1077 = vmatpush1.msra.mxu0 0.0
        %1078 = vmatprep.subr.mxu0 0.0
        %1079 = vmatpush1.msra.mxu0 0.0
        %1080 = vmatprep.subr.mxu0 0.0
        %1081 = vmatpush1.msra.mxu0 0.0
        %1082 = vmatprep.subr.mxu0 0.0
        %1083 = vmatpush1.msra.mxu0 0.0
        %1084 = vmatprep.subr.mxu0 0.0
        %1085 = vmatpush1.msra.mxu0 0.0
        %1086 = vmatprep.subr.mxu0 0.0
        %1087 = vmatpush1.msra.mxu0 0.0
        %1088 = vmatprep.subr.mxu0 0.0
        %1089 = vmatpush1.msra.mxu0 0.0
        %1090 = vmatprep.subr.mxu0 0.0
        %1091 = vmatpush1.msra.mxu0 0.0
        %1092 = vmatprep.mubr.f32.mxu0 0.0
        %1093 = vmatmul.mubr.f32.gmra.mrb[0].mxu0 %v1008
        %v1094 = vpop.f32.mrb[0].mxu0
        %v1095 = vadd.f32 %v1027, %v1094
        %v1096 = vpop.f32.mrb[0].mxu0
        %1097 = vmatprep.mubr.f32.mxu0 0.0
        %1098 = vmatmul.mubr.f32.gmra.mrb[0].mxu0 %v1009
        %v1099 = vpop.f32.mrb[0].mxu0
        %v1100 = vadd.f32 %v1027, %v1099
        %v1101 = vpop.f32.mrb[0].mxu0
        %1102 = vmatprep.mubr.f32.mxu0 0.0
        %1103 = vmatmul.mubr.f32.gmra.mrb[0].mxu0 %v1010
        %v1104 = vpop.f32.mrb[0].mxu0
        %v1105 = vadd.f32 %v1027, %v1104
        %v1106 = vpop.f32.mrb[0].mxu0
        %1107 = vmatprep.mubr.f32.mxu0 0.0
        %1108 = vmatmul.mubr.f32.gmra.mrb[0].mxu0 %v1011
        %v1109 = vpop.f32.mrb[0].mxu0
        %v1110 = vadd.f32 %v1027, %v1109
        %v1111 = vpop.f32.mrb[0].mxu0
        %1112 = vmatprep.mubr.f32.mxu0 0.0
        %1113 = vmatmul.mubr.f32.gmra.mrb[0].mxu0 %v1012
        %v1114 = vpop.f32.mrb[0].mxu0
        %v1115 = vadd.f32 %v1027, %v1114
        %v1116 = vpop.f32.mrb[0].mxu0
        %1117 = vmatprep.mubr.f32.mxu0 0.0
        %1118 = vmatmul.mubr.f32.gmra.mrb[0].mxu0 %v1013
        %v1119 = vpop.f32.mrb[0].mxu0
        %v1120 = vadd.f32 %v1027, %v1119
        %v1121 = vpop.f32.mrb[0].mxu0
        %1122 = vmatprep.mubr.f32.mxu0 0.0
        %1123 = vmatmul.mubr.f32.gmra.mrb[0].mxu0 %v1014
        %v1124 = vpop.f32.mrb[0].mxu0
        %v1125 = vadd.f32 %v1027, %v1124
        %v1126 = vpop.f32.mrb[0].mxu0
        %1127 = vmatprep.mubr.f32.mxu0 0.0
        %1128 = vmatmul.mubr.f32.gmra.mrb[0].mxu0 %v1015
        %v1129 = vpop.f32.mrb[0].mxu0
        %v1130 = vadd.f32 %v1027, %v1129
        %v1131 = vpop.f32.mrb[0].mxu0
        %1132 = vmatprep.mubr.f32.mxu0 0.0
        %1133 = vmatmul.mubr.f32.gmra.mrb[0].mxu0 %v1016
        %v1134 = vpop.f32.mrb[0].mxu0
        %v1135 = vadd.f32 %v1027, %v1134
        %v1136 = vpop.f32.mrb[0].mxu0
        %1137 = vmatprep.mubr.f32.mxu0 0.0
        %1138 = vmatmul.mubr.f32.gmra.mrb[0].mxu0 %v1017
        %v1139 = vpop.f32.mrb[0].mxu0
        %v1140 = vadd.f32 %v1027, %v1139
        %v1141 = vpop.f32.mrb[0].mxu0
        %1142 = vmatprep.mubr.f32.mxu0 0.0
        %1143 = vmatmul.mubr.f32.gmra.mrb[0].mxu0 %v1018
        %v1144 = vpop.f32.mrb[0].mxu0
        %v1145 = vadd.f32 %v1027, %v1144
        %v1146 = vpop.f32.mrb[0].mxu0
        %1147 = vmatprep.mubr.f32.mxu0 0.0
        %1148 = vmatmul.mubr.f32.gmra.mrb[0].mxu0 %v1019
        %v1149 = vpop.f32.mrb[0].mxu0
        %v1150 = vadd.f32 %v1027, %v1149
        %v1151 = vpop.f32.mrb[0].mxu0
        %1152 = vmatprep.mubr.f32.mxu0 0.0
        %1153 = vmatmul.mubr.f32.gmra.mrb[0].mxu0 %v1020
        %v1154 = vpop.f32.mrb[0].mxu0
        %v1155 = vadd.f32 %v1027, %v1154
        %v1156 = vpop.f32.mrb[0].mxu0
        %1157 = vmatprep.mubr.f32.mxu0 0.0
        %1158 = vmatmul.mubr.f32.gmra.mrb[0].mxu0 %v1021
        %v1159 = vpop.f32.mrb[0].mxu0
        %v1160 = vadd.f32 %v1027, %v1159
        %v1161 = vpop.f32.mrb[0].mxu0
        %1162 = vmatprep.mubr.f32.mxu0 0.0
        %1163 = vmatmul.mubr.f32.gmra.mrb[0].mxu0 %v1022
        %v1164 = vpop.f32.mrb[0].mxu0
        %v1165 = vadd.f32 %v1027, %v1164
        %v1166 = vpop.f32.mrb[0].mxu0
        %1167 = vmatprep.mubr.f32.mxu0 0.0
        %1168 = vmatmul.mubr.f32.gmra.mrb[0].mxu0 %v1023
        %v1169 = vpop.f32.mrb[0].mxu0
        %v1170 = vadd.f32 %v1027, %v1169
        %v1171 = vpop.f32.mrb[0].mxu0
        %1172 = vdwg.mxu0
        %v1173 = vlaneseq
        %v1174 = vshrl.u32 %v1173, 7
        %v1175 = vsub.s32 0, %v1174
        %v1176 = vrot.slane %v966, %v1175
        %v1177 = vmul.f32 %v1176, %v1095
        %v1178 = vmul.f32 %v1176, %v1100
        %v1179 = vmul.f32 %v1176, %v1105
        %v1180 = vmul.f32 %v1176, %v1110
        %v1181 = vmul.f32 %v1176, %v1115
        %v1182 = vmul.f32 %v1176, %v1120
        %v1183 = vmul.f32 %v1176, %v1125
        %v1184 = vmul.f32 %v1176, %v1130
        %v1185 = vmul.f32 %v1176, %v1135
        %v1186 = vmul.f32 %v1176, %v1140
        %v1187 = vmul.f32 %v1176, %v1145
        %v1188 = vmul.f32 %v1176, %v1150
        %v1189 = vmul.f32 %v1176, %v1155
        %v1190 = vmul.f32 %v1176, %v1160
        %v1191 = vmul.f32 %v1176, %v1165
        %v1192 = vmul.f32 %v1176, %v1170
        %v1193 = vxor.u32 %v1177, 2147483648
        %v1194 = vxor.u32 %v1178, 2147483648
        %v1195 = vxor.u32 %v1179, 2147483648
        %v1196 = vxor.u32 %v1180, 2147483648
        %v1197 = vxor.u32 %v1181, 2147483648
        %v1198 = vxor.u32 %v1182, 2147483648
        %v1199 = vxor.u32 %v1183, 2147483648
        %v1200 = vxor.u32 %v1184, 2147483648
        %v1201 = vxor.u32 %v1185, 2147483648
        %v1202 = vxor.u32 %v1186, 2147483648
        %v1203 = vxor.u32 %v1187, 2147483648
        %v1204 = vxor.u32 %v1188, 2147483648
        %v1205 = vxor.u32 %v1189, 2147483648
        %v1206 = vxor.u32 %v1190, 2147483648
        %v1207 = vxor.u32 %v1191, 2147483648
        %v1208 = vxor.u32 %v1192, 2147483648
        %v1209 = vmul.f32 %v1193, 1.442695
        %v1210 = vpow.pop %v1209
        %v1211 = vmul.f32 %v1194, 1.442695
        %v1212 = vpow.pop %v1211
        %v1213 = vmul.f32 %v1195, 1.442695
        %v1214 = vpow.pop %v1213
        %v1215 = vmul.f32 %v1196, 1.442695
        %v1216 = vpow.pop %v1215
        %v1217 = vmul.f32 %v1197, 1.442695
        %v1218 = vpow.pop %v1217
        %v1219 = vmul.f32 %v1198, 1.442695
        %v1220 = vpow.pop %v1219
        %v1221 = vmul.f32 %v1199, 1.442695
        %v1222 = vpow.pop %v1221
        %v1223 = vmul.f32 %v1200, 1.442695
        %v1224 = vpow.pop %v1223
        %v1225 = vmul.f32 %v1201, 1.442695
        %v1226 = vpow.pop %v1225
        %v1227 = vmul.f32 %v1202, 1.442695
        %v1228 = vpow.pop %v1227
        %v1229 = vmul.f32 %v1203, 1.442695
        %v1230 = vpow.pop %v1229
        %v1231 = vmul.f32 %v1204, 1.442695
        %v1232 = vpow.pop %v1231
        %v1233 = vmul.f32 %v1205, 1.442695
        %v1234 = vpow.pop %v1233
        %v1235 = vmul.f32 %v1206, 1.442695
        %v1236 = vpow.pop %v1235
        %v1237 = vmul.f32 %v1207, 1.442695
        %v1238 = vpow.pop %v1237
        %v1239 = vmul.f32 %v1208, 1.442695
        %v1240 = vpow.pop %v1239
        %v1241 = vadd.f32 %v1210, 1.0
        %v1242 = vadd.f32 %v1212, 1.0
        %v1243 = vadd.f32 %v1214, 1.0
        %v1244 = vadd.f32 %v1216, 1.0
        %v1245 = vadd.f32 %v1218, 1.0
        %v1246 = vadd.f32 %v1220, 1.0
        %v1247 = vadd.f32 %v1222, 1.0
        %v1248 = vadd.f32 %v1224, 1.0
        %v1249 = vadd.f32 %v1226, 1.0
        %v1250 = vadd.f32 %v1228, 1.0
        %v1251 = vadd.f32 %v1230, 1.0
        %v1252 = vadd.f32 %v1232, 1.0
        %v1253 = vadd.f32 %v1234, 1.0
        %v1254 = vadd.f32 %v1236, 1.0
        %v1255 = vadd.f32 %v1238, 1.0
        %v1256 = vadd.f32 %v1240, 1.0
        %v1257 = vrcp.pop %v1241
        %v1258 = vmul.f32 1.0, %v1257
        %v1259 = vrcp.pop %v1242
        %v1260 = vmul.f32 1.0, %v1259
        %v1261 = vrcp.pop %v1243
        %v1262 = vmul.f32 1.0, %v1261
        %v1263 = vrcp.pop %v1244
        %v1264 = vmul.f32 1.0, %v1263
        %v1265 = vrcp.pop %v1245
        %v1266 = vmul.f32 1.0, %v1265
        %v1267 = vrcp.pop %v1246
        %v1268 = vmul.f32 1.0, %v1267
        %v1269 = vrcp.pop %v1247
        %v1270 = vmul.f32 1.0, %v1269
        %v1271 = vrcp.pop %v1248
        %v1272 = vmul.f32 1.0, %v1271
        %v1273 = vrcp.pop %v1249
        %v1274 = vmul.f32 1.0, %v1273
        %v1275 = vrcp.pop %v1250
        %v1276 = vmul.f32 1.0, %v1275
        %v1277 = vrcp.pop %v1251
        %v1278 = vmul.f32 1.0, %v1277
        %v1279 = vrcp.pop %v1252
        %v1280 = vmul.f32 1.0, %v1279
        %v1281 = vrcp.pop %v1253
        %v1282 = vmul.f32 1.0, %v1281
        %v1283 = vrcp.pop %v1254
        %v1284 = vmul.f32 1.0, %v1283
        %v1285 = vrcp.pop %v1255
        %v1286 = vmul.f32 1.0, %v1285
        %v1287 = vrcp.pop %v1256
        %v1288 = vmul.f32 1.0, %v1287
        %v1289 = vsub.f32 1.0, %v965
        %v1290 = vlaneseq
        %v1291 = vshrl.u32 %v1290, 7
        %v1292 = vsub.s32 0, %v1291
        %v1293 = vrot.slane %v1289, %v1292
        %v1294 = vmul.f32 %v1258, %v1293
        %v1295 = vmul.f32 %v1260, %v1293
        %v1296 = vmul.f32 %v1262, %v1293
        %v1297 = vmul.f32 %v1264, %v1293
        %v1298 = vmul.f32 %v1266, %v1293
        %v1299 = vmul.f32 %v1268, %v1293
        %v1300 = vmul.f32 %v1270, %v1293
        %v1301 = vmul.f32 %v1272, %v1293
        %v1302 = vmul.f32 %v1274, %v1293
        %v1303 = vmul.f32 %v1276, %v1293
        %v1304 = vmul.f32 %v1278, %v1293
        %v1305 = vmul.f32 %v1280, %v1293
        %v1306 = vmul.f32 %v1282, %v1293
        %v1307 = vmul.f32 %v1284, %v1293
        %v1308 = vmul.f32 %v1286, %v1293
        %v1309 = vmul.f32 %v1288, %v1293
        %v1310 = vlaneseq
        %v1311 = vshrl.u32 %v1310, 7
        %v1312 = vsub.s32 0, %v1311
        %v1313 = vrot.slane %v965, %v1312
        %v1314 = vadd.f32 %v1313, %v1294
        %v1315 = vadd.f32 %v1313, %v1295
        %v1316 = vadd.f32 %v1313, %v1296
        %v1317 = vadd.f32 %v1313, %v1297
        %v1318 = vadd.f32 %v1313, %v1298
        %v1319 = vadd.f32 %v1313, %v1299
        %v1320 = vadd.f32 %v1313, %v1300
        %v1321 = vadd.f32 %v1313, %v1301
        %v1322 = vadd.f32 %v1313, %v1302
        %v1323 = vadd.f32 %v1313, %v1303
        %v1324 = vadd.f32 %v1313, %v1304
        %v1325 = vadd.f32 %v1313, %v1305
        %v1326 = vadd.f32 %v1313, %v1306
        %v1327 = vadd.f32 %v1313, %v1307
        %v1328 = vadd.f32 %v1313, %v1308
        %v1329 = vadd.f32 %v1313, %v1309
        %v1330 = vmul.f32 %v1314, %v1095
        %v1331 = vmul.f32 %v1315, %v1100
        %v1332 = vmul.f32 %v1316, %v1105
        %v1333 = vmul.f32 %v1317, %v1110
        %v1334 = vmul.f32 %v1318, %v1115
        %v1335 = vmul.f32 %v1319, %v1120
        %v1336 = vmul.f32 %v1320, %v1125
        %v1337 = vmul.f32 %v1321, %v1130
        %v1338 = vmul.f32 %v1322, %v1135
        %v1339 = vmul.f32 %v1323, %v1140
        %v1340 = vmul.f32 %v1324, %v1145
        %v1341 = vmul.f32 %v1325, %v1150
        %v1342 = vmul.f32 %v1326, %v1155
        %v1343 = vmul.f32 %v1327, %v1160
        %v1344 = vmul.f32 %v1328, %v1165
        %v1345 = vmul.f32 %v1329, %v1170
        %s1346 = sld [smem:[#allocation10]]
        %v1347 = vstv %s1346
        %v1348 = vmul.f32 %v1330, %v1347
        %v1349 = vmul.f32 %v1331, %v1347
        %v1350 = vmul.f32 %v1332, %v1347
        %v1351 = vmul.f32 %v1333, %v1347
        %v1352 = vmul.f32 %v1334, %v1347
        %v1353 = vmul.f32 %v1335, %v1347
        %v1354 = vmul.f32 %v1336, %v1347
        %v1355 = vmul.f32 %v1337, %v1347
        %v1356 = vmul.f32 %v1338, %v1347
        %v1357 = vmul.f32 %v1339, %v1347
        %v1358 = vmul.f32 %v1340, %v1347
        %v1359 = vmul.f32 %v1341, %v1347
        %v1360 = vmul.f32 %v1342, %v1347
        %v1361 = vmul.f32 %v1343, %v1347
        %v1362 = vmul.f32 %v1344, %v1347
        %v1363 = vmul.f32 %v1345, %v1347
        %s1364 = sld [smem:[#allocation11]]
        %v1365 = vstv %s1364
        %v1366 = vadd.f32 %v1348, %v1365
        %v1367 = vadd.f32 %v1349, %v1365
        %v1368 = vadd.f32 %v1350, %v1365
        %v1369 = vadd.f32 %v1351, %v1365
        %v1370 = vadd.f32 %v1352, %v1365
        %v1371 = vadd.f32 %v1353, %v1365
        %v1372 = vadd.f32 %v1354, %v1365
        %v1373 = vadd.f32 %v1355, %v1365
        %v1374 = vadd.f32 %v1356, %v1365
        %v1375 = vadd.f32 %v1357, %v1365
        %v1376 = vadd.f32 %v1358, %v1365
        %v1377 = vadd.f32 %v1359, %v1365
        %v1378 = vadd.f32 %v1360, %v1365
        %v1379 = vadd.f32 %v1361, %v1365
        %v1380 = vadd.f32 %v1362, %v1365
        %v1381 = vadd.f32 %v1363, %v1365
        %v1382 = vlaneseq
        %v1383 = vshrl.u32 %v1382, 7
        %v1384 = vsub.s32 0, %v1383
        %v1385 = vrot.slane %v983, %v1384
        %1386 = vmatprep.subr.mxu0 0.0
        %1387 = vmatpush1.msra.mxu0 %v967
        %1388 = vmatprep.subr.mxu0 0.0
        %1389 = vmatpush1.msra.mxu0 %v968
        %1390 = vmatprep.subr.mxu0 0.0
        %1391 = vmatpush1.msra.mxu0 %v969
        %1392 = vmatprep.subr.mxu0 0.0
        %1393 = vmatpush1.msra.mxu0 %v970
        %1394 = vmatprep.subr.mxu0 0.0
        %1395 = vmatpush1.msra.mxu0 %v971
        %1396 = vmatprep.subr.mxu0 0.0
        %1397 = vmatpush1.msra.mxu0 %v972
        %1398 = vmatprep.subr.mxu0 0.0
        %1399 = vmatpush1.msra.mxu0 %v973
        %1400 = vmatprep.subr.mxu0 0.0
        %1401 = vmatpush1.msra.mxu0 %v974
        %1402 = vmatprep.subr.mxu0 0.0
        %1403 = vmatpush1.msra.mxu0 %v975
        %1404 = vmatprep.subr.mxu0 0.0
        %1405 = vmatpush1.msra.mxu0 %v976
        %1406 = vmatprep.subr.mxu0 0.0
        %1407 = vmatpush1.msra.mxu0 %v977
        %1408 = vmatprep.subr.mxu0 0.0
        %1409 = vmatpush1.msra.mxu0 %v978
        %1410 = vmatprep.subr.mxu0 0.0
        %1411 = vmatpush1.msra.mxu0 %v979
        %1412 = vmatprep.subr.mxu0 0.0
        %1413 = vmatpush1.msra.mxu0 %v980
        %1414 = vmatprep.subr.mxu0 0.0
        %1415 = vmatpush1.msra.mxu0 %v981
        %1416 = vmatprep.subr.mxu0 0.0
        %1417 = vmatpush1.msra.mxu0 %v982
        %1418 = vmatprep.subr.mxu0 0.0
        %1419 = vmatpush1.msra.mxu0 0.0
        %1420 = vmatprep.subr.mxu0 0.0
        %1421 = vmatpush1.msra.mxu0 0.0
        %1422 = vmatprep.subr.mxu0 0.0
        %1423 = vmatpush1.msra.mxu0 0.0
        %1424 = vmatprep.subr.mxu0 0.0
        %1425 = vmatpush1.msra.mxu0 0.0
        %1426 = vmatprep.subr.mxu0 0.0
        %1427 = vmatpush1.msra.mxu0 0.0
        %1428 = vmatprep.subr.mxu0 0.0
        %1429 = vmatpush1.msra.mxu0 0.0
        %1430 = vmatprep.subr.mxu0 0.0
        %1431 = vmatpush1.msra.mxu0 0.0
        %1432 = vmatprep.subr.mxu0 0.0
        %1433 = vmatpush1.msra.mxu0 0.0
        %1434 = vmatprep.subr.mxu0 0.0
        %1435 = vmatpush1.msra.mxu0 0.0
        %1436 = vmatprep.subr.mxu0 0.0
        %1437 = vmatpush1.msra.mxu0 0.0
        %1438 = vmatprep.subr.mxu0 0.0
        %1439 = vmatpush1.msra.mxu0 0.0
        %1440 = vmatprep.subr.mxu0 0.0
        %1441 = vmatpush1.msra.mxu0 0.0
        %1442 = vmatprep.subr.mxu0 0.0
        %1443 = vmatpush1.msra.mxu0 0.0
        %1444 = vmatprep.subr.mxu0 0.0
        %1445 = vmatpush1.msra.mxu0 0.0
        %1446 = vmatprep.subr.mxu0 0.0
        %1447 = vmatpush1.msra.mxu0 0.0
        %1448 = vmatprep.subr.mxu0 0.0
        %1449 = vmatpush1.msra.mxu0 0.0
        %1450 = vmatprep.mubr.f32.mxu0 0.0
        %1451 = vmatmul.mubr.f32.gmra.mrb[0].mxu0 %v1366
        %v1452 = vpop.f32.mrb[0].mxu0
        %v1453 = vadd.f32 %v1385, %v1452
        %v1454 = vpop.f32.mrb[0].mxu0
        %1455 = vmatprep.mubr.f32.mxu0 0.0
        %1456 = vmatmul.mubr.f32.gmra.mrb[0].mxu0 %v1367
        %v1457 = vpop.f32.mrb[0].mxu0
        %v1458 = vadd.f32 %v1385, %v1457
        %v1459 = vpop.f32.mrb[0].mxu0
        %1460 = vmatprep.mubr.f32.mxu0 0.0
        %1461 = vmatmul.mubr.f32.gmra.mrb[0].mxu0 %v1368
        %v1462 = vpop.f32.mrb[0].mxu0
        %v1463 = vadd.f32 %v1385, %v1462
        %v1464 = vpop.f32.mrb[0].mxu0
        %1465 = vmatprep.mubr.f32.mxu0 0.0
        %1466 = vmatmul.mubr.f32.gmra.mrb[0].mxu0 %v1369
        %v1467 = vpop.f32.mrb[0].mxu0
        %v1468 = vadd.f32 %v1385, %v1467
        %v1469 = vpop.f32.mrb[0].mxu0
        %1470 = vmatprep.mubr.f32.mxu0 0.0
        %1471 = vmatmul.mubr.f32.gmra.mrb[0].mxu0 %v1370
        %v1472 = vpop.f32.mrb[0].mxu0
        %v1473 = vadd.f32 %v1385, %v1472
        %v1474 = vpop.f32.mrb[0].mxu0
        %1475 = vmatprep.mubr.f32.mxu0 0.0
        %1476 = vmatmul.mubr.f32.gmra.mrb[0].mxu0 %v1371
        %v1477 = vpop.f32.mrb[0].mxu0
        %v1478 = vadd.f32 %v1385, %v1477
        %v1479 = vpop.f32.mrb[0].mxu0
        %1480 = vmatprep.mubr.f32.mxu0 0.0
        %1481 = vmatmul.mubr.f32.gmra.mrb[0].mxu0 %v1372
        %v1482 = vpop.f32.mrb[0].mxu0
        %v1483 = vadd.f32 %v1385, %v1482
        %v1484 = vpop.f32.mrb[0].mxu0
        %1485 = vmatprep.mubr.f32.mxu0 0.0
        %1486 = vmatmul.mubr.f32.gmra.mrb[0].mxu0 %v1373
        %v1487 = vpop.f32.mrb[0].mxu0
        %v1488 = vadd.f32 %v1385, %v1487
        %v1489 = vpop.f32.mrb[0].mxu0
        %1490 = vmatprep.mubr.f32.mxu0 0.0
        %1491 = vmatmul.mubr.f32.gmra.mrb[0].mxu0 %v1374
        %v1492 = vpop.f32.mrb[0].mxu0
        %v1493 = vadd.f32 %v1385, %v1492
        %v1494 = vpop.f32.mrb[0].mxu0
        %1495 = vmatprep.mubr.f32.mxu0 0.0
        %1496 = vmatmul.mubr.f32.gmra.mrb[0].mxu0 %v1375
        %v1497 = vpop.f32.mrb[0].mxu0
        %v1498 = vadd.f32 %v1385, %v1497
        %v1499 = vpop.f32.mrb[0].mxu0
        %1500 = vmatprep.mubr.f32.mxu0 0.0
        %1501 = vmatmul.mubr.f32.gmra.mrb[0].mxu0 %v1376
        %v1502 = vpop.f32.mrb[0].mxu0
        %v1503 = vadd.f32 %v1385, %v1502
        %v1504 = vpop.f32.mrb[0].mxu0
        %1505 = vmatprep.mubr.f32.mxu0 0.0
        %1506 = vmatmul.mubr.f32.gmra.mrb[0].mxu0 %v1377
        %v1507 = vpop.f32.mrb[0].mxu0
        %v1508 = vadd.f32 %v1385, %v1507
        %v1509 = vpop.f32.mrb[0].mxu0
        %1510 = vmatprep.mubr.f32.mxu0 0.0
        %1511 = vmatmul.mubr.f32.gmra.mrb[0].mxu0 %v1378
        %v1512 = vpop.f32.mrb[0].mxu0
        %v1513 = vadd.f32 %v1385, %v1512
        %v1514 = vpop.f32.mrb[0].mxu0
        %1515 = vmatprep.mubr.f32.mxu0 0.0
        %1516 = vmatmul.mubr.f32.gmra.mrb[0].mxu0 %v1379
        %v1517 = vpop.f32.mrb[0].mxu0
        %v1518 = vadd.f32 %v1385, %v1517
        %v1519 = vpop.f32.mrb[0].mxu0
        %1520 = vmatprep.mubr.f32.mxu0 0.0
        %1521 = vmatmul.mubr.f32.gmra.mrb[0].mxu0 %v1380
        %v1522 = vpop.f32.mrb[0].mxu0
        %v1523 = vadd.f32 %v1385, %v1522
        %v1524 = vpop.f32.mrb[0].mxu0
        %1525 = vmatprep.mubr.f32.mxu0 0.0
        %1526 = vmatmul.mubr.f32.gmra.mrb[0].mxu0 %v1381
        %v1527 = vpop.f32.mrb[0].mxu0
        %v1528 = vadd.f32 %v1385, %v1527
        %v1529 = vpop.f32.mrb[0].mxu0
        %1530 = vdwg.mxu0
        %v1531 = vlaneseq
        %v1532 = vshrl.u32 %v1531, 7
        %v1533 = vsub.s32 0, %v1532
        %v1534 = vrot.slane %v985, %v1533
        %v1535 = vmul.f32 %v1534, %v1453
        %v1536 = vmul.f32 %v1534, %v1458
        %v1537 = vmul.f32 %v1534, %v1463
        %v1538 = vmul.f32 %v1534, %v1468
        %v1539 = vmul.f32 %v1534, %v1473
        %v1540 = vmul.f32 %v1534, %v1478
        %v1541 = vmul.f32 %v1534, %v1483
        %v1542 = vmul.f32 %v1534, %v1488
        %v1543 = vmul.f32 %v1534, %v1493
        %v1544 = vmul.f32 %v1534, %v1498
        %v1545 = vmul.f32 %v1534, %v1503
        %v1546 = vmul.f32 %v1534, %v1508
        %v1547 = vmul.f32 %v1534, %v1513
        %v1548 = vmul.f32 %v1534, %v1518
        %v1549 = vmul.f32 %v1534, %v1523
        %v1550 = vmul.f32 %v1534, %v1528
        %v1551 = vxor.u32 %v1535, 2147483648
        %v1552 = vxor.u32 %v1536, 2147483648
        %v1553 = vxor.u32 %v1537, 2147483648
        %v1554 = vxor.u32 %v1538, 2147483648
        %v1555 = vxor.u32 %v1539, 2147483648
        %v1556 = vxor.u32 %v1540, 2147483648
        %v1557 = vxor.u32 %v1541, 2147483648
        %v1558 = vxor.u32 %v1542, 2147483648
        %v1559 = vxor.u32 %v1543, 2147483648
        %v1560 = vxor.u32 %v1544, 2147483648
        %v1561 = vxor.u32 %v1545, 2147483648
        %v1562 = vxor.u32 %v1546, 2147483648
        %v1563 = vxor.u32 %v1547, 2147483648
        %v1564 = vxor.u32 %v1548, 2147483648
        %v1565 = vxor.u32 %v1549, 2147483648
        %v1566 = vxor.u32 %v1550, 2147483648
        %v1567 = vmul.f32 %v1551, 1.442695
        %v1568 = vpow.pop %v1567
        %v1569 = vmul.f32 %v1552, 1.442695
        %v1570 = vpow.pop %v1569
        %v1571 = vmul.f32 %v1553, 1.442695
        %v1572 = vpow.pop %v1571
        %v1573 = vmul.f32 %v1554, 1.442695
        %v1574 = vpow.pop %v1573
        %v1575 = vmul.f32 %v1555, 1.442695
        %v1576 = vpow.pop %v1575
        %v1577 = vmul.f32 %v1556, 1.442695
        %v1578 = vpow.pop %v1577
        %v1579 = vmul.f32 %v1557, 1.442695
        %v1580 = vpow.pop %v1579
        %v1581 = vmul.f32 %v1558, 1.442695
        %v1582 = vpow.pop %v1581
        %v1583 = vmul.f32 %v1559, 1.442695
        %v1584 = vpow.pop %v1583
        %v1585 = vmul.f32 %v1560, 1.442695
        %v1586 = vpow.pop %v1585
        %v1587 = vmul.f32 %v1561, 1.442695
        %v1588 = vpow.pop %v1587
        %v1589 = vmul.f32 %v1562, 1.442695
        %v1590 = vpow.pop %v1589
        %v1591 = vmul.f32 %v1563, 1.442695
        %v1592 = vpow.pop %v1591
        %v1593 = vmul.f32 %v1564, 1.442695
        %v1594 = vpow.pop %v1593
        %v1595 = vmul.f32 %v1565, 1.442695
        %v1596 = vpow.pop %v1595
        %v1597 = vmul.f32 %v1566, 1.442695
        %v1598 = vpow.pop %v1597
        %v1599 = vadd.f32 %v1568, 1.0
        %v1600 = vadd.f32 %v1570, 1.0
        %v1601 = vadd.f32 %v1572, 1.0
        %v1602 = vadd.f32 %v1574, 1.0
        %v1603 = vadd.f32 %v1576, 1.0
        %v1604 = vadd.f32 %v1578, 1.0
        %v1605 = vadd.f32 %v1580, 1.0
        %v1606 = vadd.f32 %v1582, 1.0
        %v1607 = vadd.f32 %v1584, 1.0
        %v1608 = vadd.f32 %v1586, 1.0
        %v1609 = vadd.f32 %v1588, 1.0
        %v1610 = vadd.f32 %v1590, 1.0
        %v1611 = vadd.f32 %v1592, 1.0
        %v1612 = vadd.f32 %v1594, 1.0
        %v1613 = vadd.f32 %v1596, 1.0
        %v1614 = vadd.f32 %v1598, 1.0
        %v1615 = vrcp.pop %v1599
        %v1616 = vmul.f32 1.0, %v1615
        %v1617 = vrcp.pop %v1600
        %v1618 = vmul.f32 1.0, %v1617
        %v1619 = vrcp.pop %v1601
        %v1620 = vmul.f32 1.0, %v1619
        %v1621 = vrcp.pop %v1602
        %v1622 = vmul.f32 1.0, %v1621
        %v1623 = vrcp.pop %v1603
        %v1624 = vmul.f32 1.0, %v1623
        %v1625 = vrcp.pop %v1604
        %v1626 = vmul.f32 1.0, %v1625
        %v1627 = vrcp.pop %v1605
        %v1628 = vmul.f32 1.0, %v1627
        %v1629 = vrcp.pop %v1606
        %v1630 = vmul.f32 1.0, %v1629
        %v1631 = vrcp.pop %v1607
        %v1632 = vmul.f32 1.0, %v1631
        %v1633 = vrcp.pop %v1608
        %v1634 = vmul.f32 1.0, %v1633
        %v1635 = vrcp.pop %v1609
        %v1636 = vmul.f32 1.0, %v1635
        %v1637 = vrcp.pop %v1610
        %v1638 = vmul.f32 1.0, %v1637
        %v1639 = vrcp.pop %v1611
        %v1640 = vmul.f32 1.0, %v1639
        %v1641 = vrcp.pop %v1612
        %v1642 = vmul.f32 1.0, %v1641
        %v1643 = vrcp.pop %v1613
        %v1644 = vmul.f32 1.0, %v1643
        %v1645 = vrcp.pop %v1614
        %v1646 = vmul.f32 1.0, %v1645
        %v1647 = vsub.f32 1.0, %v984
        %v1648 = vlaneseq
        %v1649 = vshrl.u32 %v1648, 7
        %v1650 = vsub.s32 0, %v1649
        %v1651 = vrot.slane %v1647, %v1650
        %v1652 = vmul.f32 %v1616, %v1651
        %v1653 = vmul.f32 %v1618, %v1651
        %v1654 = vmul.f32 %v1620, %v1651
        %v1655 = vmul.f32 %v1622, %v1651
        %v1656 = vmul.f32 %v1624, %v1651
        %v1657 = vmul.f32 %v1626, %v1651
        %v1658 = vmul.f32 %v1628, %v1651
        %v1659 = vmul.f32 %v1630, %v1651
        %v1660 = vmul.f32 %v1632, %v1651
        %v1661 = vmul.f32 %v1634, %v1651
        %v1662 = vmul.f32 %v1636, %v1651
        %v1663 = vmul.f32 %v1638, %v1651
        %v1664 = vmul.f32 %v1640, %v1651
        %v1665 = vmul.f32 %v1642, %v1651
        %v1666 = vmul.f32 %v1644, %v1651
        %v1667 = vmul.f32 %v1646, %v1651
        %v1668 = vlaneseq
        %v1669 = vshrl.u32 %v1668, 7
        %v1670 = vsub.s32 0, %v1669
        %v1671 = vrot.slane %v984, %v1670
        %v1672 = vadd.f32 %v1671, %v1652
        %v1673 = vadd.f32 %v1671, %v1653
        %v1674 = vadd.f32 %v1671, %v1654
        %v1675 = vadd.f32 %v1671, %v1655
        %v1676 = vadd.f32 %v1671, %v1656
        %v1677 = vadd.f32 %v1671, %v1657
        %v1678 = vadd.f32 %v1671, %v1658
        %v1679 = vadd.f32 %v1671, %v1659
        %v1680 = vadd.f32 %v1671, %v1660
        %v1681 = vadd.f32 %v1671, %v1661
        %v1682 = vadd.f32 %v1671, %v1662
        %v1683 = vadd.f32 %v1671, %v1663
        %v1684 = vadd.f32 %v1671, %v1664
        %v1685 = vadd.f32 %v1671, %v1665
        %v1686 = vadd.f32 %v1671, %v1666
        %v1687 = vadd.f32 %v1671, %v1667
        %v1688 = vmul.f32 %v1672, %v1453
        %v1689 = vmul.f32 %v1673, %v1458
        %v1690 = vmul.f32 %v1674, %v1463
        %v1691 = vmul.f32 %v1675, %v1468
        %v1692 = vmul.f32 %v1676, %v1473
        %v1693 = vmul.f32 %v1677, %v1478
        %v1694 = vmul.f32 %v1678, %v1483
        %v1695 = vmul.f32 %v1679, %v1488
        %v1696 = vmul.f32 %v1680, %v1493
        %v1697 = vmul.f32 %v1681, %v1498
        %v1698 = vmul.f32 %v1682, %v1503
        %v1699 = vmul.f32 %v1683, %v1508
        %v1700 = vmul.f32 %v1684, %v1513
        %v1701 = vmul.f32 %v1685, %v1518
        %v1702 = vmul.f32 %v1686, %v1523
        %v1703 = vmul.f32 %v1687, %v1528
        %v1704 = vadd.f32 %v1688, %v870
        %v1705 = vadd.f32 %v1689, %v875
        %v1706 = vadd.f32 %v1690, %v880
        %v1707 = vadd.f32 %v1691, %v885
        %v1708 = vadd.f32 %v1692, %v890
        %v1709 = vadd.f32 %v1693, %v895
        %v1710 = vadd.f32 %v1694, %v900
        %v1711 = vadd.f32 %v1695, %v905
        %v1712 = vadd.f32 %v1696, %v910
        %v1713 = vadd.f32 %v1697, %v915
        %v1714 = vadd.f32 %v1698, %v920
        %v1715 = vadd.f32 %v1699, %v925
        %v1716 = vadd.f32 %v1700, %v930
        %v1717 = vadd.f32 %v1701, %v935
        %v1718 = vadd.f32 %v1702, %v940
        %v1719 = vadd.f32 %v1703, %v945
        %v1720 = vlaneseq
        %v1721 = vshrl.u32 %v1720, 7
        %v1722 = vsub.s32 0, %v1721
        %v1723 = vrot.slane %v987, %v1722
        %v1724 = vmul.f32 %v1723, %v1704
        %v1725 = vmul.f32 %v1723, %v1705
        %v1726 = vmul.f32 %v1723, %v1706
        %v1727 = vmul.f32 %v1723, %v1707
        %v1728 = vmul.f32 %v1723, %v1708
        %v1729 = vmul.f32 %v1723, %v1709
        %v1730 = vmul.f32 %v1723, %v1710
        %v1731 = vmul.f32 %v1723, %v1711
        %v1732 = vmul.f32 %v1723, %v1712
        %v1733 = vmul.f32 %v1723, %v1713
        %v1734 = vmul.f32 %v1723, %v1714
        %v1735 = vmul.f32 %v1723, %v1715
        %v1736 = vmul.f32 %v1723, %v1716
        %v1737 = vmul.f32 %v1723, %v1717
        %v1738 = vmul.f32 %v1723, %v1718
        %v1739 = vmul.f32 %v1723, %v1719
        %v1740 = vxor.u32 %v1724, 2147483648
        %v1741 = vxor.u32 %v1725, 2147483648
        %v1742 = vxor.u32 %v1726, 2147483648
        %v1743 = vxor.u32 %v1727, 2147483648
        %v1744 = vxor.u32 %v1728, 2147483648
        %v1745 = vxor.u32 %v1729, 2147483648
        %v1746 = vxor.u32 %v1730, 2147483648
        %v1747 = vxor.u32 %v1731, 2147483648
        %v1748 = vxor.u32 %v1732, 2147483648
        %v1749 = vxor.u32 %v1733, 2147483648
        %v1750 = vxor.u32 %v1734, 2147483648
        %v1751 = vxor.u32 %v1735, 2147483648
        %v1752 = vxor.u32 %v1736, 2147483648
        %v1753 = vxor.u32 %v1737, 2147483648
        %v1754 = vxor.u32 %v1738, 2147483648
        %v1755 = vxor.u32 %v1739, 2147483648
        %v1756 = vmul.f32 %v1740, 1.442695
        %v1757 = vpow.pop %v1756
        %v1758 = vmul.f32 %v1741, 1.442695
        %v1759 = vpow.pop %v1758
        %v1760 = vmul.f32 %v1742, 1.442695
        %v1761 = vpow.pop %v1760
        %v1762 = vmul.f32 %v1743, 1.442695
        %v1763 = vpow.pop %v1762
        %v1764 = vmul.f32 %v1744, 1.442695
        %v1765 = vpow.pop %v1764
        %v1766 = vmul.f32 %v1745, 1.442695
        %v1767 = vpow.pop %v1766
        %v1768 = vmul.f32 %v1746, 1.442695
        %v1769 = vpow.pop %v1768
        %v1770 = vmul.f32 %v1747, 1.442695
        %v1771 = vpow.pop %v1770
        %v1772 = vmul.f32 %v1748, 1.442695
        %v1773 = vpow.pop %v1772
        %v1774 = vmul.f32 %v1749, 1.442695
        %v1775 = vpow.pop %v1774
        %v1776 = vmul.f32 %v1750, 1.442695
        %v1777 = vpow.pop %v1776
        %v1778 = vmul.f32 %v1751, 1.442695
        %v1779 = vpow.pop %v1778
        %v1780 = vmul.f32 %v1752, 1.442695
        %v1781 = vpow.pop %v1780
        %v1782 = vmul.f32 %v1753, 1.442695
        %v1783 = vpow.pop %v1782
        %v1784 = vmul.f32 %v1754, 1.442695
        %v1785 = vpow.pop %v1784
        %v1786 = vmul.f32 %v1755, 1.442695
        %v1787 = vpow.pop %v1786
        %v1788 = vadd.f32 %v1757, 1.0
        %v1789 = vadd.f32 %v1759, 1.0
        %v1790 = vadd.f32 %v1761, 1.0
        %v1791 = vadd.f32 %v1763, 1.0
        %v1792 = vadd.f32 %v1765, 1.0
        %v1793 = vadd.f32 %v1767, 1.0
        %v1794 = vadd.f32 %v1769, 1.0
        %v1795 = vadd.f32 %v1771, 1.0
        %v1796 = vadd.f32 %v1773, 1.0
        %v1797 = vadd.f32 %v1775, 1.0
        %v1798 = vadd.f32 %v1777, 1.0
        %v1799 = vadd.f32 %v1779, 1.0
        %v1800 = vadd.f32 %v1781, 1.0
        %v1801 = vadd.f32 %v1783, 1.0
        %v1802 = vadd.f32 %v1785, 1.0
        %v1803 = vadd.f32 %v1787, 1.0
        %v1804 = vrcp.pop %v1788
        %v1805 = vmul.f32 1.0, %v1804
        %v1806 = vrcp.pop %v1789
        %v1807 = vmul.f32 1.0, %v1806
        %v1808 = vrcp.pop %v1790
        %v1809 = vmul.f32 1.0, %v1808
        %v1810 = vrcp.pop %v1791
        %v1811 = vmul.f32 1.0, %v1810
        %v1812 = vrcp.pop %v1792
        %v1813 = vmul.f32 1.0, %v1812
        %v1814 = vrcp.pop %v1793
        %v1815 = vmul.f32 1.0, %v1814
        %v1816 = vrcp.pop %v1794
        %v1817 = vmul.f32 1.0, %v1816
        %v1818 = vrcp.pop %v1795
        %v1819 = vmul.f32 1.0, %v1818
        %v1820 = vrcp.pop %v1796
        %v1821 = vmul.f32 1.0, %v1820
        %v1822 = vrcp.pop %v1797
        %v1823 = vmul.f32 1.0, %v1822
        %v1824 = vrcp.pop %v1798
        %v1825 = vmul.f32 1.0, %v1824
        %v1826 = vrcp.pop %v1799
        %v1827 = vmul.f32 1.0, %v1826
        %v1828 = vrcp.pop %v1800
        %v1829 = vmul.f32 1.0, %v1828
        %v1830 = vrcp.pop %v1801
        %v1831 = vmul.f32 1.0, %v1830
        %v1832 = vrcp.pop %v1802
        %v1833 = vmul.f32 1.0, %v1832
        %v1834 = vrcp.pop %v1803
        %v1835 = vmul.f32 1.0, %v1834
        %v1836 = vsub.f32 1.0, %v986
        %v1837 = vlaneseq
        %v1838 = vshrl.u32 %v1837, 7
        %v1839 = vsub.s32 0, %v1838
        %v1840 = vrot.slane %v1836, %v1839
        %v1841 = vmul.f32 %v1805, %v1840
        %v1842 = vmul.f32 %v1807, %v1840
        %v1843 = vmul.f32 %v1809, %v1840
        %v1844 = vmul.f32 %v1811, %v1840
        %v1845 = vmul.f32 %v1813, %v1840
        %v1846 = vmul.f32 %v1815, %v1840
        %v1847 = vmul.f32 %v1817, %v1840
        %v1848 = vmul.f32 %v1819, %v1840
        %v1849 = vmul.f32 %v1821, %v1840
        %v1850 = vmul.f32 %v1823, %v1840
        %v1851 = vmul.f32 %v1825, %v1840
        %v1852 = vmul.f32 %v1827, %v1840
        %v1853 = vmul.f32 %v1829, %v1840
        %v1854 = vmul.f32 %v1831, %v1840
        %v1855 = vmul.f32 %v1833, %v1840
        %v1856 = vmul.f32 %v1835, %v1840
        %v1857 = vlaneseq
        %v1858 = vshrl.u32 %v1857, 7
        %v1859 = vsub.s32 0, %v1858
        %v1860 = vrot.slane %v986, %v1859
        %v1861 = vadd.f32 %v1860, %v1841
        %v1862 = vadd.f32 %v1860, %v1842
        %v1863 = vadd.f32 %v1860, %v1843
        %v1864 = vadd.f32 %v1860, %v1844
        %v1865 = vadd.f32 %v1860, %v1845
        %v1866 = vadd.f32 %v1860, %v1846
        %v1867 = vadd.f32 %v1860, %v1847
        %v1868 = vadd.f32 %v1860, %v1848
        %v1869 = vadd.f32 %v1860, %v1849
        %v1870 = vadd.f32 %v1860, %v1850
        %v1871 = vadd.f32 %v1860, %v1851
        %v1872 = vadd.f32 %v1860, %v1852
        %v1873 = vadd.f32 %v1860, %v1853
        %v1874 = vadd.f32 %v1860, %v1854
        %v1875 = vadd.f32 %v1860, %v1855
        %v1876 = vadd.f32 %v1860, %v1856
        %v1877 = vmul.f32 %v1861, %v1704
        %v1878 = vmul.f32 %v1862, %v1705
        %v1879 = vmul.f32 %v1863, %v1706
        %v1880 = vmul.f32 %v1864, %v1707
        %v1881 = vmul.f32 %v1865, %v1708
        %v1882 = vmul.f32 %v1866, %v1709
        %v1883 = vmul.f32 %v1867, %v1710
        %v1884 = vmul.f32 %v1868, %v1711
        %v1885 = vmul.f32 %v1869, %v1712
        %v1886 = vmul.f32 %v1870, %v1713
        %v1887 = vmul.f32 %v1871, %v1714
        %v1888 = vmul.f32 %v1872, %v1715
        %v1889 = vmul.f32 %v1873, %v1716
        %v1890 = vmul.f32 %v1874, %v1717
        %v1891 = vmul.f32 %v1875, %v1718
        %v1892 = vmul.f32 %v1876, %v1719
        %s1893 = scalar_lea.vmem %s3, 128
        %v1894 = vld [vmem:[%s1893] sm:$0xff]
        %v1895 = vld [vmem:[%s1893 + $0x8] sm:$0xff]
        %v1896 = vld [vmem:[%s1893 + $0x10] sm:$0xff]
        %v1897 = vld [vmem:[%s1893 + $0x18] sm:$0xff]
        %v1898 = vld [vmem:[%s1893 + $0x20] sm:$0xff]
        %v1899 = vld [vmem:[%s1893 + $0x28] sm:$0xff]
        %v1900 = vld [vmem:[%s1893 + $0x30] sm:$0xff]
        %v1901 = vld [vmem:[%s1893 + $0x38] sm:$0xff]
        %v1902 = vld [vmem:[%s1893 + $0x40] sm:$0xff]
        %v1903 = vld [vmem:[%s1893 + $0x48] sm:$0xff]
        %v1904 = vld [vmem:[%s1893 + $0x50] sm:$0xff]
        %v1905 = vld [vmem:[%s1893 + $0x58] sm:$0xff]
        %v1906 = vld [vmem:[%s1893 + $0x60] sm:$0xff]
        %v1907 = vld [vmem:[%s1893 + $0x68] sm:$0xff]
        %v1908 = vld [vmem:[%s1893 + $0x70] sm:$0xff]
        %v1909 = vld [vmem:[%s1893 + $0x78] sm:$0xff]
        %v1910 = vld [vmem:[%s4 + $0x1] sm:$0x1]
        %v1911 = vld [vmem:[%s5 + $0x1] sm:$0x1]
        %v1912 = vld [vmem:[%s6 + $0x1] sm:$0x1]
        %s1913 = scalar_lea.vmem [#allocation4], 128
        %v1914 = vld [vmem:[%s1913] sm:$0xff]
        %v1915 = vld [vmem:[%s1913 + $0x8] sm:$0xff]
        %v1916 = vld [vmem:[%s1913 + $0x10] sm:$0xff]
        %v1917 = vld [vmem:[%s1913 + $0x18] sm:$0xff]
        %v1918 = vld [vmem:[%s1913 + $0x20] sm:$0xff]
        %v1919 = vld [vmem:[%s1913 + $0x28] sm:$0xff]
        %v1920 = vld [vmem:[%s1913 + $0x30] sm:$0xff]
        %v1921 = vld [vmem:[%s1913 + $0x38] sm:$0xff]
        %v1922 = vld [vmem:[%s1913 + $0x40] sm:$0xff]
        %v1923 = vld [vmem:[%s1913 + $0x48] sm:$0xff]
        %v1924 = vld [vmem:[%s1913 + $0x50] sm:$0xff]
        %v1925 = vld [vmem:[%s1913 + $0x58] sm:$0xff]
        %v1926 = vld [vmem:[%s1913 + $0x60] sm:$0xff]
        %v1927 = vld [vmem:[%s1913 + $0x68] sm:$0xff]
        %v1928 = vld [vmem:[%s1913 + $0x70] sm:$0xff]
        %v1929 = vld [vmem:[%s1913 + $0x78] sm:$0xff]
        %v1930 = vld [vmem:[%s8 + $0x1] sm:$0x1]
        %v1931 = vld [vmem:[%s9 + $0x1] sm:$0x1]
        %v1932 = vld [vmem:[%s10 + $0x1] sm:$0x1]
        %v1933 = vld [vmem:[%s11 + $0x1] sm:$0x1]
        %v1934 = vld [vmem:[%s12 + $0x1] sm:$0x1]
        %s1935 = sld [smem:[#allocation7 + $0x1]]
        %v1936 = vstv %s1935
        %v1937 = vmul.f32 %v1877, %v1936
        %v1938 = vmul.f32 %v1878, %v1936
        %v1939 = vmul.f32 %v1879, %v1936
        %v1940 = vmul.f32 %v1880, %v1936
        %v1941 = vmul.f32 %v1881, %v1936
        %v1942 = vmul.f32 %v1882, %v1936
        %v1943 = vmul.f32 %v1883, %v1936
        %v1944 = vmul.f32 %v1884, %v1936
        %v1945 = vmul.f32 %v1885, %v1936
        %v1946 = vmul.f32 %v1886, %v1936
        %v1947 = vmul.f32 %v1887, %v1936
        %v1948 = vmul.f32 %v1888, %v1936
        %v1949 = vmul.f32 %v1889, %v1936
        %v1950 = vmul.f32 %v1890, %v1936
        %v1951 = vmul.f32 %v1891, %v1936
        %v1952 = vmul.f32 %v1892, %v1936
        %s1953 = sld [smem:[#allocation8 + $0x1]]
        %v1954 = vstv %s1953
        %v1955 = vadd.f32 %v1937, %v1954
        %v1956 = vadd.f32 %v1938, %v1954
        %v1957 = vadd.f32 %v1939, %v1954
        %v1958 = vadd.f32 %v1940, %v1954
        %v1959 = vadd.f32 %v1941, %v1954
        %v1960 = vadd.f32 %v1942, %v1954
        %v1961 = vadd.f32 %v1943, %v1954
        %v1962 = vadd.f32 %v1944, %v1954
        %v1963 = vadd.f32 %v1945, %v1954
        %v1964 = vadd.f32 %v1946, %v1954
        %v1965 = vadd.f32 %v1947, %v1954
        %v1966 = vadd.f32 %v1948, %v1954
        %v1967 = vadd.f32 %v1949, %v1954
        %v1968 = vadd.f32 %v1950, %v1954
        %v1969 = vadd.f32 %v1951, %v1954
        %v1970 = vadd.f32 %v1952, %v1954
        %v1971 = vlaneseq
        %v1972 = vshrl.u32 %v1971, 7
        %v1973 = vsub.s32 0, %v1972
        %v1974 = vrot.slane %v1910, %v1973
        %1975 = vmatprep.subr.mxu0 0.0
        %1976 = vmatpush1.msra.mxu0 %v1894
        %1977 = vmatprep.subr.mxu0 0.0
        %1978 = vmatpush1.msra.mxu0 %v1895
        %1979 = vmatprep.subr.mxu0 0.0
        %1980 = vmatpush1.msra.mxu0 %v1896
        %1981 = vmatprep.subr.mxu0 0.0
        %1982 = vmatpush1.msra.mxu0 %v1897
        %1983 = vmatprep.subr.mxu0 0.0
        %1984 = vmatpush1.msra.mxu0 %v1898
        %1985 = vmatprep.subr.mxu0 0.0
        %1986 = vmatpush1.msra.mxu0 %v1899
        %1987 = vmatprep.subr.mxu0 0.0
        %1988 = vmatpush1.msra.mxu0 %v1900
        %1989 = vmatprep.subr.mxu0 0.0
        %1990 = vmatpush1.msra.mxu0 %v1901
        %1991 = vmatprep.subr.mxu0 0.0
        %1992 = vmatpush1.msra.mxu0 %v1902
        %1993 = vmatprep.subr.mxu0 0.0
        %1994 = vmatpush1.msra.mxu0 %v1903
        %1995 = vmatprep.subr.mxu0 0.0
        %1996 = vmatpush1.msra.mxu0 %v1904
        %1997 = vmatprep.subr.mxu0 0.0
        %1998 = vmatpush1.msra.mxu0 %v1905
        %1999 = vmatprep.subr.mxu0 0.0
        %2000 = vmatpush1.msra.mxu0 %v1906
        %2001 = vmatprep.subr.mxu0 0.0
        %2002 = vmatpush1.msra.mxu0 %v1907
        %2003 = vmatprep.subr.mxu0 0.0
        %2004 = vmatpush1.msra.mxu0 %v1908
        %2005 = vmatprep.subr.mxu0 0.0
        %2006 = vmatpush1.msra.mxu0 %v1909
        %2007 = vmatprep.subr.mxu0 0.0
        %2008 = vmatpush1.msra.mxu0 0.0
        %2009 = vmatprep.subr.mxu0 0.0
        %2010 = vmatpush1.msra.mxu0 0.0
        %2011 = vmatprep.subr.mxu0 0.0
        %2012 = vmatpush1.msra.mxu0 0.0
        %2013 = vmatprep.subr.mxu0 0.0
        %2014 = vmatpush1.msra.mxu0 0.0
        %2015 = vmatprep.subr.mxu0 0.0
        %2016 = vmatpush1.msra.mxu0 0.0
        %2017 = vmatprep.subr.mxu0 0.0
        %2018 = vmatpush1.msra.mxu0 0.0
        %2019 = vmatprep.subr.mxu0 0.0
        %2020 = vmatpush1.msra.mxu0 0.0
        %2021 = vmatprep.subr.mxu0 0.0
        %2022 = vmatpush1.msra.mxu0 0.0
        %2023 = vmatprep.subr.mxu0 0.0
        %2024 = vmatpush1.msra.mxu0 0.0
        %2025 = vmatprep.subr.mxu0 0.0
        %2026 = vmatpush1.msra.mxu0 0.0
        %2027 = vmatprep.subr.mxu0 0.0
        %2028 = vmatpush1.msra.mxu0 0.0
        %2029 = vmatprep.subr.mxu0 0.0
        %2030 = vmatpush1.msra.mxu0 0.0
        %2031 = vmatprep.subr.mxu0 0.0
        %2032 = vmatpush1.msra.mxu0 0.0
        %2033 = vmatprep.subr.mxu0 0.0
        %2034 = vmatpush1.msra.mxu0 0.0
        %2035 = vmatprep.subr.mxu0 0.0
        %2036 = vmatpush1.msra.mxu0 0.0
        %2037 = vmatprep.subr.mxu0 0.0
        %2038 = vmatpush1.msra.mxu0 0.0
        %2039 = vmatprep.mubr.f32.mxu0 0.0
        %2040 = vmatmul.mubr.f32.gmra.mrb[0].mxu0 %v1955
        %v2041 = vpop.f32.mrb[0].mxu0
        %v2042 = vadd.f32 %v1974, %v2041
        %v2043 = vpop.f32.mrb[0].mxu0
        %2044 = vmatprep.mubr.f32.mxu0 0.0
        %2045 = vmatmul.mubr.f32.gmra.mrb[0].mxu0 %v1956
        %v2046 = vpop.f32.mrb[0].mxu0
        %v2047 = vadd.f32 %v1974, %v2046
        %v2048 = vpop.f32.mrb[0].mxu0
        %2049 = vmatprep.mubr.f32.mxu0 0.0
        %2050 = vmatmul.mubr.f32.gmra.mrb[0].mxu0 %v1957
        %v2051 = vpop.f32.mrb[0].mxu0
        %v2052 = vadd.f32 %v1974, %v2051
        %v2053 = vpop.f32.mrb[0].mxu0
        %2054 = vmatprep.mubr.f32.mxu0 0.0
        %2055 = vmatmul.mubr.f32.gmra.mrb[0].mxu0 %v1958
        %v2056 = vpop.f32.mrb[0].mxu0
        %v2057 = vadd.f32 %v1974, %v2056
        %v2058 = vpop.f32.mrb[0].mxu0
        %2059 = vmatprep.mubr.f32.mxu0 0.0
        %2060 = vmatmul.mubr.f32.gmra.mrb[0].mxu0 %v1959
        %v2061 = vpop.f32.mrb[0].mxu0
        %v2062 = vadd.f32 %v1974, %v2061
        %v2063 = vpop.f32.mrb[0].mxu0
        %2064 = vmatprep.mubr.f32.mxu0 0.0
        %2065 = vmatmul.mubr.f32.gmra.mrb[0].mxu0 %v1960
        %v2066 = vpop.f32.mrb[0].mxu0
        %v2067 = vadd.f32 %v1974, %v2066
        %v2068 = vpop.f32.mrb[0].mxu0
        %2069 = vmatprep.mubr.f32.mxu0 0.0
        %2070 = vmatmul.mubr.f32.gmra.mrb[0].mxu0 %v1961
        %v2071 = vpop.f32.mrb[0].mxu0
        %v2072 = vadd.f32 %v1974, %v2071
        %v2073 = vpop.f32.mrb[0].mxu0
        %2074 = vmatprep.mubr.f32.mxu0 0.0
        %2075 = vmatmul.mubr.f32.gmra.mrb[0].mxu0 %v1962
        %v2076 = vpop.f32.mrb[0].mxu0
        %v2077 = vadd.f32 %v1974, %v2076
        %v2078 = vpop.f32.mrb[0].mxu0
        %2079 = vmatprep.mubr.f32.mxu0 0.0
        %2080 = vmatmul.mubr.f32.gmra.mrb[0].mxu0 %v1963
        %v2081 = vpop.f32.mrb[0].mxu0
        %v2082 = vadd.f32 %v1974, %v2081
        %v2083 = vpop.f32.mrb[0].mxu0
        %2084 = vmatprep.mubr.f32.mxu0 0.0
        %2085 = vmatmul.mubr.f32.gmra.mrb[0].mxu0 %v1964
        %v2086 = vpop.f32.mrb[0].mxu0
        %v2087 = vadd.f32 %v1974, %v2086
        %v2088 = vpop.f32.mrb[0].mxu0
        %2089 = vmatprep.mubr.f32.mxu0 0.0
        %2090 = vmatmul.mubr.f32.gmra.mrb[0].mxu0 %v1965
        %v2091 = vpop.f32.mrb[0].mxu0
        %v2092 = vadd.f32 %v1974, %v2091
        %v2093 = vpop.f32.mrb[0].mxu0
        %2094 = vmatprep.mubr.f32.mxu0 0.0
        %2095 = vmatmul.mubr.f32.gmra.mrb[0].mxu0 %v1966
        %v2096 = vpop.f32.mrb[0].mxu0
        %v2097 = vadd.f32 %v1974, %v2096
        %v2098 = vpop.f32.mrb[0].mxu0
        %2099 = vmatprep.mubr.f32.mxu0 0.0
        %2100 = vmatmul.mubr.f32.gmra.mrb[0].mxu0 %v1967
        %v2101 = vpop.f32.mrb[0].mxu0
        %v2102 = vadd.f32 %v1974, %v2101
        %v2103 = vpop.f32.mrb[0].mxu0
        %2104 = vmatprep.mubr.f32.mxu0 0.0
        %2105 = vmatmul.mubr.f32.gmra.mrb[0].mxu0 %v1968
        %v2106 = vpop.f32.mrb[0].mxu0
        %v2107 = vadd.f32 %v1974, %v2106
        %v2108 = vpop.f32.mrb[0].mxu0
        %2109 = vmatprep.mubr.f32.mxu0 0.0
        %2110 = vmatmul.mubr.f32.gmra.mrb[0].mxu0 %v1969
        %v2111 = vpop.f32.mrb[0].mxu0
        %v2112 = vadd.f32 %v1974, %v2111
        %v2113 = vpop.f32.mrb[0].mxu0
        %2114 = vmatprep.mubr.f32.mxu0 0.0
        %2115 = vmatmul.mubr.f32.gmra.mrb[0].mxu0 %v1970
        %v2116 = vpop.f32.mrb[0].mxu0
        %v2117 = vadd.f32 %v1974, %v2116
        %v2118 = vpop.f32.mrb[0].mxu0
        %2119 = vdwg.mxu0
        %v2120 = vlaneseq
        %v2121 = vshrl.u32 %v2120, 7
        %v2122 = vsub.s32 0, %v2121
        %v2123 = vrot.slane %v1912, %v2122
        %v2124 = vmul.f32 %v2123, %v2042
        %v2125 = vmul.f32 %v2123, %v2047
        %v2126 = vmul.f32 %v2123, %v2052
        %v2127 = vmul.f32 %v2123, %v2057
        %v2128 = vmul.f32 %v2123, %v2062
        %v2129 = vmul.f32 %v2123, %v2067
        %v2130 = vmul.f32 %v2123, %v2072
        %v2131 = vmul.f32 %v2123, %v2077
        %v2132 = vmul.f32 %v2123, %v2082
        %v2133 = vmul.f32 %v2123, %v2087
        %v2134 = vmul.f32 %v2123, %v2092
        %v2135 = vmul.f32 %v2123, %v2097
        %v2136 = vmul.f32 %v2123, %v2102
        %v2137 = vmul.f32 %v2123, %v2107
        %v2138 = vmul.f32 %v2123, %v2112
        %v2139 = vmul.f32 %v2123, %v2117
        %v2140 = vxor.u32 %v2124, 2147483648
        %v2141 = vxor.u32 %v2125, 2147483648
        %v2142 = vxor.u32 %v2126, 2147483648
        %v2143 = vxor.u32 %v2127, 2147483648
        %v2144 = vxor.u32 %v2128, 2147483648
        %v2145 = vxor.u32 %v2129, 2147483648
        %v2146 = vxor.u32 %v2130, 2147483648
        %v2147 = vxor.u32 %v2131, 2147483648
        %v2148 = vxor.u32 %v2132, 2147483648
        %v2149 = vxor.u32 %v2133, 2147483648
        %v2150 = vxor.u32 %v2134, 2147483648
        %v2151 = vxor.u32 %v2135, 2147483648
        %v2152 = vxor.u32 %v2136, 2147483648
        %v2153 = vxor.u32 %v2137, 2147483648
        %v2154 = vxor.u32 %v2138, 2147483648
        %v2155 = vxor.u32 %v2139, 2147483648
        %v2156 = vmul.f32 %v2140, 1.442695
        %v2157 = vpow.pop %v2156
        %v2158 = vmul.f32 %v2141, 1.442695
        %v2159 = vpow.pop %v2158
        %v2160 = vmul.f32 %v2142, 1.442695
        %v2161 = vpow.pop %v2160
        %v2162 = vmul.f32 %v2143, 1.442695
        %v2163 = vpow.pop %v2162
        %v2164 = vmul.f32 %v2144, 1.442695
        %v2165 = vpow.pop %v2164
        %v2166 = vmul.f32 %v2145, 1.442695
        %v2167 = vpow.pop %v2166
        %v2168 = vmul.f32 %v2146, 1.442695
        %v2169 = vpow.pop %v2168
        %v2170 = vmul.f32 %v2147, 1.442695
        %v2171 = vpow.pop %v2170
        %v2172 = vmul.f32 %v2148, 1.442695
        %v2173 = vpow.pop %v2172
        %v2174 = vmul.f32 %v2149, 1.442695
        %v2175 = vpow.pop %v2174
        %v2176 = vmul.f32 %v2150, 1.442695
        %v2177 = vpow.pop %v2176
        %v2178 = vmul.f32 %v2151, 1.442695
        %v2179 = vpow.pop %v2178
        %v2180 = vmul.f32 %v2152, 1.442695
        %v2181 = vpow.pop %v2180
        %v2182 = vmul.f32 %v2153, 1.442695
        %v2183 = vpow.pop %v2182
        %v2184 = vmul.f32 %v2154, 1.442695
        %v2185 = vpow.pop %v2184
        %v2186 = vmul.f32 %v2155, 1.442695
        %v2187 = vpow.pop %v2186
        %v2188 = vadd.f32 %v2157, 1.0
        %v2189 = vadd.f32 %v2159, 1.0
        %v2190 = vadd.f32 %v2161, 1.0
        %v2191 = vadd.f32 %v2163, 1.0
        %v2192 = vadd.f32 %v2165, 1.0
        %v2193 = vadd.f32 %v2167, 1.0
        %v2194 = vadd.f32 %v2169, 1.0
        %v2195 = vadd.f32 %v2171, 1.0
        %v2196 = vadd.f32 %v2173, 1.0
        %v2197 = vadd.f32 %v2175, 1.0
        %v2198 = vadd.f32 %v2177, 1.0
        %v2199 = vadd.f32 %v2179, 1.0
        %v2200 = vadd.f32 %v2181, 1.0
        %v2201 = vadd.f32 %v2183, 1.0
        %v2202 = vadd.f32 %v2185, 1.0
        %v2203 = vadd.f32 %v2187, 1.0
        %v2204 = vrcp.pop %v2188
        %v2205 = vmul.f32 1.0, %v2204
        %v2206 = vrcp.pop %v2189
        %v2207 = vmul.f32 1.0, %v2206
        %v2208 = vrcp.pop %v2190
        %v2209 = vmul.f32 1.0, %v2208
        %v2210 = vrcp.pop %v2191
        %v2211 = vmul.f32 1.0, %v2210
        %v2212 = vrcp.pop %v2192
        %v2213 = vmul.f32 1.0, %v2212
        %v2214 = vrcp.pop %v2193
        %v2215 = vmul.f32 1.0, %v2214
        %v2216 = vrcp.pop %v2194
        %v2217 = vmul.f32 1.0, %v2216
        %v2218 = vrcp.pop %v2195
        %v2219 = vmul.f32 1.0, %v2218
        %v2220 = vrcp.pop %v2196
        %v2221 = vmul.f32 1.0, %v2220
        %v2222 = vrcp.pop %v2197
        %v2223 = vmul.f32 1.0, %v2222
        %v2224 = vrcp.pop %v2198
        %v2225 = vmul.f32 1.0, %v2224
        %v2226 = vrcp.pop %v2199
        %v2227 = vmul.f32 1.0, %v2226
        %v2228 = vrcp.pop %v2200
        %v2229 = vmul.f32 1.0, %v2228
        %v2230 = vrcp.pop %v2201
        %v2231 = vmul.f32 1.0, %v2230
        %v2232 = vrcp.pop %v2202
        %v2233 = vmul.f32 1.0, %v2232
        %v2234 = vrcp.pop %v2203
        %v2235 = vmul.f32 1.0, %v2234
        %v2236 = vsub.f32 1.0, %v1911
        %v2237 = vlaneseq
        %v2238 = vshrl.u32 %v2237, 7
        %v2239 = vsub.s32 0, %v2238
        %v2240 = vrot.slane %v2236, %v2239
        %v2241 = vmul.f32 %v2205, %v2240
        %v2242 = vmul.f32 %v2207, %v2240
        %v2243 = vmul.f32 %v2209, %v2240
        %v2244 = vmul.f32 %v2211, %v2240
        %v2245 = vmul.f32 %v2213, %v2240
        %v2246 = vmul.f32 %v2215, %v2240
        %v2247 = vmul.f32 %v2217, %v2240
        %v2248 = vmul.f32 %v2219, %v2240
        %v2249 = vmul.f32 %v2221, %v2240
        %v2250 = vmul.f32 %v2223, %v2240
        %v2251 = vmul.f32 %v2225, %v2240
        %v2252 = vmul.f32 %v2227, %v2240
        %v2253 = vmul.f32 %v2229, %v2240
        %v2254 = vmul.f32 %v2231, %v2240
        %v2255 = vmul.f32 %v2233, %v2240
        %v2256 = vmul.f32 %v2235, %v2240
        %v2257 = vlaneseq
        %v2258 = vshrl.u32 %v2257, 7
        %v2259 = vsub.s32 0, %v2258
        %v2260 = vrot.slane %v1911, %v2259
        %v2261 = vadd.f32 %v2260, %v2241
        %v2262 = vadd.f32 %v2260, %v2242
        %v2263 = vadd.f32 %v2260, %v2243
        %v2264 = vadd.f32 %v2260, %v2244
        %v2265 = vadd.f32 %v2260, %v2245
        %v2266 = vadd.f32 %v2260, %v2246
        %v2267 = vadd.f32 %v2260, %v2247
        %v2268 = vadd.f32 %v2260, %v2248
        %v2269 = vadd.f32 %v2260, %v2249
        %v2270 = vadd.f32 %v2260, %v2250
        %v2271 = vadd.f32 %v2260, %v2251
        %v2272 = vadd.f32 %v2260, %v2252
        %v2273 = vadd.f32 %v2260, %v2253
        %v2274 = vadd.f32 %v2260, %v2254
        %v2275 = vadd.f32 %v2260, %v2255
        %v2276 = vadd.f32 %v2260, %v2256
        %v2277 = vmul.f32 %v2261, %v2042
        %v2278 = vmul.f32 %v2262, %v2047
        %v2279 = vmul.f32 %v2263, %v2052
        %v2280 = vmul.f32 %v2264, %v2057
        %v2281 = vmul.f32 %v2265, %v2062
        %v2282 = vmul.f32 %v2266, %v2067
        %v2283 = vmul.f32 %v2267, %v2072
        %v2284 = vmul.f32 %v2268, %v2077
        %v2285 = vmul.f32 %v2269, %v2082
        %v2286 = vmul.f32 %v2270, %v2087
        %v2287 = vmul.f32 %v2271, %v2092
        %v2288 = vmul.f32 %v2272, %v2097
        %v2289 = vmul.f32 %v2273, %v2102
        %v2290 = vmul.f32 %v2274, %v2107
        %v2291 = vmul.f32 %v2275, %v2112
        %v2292 = vmul.f32 %v2276, %v2117
        %s2293 = sld [smem:[#allocation10 + $0x1]]
        %v2294 = vstv %s2293
        %v2295 = vmul.f32 %v2277, %v2294
        %v2296 = vmul.f32 %v2278, %v2294
        %v2297 = vmul.f32 %v2279, %v2294
        %v2298 = vmul.f32 %v2280, %v2294
        %v2299 = vmul.f32 %v2281, %v2294
        %v2300 = vmul.f32 %v2282, %v2294
        %v2301 = vmul.f32 %v2283, %v2294
        %v2302 = vmul.f32 %v2284, %v2294
        %v2303 = vmul.f32 %v2285, %v2294
        %v2304 = vmul.f32 %v2286, %v2294
        %v2305 = vmul.f32 %v2287, %v2294
        %v2306 = vmul.f32 %v2288, %v2294
        %v2307 = vmul.f32 %v2289, %v2294
        %v2308 = vmul.f32 %v2290, %v2294
        %v2309 = vmul.f32 %v2291, %v2294
        %v2310 = vmul.f32 %v2292, %v2294
        %s2311 = sld [smem:[#allocation11 + $0x1]]
        %v2312 = vstv %s2311
        %v2313 = vadd.f32 %v2295, %v2312
        %v2314 = vadd.f32 %v2296, %v2312
        %v2315 = vadd.f32 %v2297, %v2312
        %v2316 = vadd.f32 %v2298, %v2312
        %v2317 = vadd.f32 %v2299, %v2312
        %v2318 = vadd.f32 %v2300, %v2312
        %v2319 = vadd.f32 %v2301, %v2312
        %v2320 = vadd.f32 %v2302, %v2312
        %v2321 = vadd.f32 %v2303, %v2312
        %v2322 = vadd.f32 %v2304, %v2312
        %v2323 = vadd.f32 %v2305, %v2312
        %v2324 = vadd.f32 %v2306, %v2312
        %v2325 = vadd.f32 %v2307, %v2312
        %v2326 = vadd.f32 %v2308, %v2312
        %v2327 = vadd.f32 %v2309, %v2312
        %v2328 = vadd.f32 %v2310, %v2312
        %v2329 = vlaneseq
        %v2330 = vshrl.u32 %v2329, 7
        %v2331 = vsub.s32 0, %v2330
        %v2332 = vrot.slane %v1930, %v2331
        %2333 = vmatprep.subr.mxu0 0.0
        %2334 = vmatpush1.msra.mxu0 %v1914
        %2335 = vmatprep.subr.mxu0 0.0
        %2336 = vmatpush1.msra.mxu0 %v1915
        %2337 = vmatprep.subr.mxu0 0.0
        %2338 = vmatpush1.msra.mxu0 %v1916
        %2339 = vmatprep.subr.mxu0 0.0
        %2340 = vmatpush1.msra.mxu0 %v1917
        %2341 = vmatprep.subr.mxu0 0.0
        %2342 = vmatpush1.msra.mxu0 %v1918
        %2343 = vmatprep.subr.mxu0 0.0
        %2344 = vmatpush1.msra.mxu0 %v1919
        %2345 = vmatprep.subr.mxu0 0.0
        %2346 = vmatpush1.msra.mxu0 %v1920
        %2347 = vmatprep.subr.mxu0 0.0
        %2348 = vmatpush1.msra.mxu0 %v1921
        %2349 = vmatprep.subr.mxu0 0.0
        %2350 = vmatpush1.msra.mxu0 %v1922
        %2351 = vmatprep.subr.mxu0 0.0
        %2352 = vmatpush1.msra.mxu0 %v1923
        %2353 = vmatprep.subr.mxu0 0.0
        %2354 = vmatpush1.msra.mxu0 %v1924
        %2355 = vmatprep.subr.mxu0 0.0
        %2356 = vmatpush1.msra.mxu0 %v1925
        %2357 = vmatprep.subr.mxu0 0.0
        %2358 = vmatpush1.msra.mxu0 %v1926
        %2359 = vmatprep.subr.mxu0 0.0
        %2360 = vmatpush1.msra.mxu0 %v1927
        %2361 = vmatprep.subr.mxu0 0.0
        %2362 = vmatpush1.msra.mxu0 %v1928
        %2363 = vmatprep.subr.mxu0 0.0
        %2364 = vmatpush1.msra.mxu0 %v1929
        %2365 = vmatprep.subr.mxu0 0.0
        %2366 = vmatpush1.msra.mxu0 0.0
        %2367 = vmatprep.subr.mxu0 0.0
        %2368 = vmatpush1.msra.mxu0 0.0
        %2369 = vmatprep.subr.mxu0 0.0
        %2370 = vmatpush1.msra.mxu0 0.0
        %2371 = vmatprep.subr.mxu0 0.0
        %2372 = vmatpush1.msra.mxu0 0.0
        %2373 = vmatprep.subr.mxu0 0.0
        %2374 = vmatpush1.msra.mxu0 0.0
        %2375 = vmatprep.subr.mxu0 0.0
        %2376 = vmatpush1.msra.mxu0 0.0
        %2377 = vmatprep.subr.mxu0 0.0
        %2378 = vmatpush1.msra.mxu0 0.0
        %2379 = vmatprep.subr.mxu0 0.0
        %2380 = vmatpush1.msra.mxu0 0.0
        %2381 = vmatprep.subr.mxu0 0.0
        %2382 = vmatpush1.msra.mxu0 0.0
        %2383 = vmatprep.subr.mxu0 0.0
        %2384 = vmatpush1.msra.mxu0 0.0
        %2385 = vmatprep.subr.mxu0 0.0
        %2386 = vmatpush1.msra.mxu0 0.0
        %2387 = vmatprep.subr.mxu0 0.0
        %2388 = vmatpush1.msra.mxu0 0.0
        %2389 = vmatprep.subr.mxu0 0.0
        %2390 = vmatpush1.msra.mxu0 0.0
        %2391 = vmatprep.subr.mxu0 0.0
        %2392 = vmatpush1.msra.mxu0 0.0
        %2393 = vmatprep.subr.mxu0 0.0
        %2394 = vmatpush1.msra.mxu0 0.0
        %2395 = vmatprep.subr.mxu0 0.0
        %2396 = vmatpush1.msra.mxu0 0.0
        %2397 = vmatprep.mubr.f32.mxu0 0.0
        %2398 = vmatmul.mubr.f32.gmra.mrb[0].mxu0 %v2313
        %v2399 = vpop.f32.mrb[0].mxu0
        %v2400 = vadd.f32 %v2332, %v2399
        %v2401 = vpop.f32.mrb[0].mxu0
        %2402 = vmatprep.mubr.f32.mxu0 0.0
        %2403 = vmatmul.mubr.f32.gmra.mrb[0].mxu0 %v2314
        %v2404 = vpop.f32.mrb[0].mxu0
        %v2405 = vadd.f32 %v2332, %v2404
        %v2406 = vpop.f32.mrb[0].mxu0
        %2407 = vmatprep.mubr.f32.mxu0 0.0
        %2408 = vmatmul.mubr.f32.gmra.mrb[0].mxu0 %v2315
        %v2409 = vpop.f32.mrb[0].mxu0
        %v2410 = vadd.f32 %v2332, %v2409
        %v2411 = vpop.f32.mrb[0].mxu0
        %2412 = vmatprep.mubr.f32.mxu0 0.0
        %2413 = vmatmul.mubr.f32.gmra.mrb[0].mxu0 %v2316
        %v2414 = vpop.f32.mrb[0].mxu0
        %v2415 = vadd.f32 %v2332, %v2414
        %v2416 = vpop.f32.mrb[0].mxu0
        %2417 = vmatprep.mubr.f32.mxu0 0.0
        %2418 = vmatmul.mubr.f32.gmra.mrb[0].mxu0 %v2317
        %v2419 = vpop.f32.mrb[0].mxu0
        %v2420 = vadd.f32 %v2332, %v2419
        %v2421 = vpop.f32.mrb[0].mxu0
        %2422 = vmatprep.mubr.f32.mxu0 0.0
        %2423 = vmatmul.mubr.f32.gmra.mrb[0].mxu0 %v2318
        %v2424 = vpop.f32.mrb[0].mxu0
        %v2425 = vadd.f32 %v2332, %v2424
        %v2426 = vpop.f32.mrb[0].mxu0
        %2427 = vmatprep.mubr.f32.mxu0 0.0
        %2428 = vmatmul.mubr.f32.gmra.mrb[0].mxu0 %v2319
        %v2429 = vpop.f32.mrb[0].mxu0
        %v2430 = vadd.f32 %v2332, %v2429
        %v2431 = vpop.f32.mrb[0].mxu0
        %2432 = vmatprep.mubr.f32.mxu0 0.0
        %2433 = vmatmul.mubr.f32.gmra.mrb[0].mxu0 %v2320
        %v2434 = vpop.f32.mrb[0].mxu0
        %v2435 = vadd.f32 %v2332, %v2434
        %v2436 = vpop.f32.mrb[0].mxu0
        %2437 = vmatprep.mubr.f32.mxu0 0.0
        %2438 = vmatmul.mubr.f32.gmra.mrb[0].mxu0 %v2321
        %v2439 = vpop.f32.mrb[0].mxu0
        %v2440 = vadd.f32 %v2332, %v2439
        %v2441 = vpop.f32.mrb[0].mxu0
        %2442 = vmatprep.mubr.f32.mxu0 0.0
        %2443 = vmatmul.mubr.f32.gmra.mrb[0].mxu0 %v2322
        %v2444 = vpop.f32.mrb[0].mxu0
        %v2445 = vadd.f32 %v2332, %v2444
        %v2446 = vpop.f32.mrb[0].mxu0
        %2447 = vmatprep.mubr.f32.mxu0 0.0
        %2448 = vmatmul.mubr.f32.gmra.mrb[0].mxu0 %v2323
        %v2449 = vpop.f32.mrb[0].mxu0
        %v2450 = vadd.f32 %v2332, %v2449
        %v2451 = vpop.f32.mrb[0].mxu0
        %2452 = vmatprep.mubr.f32.mxu0 0.0
        %2453 = vmatmul.mubr.f32.gmra.mrb[0].mxu0 %v2324
        %v2454 = vpop.f32.mrb[0].mxu0
        %v2455 = vadd.f32 %v2332, %v2454
        %v2456 = vpop.f32.mrb[0].mxu0
        %2457 = vmatprep.mubr.f32.mxu0 0.0
        %2458 = vmatmul.mubr.f32.gmra.mrb[0].mxu0 %v2325
        %v2459 = vpop.f32.mrb[0].mxu0
        %v2460 = vadd.f32 %v2332, %v2459
        %v2461 = vpop.f32.mrb[0].mxu0
        %2462 = vmatprep.mubr.f32.mxu0 0.0
        %2463 = vmatmul.mubr.f32.gmra.mrb[0].mxu0 %v2326
        %v2464 = vpop.f32.mrb[0].mxu0
        %v2465 = vadd.f32 %v2332, %v2464
        %v2466 = vpop.f32.mrb[0].mxu0
        %2467 = vmatprep.mubr.f32.mxu0 0.0
        %2468 = vmatmul.mubr.f32.gmra.mrb[0].mxu0 %v2327
        %v2469 = vpop.f32.mrb[0].mxu0
        %v2470 = vadd.f32 %v2332, %v2469
        %v2471 = vpop.f32.mrb[0].mxu0
        %2472 = vmatprep.mubr.f32.mxu0 0.0
        %2473 = vmatmul.mubr.f32.gmra.mrb[0].mxu0 %v2328
        %v2474 = vpop.f32.mrb[0].mxu0
        %v2475 = vadd.f32 %v2332, %v2474
        %v2476 = vpop.f32.mrb[0].mxu0
        %2477 = vdwg.mxu0
        %v2478 = vlaneseq
        %v2479 = vshrl.u32 %v2478, 7
        %v2480 = vsub.s32 0, %v2479
        %v2481 = vrot.slane %v1932, %v2480
        %v2482 = vmul.f32 %v2481, %v2400
        %v2483 = vmul.f32 %v2481, %v2405
        %v2484 = vmul.f32 %v2481, %v2410
        %v2485 = vmul.f32 %v2481, %v2415
        %v2486 = vmul.f32 %v2481, %v2420
        %v2487 = vmul.f32 %v2481, %v2425
        %v2488 = vmul.f32 %v2481, %v2430
        %v2489 = vmul.f32 %v2481, %v2435
        %v2490 = vmul.f32 %v2481, %v2440
        %v2491 = vmul.f32 %v2481, %v2445
        %v2492 = vmul.f32 %v2481, %v2450
        %v2493 = vmul.f32 %v2481, %v2455
        %v2494 = vmul.f32 %v2481, %v2460
        %v2495 = vmul.f32 %v2481, %v2465
        %v2496 = vmul.f32 %v2481, %v2470
        %v2497 = vmul.f32 %v2481, %v2475
        %v2498 = vxor.u32 %v2482, 2147483648
        %v2499 = vxor.u32 %v2483, 2147483648
        %v2500 = vxor.u32 %v2484, 2147483648
        %v2501 = vxor.u32 %v2485, 2147483648
        %v2502 = vxor.u32 %v2486, 2147483648
        %v2503 = vxor.u32 %v2487, 2147483648
        %v2504 = vxor.u32 %v2488, 2147483648
        %v2505 = vxor.u32 %v2489, 2147483648
        %v2506 = vxor.u32 %v2490, 2147483648
        %v2507 = vxor.u32 %v2491, 2147483648
        %v2508 = vxor.u32 %v2492, 2147483648
        %v2509 = vxor.u32 %v2493, 2147483648
        %v2510 = vxor.u32 %v2494, 2147483648
        %v2511 = vxor.u32 %v2495, 2147483648
        %v2512 = vxor.u32 %v2496, 2147483648
        %v2513 = vxor.u32 %v2497, 2147483648
        %v2514 = vmul.f32 %v2498, 1.442695
        %v2515 = vpow.pop %v2514
        %v2516 = vmul.f32 %v2499, 1.442695
        %v2517 = vpow.pop %v2516
        %v2518 = vmul.f32 %v2500, 1.442695
        %v2519 = vpow.pop %v2518
        %v2520 = vmul.f32 %v2501, 1.442695
        %v2521 = vpow.pop %v2520
        %v2522 = vmul.f32 %v2502, 1.442695
        %v2523 = vpow.pop %v2522
        %v2524 = vmul.f32 %v2503, 1.442695
        %v2525 = vpow.pop %v2524
        %v2526 = vmul.f32 %v2504, 1.442695
        %v2527 = vpow.pop %v2526
        %v2528 = vmul.f32 %v2505, 1.442695
        %v2529 = vpow.pop %v2528
        %v2530 = vmul.f32 %v2506, 1.442695
        %v2531 = vpow.pop %v2530
        %v2532 = vmul.f32 %v2507, 1.442695
        %v2533 = vpow.pop %v2532
        %v2534 = vmul.f32 %v2508, 1.442695
        %v2535 = vpow.pop %v2534
        %v2536 = vmul.f32 %v2509, 1.442695
        %v2537 = vpow.pop %v2536
        %v2538 = vmul.f32 %v2510, 1.442695
        %v2539 = vpow.pop %v2538
        %v2540 = vmul.f32 %v2511, 1.442695
        %v2541 = vpow.pop %v2540
        %v2542 = vmul.f32 %v2512, 1.442695
        %v2543 = vpow.pop %v2542
        %v2544 = vmul.f32 %v2513, 1.442695
        %v2545 = vpow.pop %v2544
        %v2546 = vadd.f32 %v2515, 1.0
        %v2547 = vadd.f32 %v2517, 1.0
        %v2548 = vadd.f32 %v2519, 1.0
        %v2549 = vadd.f32 %v2521, 1.0
        %v2550 = vadd.f32 %v2523, 1.0
        %v2551 = vadd.f32 %v2525, 1.0
        %v2552 = vadd.f32 %v2527, 1.0
        %v2553 = vadd.f32 %v2529, 1.0
        %v2554 = vadd.f32 %v2531, 1.0
        %v2555 = vadd.f32 %v2533, 1.0
        %v2556 = vadd.f32 %v2535, 1.0
        %v2557 = vadd.f32 %v2537, 1.0
        %v2558 = vadd.f32 %v2539, 1.0
        %v2559 = vadd.f32 %v2541, 1.0
        %v2560 = vadd.f32 %v2543, 1.0
        %v2561 = vadd.f32 %v2545, 1.0
        %v2562 = vrcp.pop %v2546
        %v2563 = vmul.f32 1.0, %v2562
        %v2564 = vrcp.pop %v2547
        %v2565 = vmul.f32 1.0, %v2564
        %v2566 = vrcp.pop %v2548
        %v2567 = vmul.f32 1.0, %v2566
        %v2568 = vrcp.pop %v2549
        %v2569 = vmul.f32 1.0, %v2568
        %v2570 = vrcp.pop %v2550
        %v2571 = vmul.f32 1.0, %v2570
        %v2572 = vrcp.pop %v2551
        %v2573 = vmul.f32 1.0, %v2572
        %v2574 = vrcp.pop %v2552
        %v2575 = vmul.f32 1.0, %v2574
        %v2576 = vrcp.pop %v2553
        %v2577 = vmul.f32 1.0, %v2576
        %v2578 = vrcp.pop %v2554
        %v2579 = vmul.f32 1.0, %v2578
        %v2580 = vrcp.pop %v2555
        %v2581 = vmul.f32 1.0, %v2580
        %v2582 = vrcp.pop %v2556
        %v2583 = vmul.f32 1.0, %v2582
        %v2584 = vrcp.pop %v2557
        %v2585 = vmul.f32 1.0, %v2584
        %v2586 = vrcp.pop %v2558
        %v2587 = vmul.f32 1.0, %v2586
        %v2588 = vrcp.pop %v2559
        %v2589 = vmul.f32 1.0, %v2588
        %v2590 = vrcp.pop %v2560
        %v2591 = vmul.f32 1.0, %v2590
        %v2592 = vrcp.pop %v2561
        %v2593 = vmul.f32 1.0, %v2592
        %v2594 = vsub.f32 1.0, %v1931
        %v2595 = vlaneseq
        %v2596 = vshrl.u32 %v2595, 7
        %v2597 = vsub.s32 0, %v2596
        %v2598 = vrot.slane %v2594, %v2597
        %v2599 = vmul.f32 %v2563, %v2598
        %v2600 = vmul.f32 %v2565, %v2598
        %v2601 = vmul.f32 %v2567, %v2598
        %v2602 = vmul.f32 %v2569, %v2598
        %v2603 = vmul.f32 %v2571, %v2598
        %v2604 = vmul.f32 %v2573, %v2598
        %v2605 = vmul.f32 %v2575, %v2598
        %v2606 = vmul.f32 %v2577, %v2598
        %v2607 = vmul.f32 %v2579, %v2598
        %v2608 = vmul.f32 %v2581, %v2598
        %v2609 = vmul.f32 %v2583, %v2598
        %v2610 = vmul.f32 %v2585, %v2598
        %v2611 = vmul.f32 %v2587, %v2598
        %v2612 = vmul.f32 %v2589, %v2598
        %v2613 = vmul.f32 %v2591, %v2598
        %v2614 = vmul.f32 %v2593, %v2598
        %v2615 = vlaneseq
        %v2616 = vshrl.u32 %v2615, 7
        %v2617 = vsub.s32 0, %v2616
        %v2618 = vrot.slane %v1931, %v2617
        %v2619 = vadd.f32 %v2618, %v2599
        %v2620 = vadd.f32 %v2618, %v2600
        %v2621 = vadd.f32 %v2618, %v2601
        %v2622 = vadd.f32 %v2618, %v2602
        %v2623 = vadd.f32 %v2618, %v2603
        %v2624 = vadd.f32 %v2618, %v2604
        %v2625 = vadd.f32 %v2618, %v2605
        %v2626 = vadd.f32 %v2618, %v2606
        %v2627 = vadd.f32 %v2618, %v2607
        %v2628 = vadd.f32 %v2618, %v2608
        %v2629 = vadd.f32 %v2618, %v2609
        %v2630 = vadd.f32 %v2618, %v2610
        %v2631 = vadd.f32 %v2618, %v2611
        %v2632 = vadd.f32 %v2618, %v2612
        %v2633 = vadd.f32 %v2618, %v2613
        %v2634 = vadd.f32 %v2618, %v2614
        %v2635 = vmul.f32 %v2619, %v2400
        %v2636 = vmul.f32 %v2620, %v2405
        %v2637 = vmul.f32 %v2621, %v2410
        %v2638 = vmul.f32 %v2622, %v2415
        %v2639 = vmul.f32 %v2623, %v2420
        %v2640 = vmul.f32 %v2624, %v2425
        %v2641 = vmul.f32 %v2625, %v2430
        %v2642 = vmul.f32 %v2626, %v2435
        %v2643 = vmul.f32 %v2627, %v2440
        %v2644 = vmul.f32 %v2628, %v2445
        %v2645 = vmul.f32 %v2629, %v2450
        %v2646 = vmul.f32 %v2630, %v2455
        %v2647 = vmul.f32 %v2631, %v2460
        %v2648 = vmul.f32 %v2632, %v2465
        %v2649 = vmul.f32 %v2633, %v2470
        %v2650 = vmul.f32 %v2634, %v2475
        %v2651 = vadd.f32 %v2635, %v1877
        %v2652 = vadd.f32 %v2636, %v1878
        %v2653 = vadd.f32 %v2637, %v1879
        %v2654 = vadd.f32 %v2638, %v1880
        %v2655 = vadd.f32 %v2639, %v1881
        %v2656 = vadd.f32 %v2640, %v1882
        %v2657 = vadd.f32 %v2641, %v1883
        %v2658 = vadd.f32 %v2642, %v1884
        %v2659 = vadd.f32 %v2643, %v1885
        %v2660 = vadd.f32 %v2644, %v1886
        %v2661 = vadd.f32 %v2645, %v1887
        %v2662 = vadd.f32 %v2646, %v1888
        %v2663 = vadd.f32 %v2647, %v1889
        %v2664 = vadd.f32 %v2648, %v1890
        %v2665 = vadd.f32 %v2649, %v1891
        %v2666 = vadd.f32 %v2650, %v1892
        %v2667 = vlaneseq
        %v2668 = vshrl.u32 %v2667, 7
        %v2669 = vsub.s32 0, %v2668
        %v2670 = vrot.slane %v1934, %v2669
        %v2671 = vmul.f32 %v2670, %v2651
        %v2672 = vmul.f32 %v2670, %v2652
        %v2673 = vmul.f32 %v2670, %v2653
        %v2674 = vmul.f32 %v2670, %v2654
        %v2675 = vmul.f32 %v2670, %v2655
        %v2676 = vmul.f32 %v2670, %v2656
        %v2677 = vmul.f32 %v2670, %v2657
        %v2678 = vmul.f32 %v2670, %v2658
        %v2679 = vmul.f32 %v2670, %v2659
        %v2680 = vmul.f32 %v2670, %v2660
        %v2681 = vmul.f32 %v2670, %v2661
        %v2682 = vmul.f32 %v2670, %v2662
        %v2683 = vmul.f32 %v2670, %v2663
        %v2684 = vmul.f32 %v2670, %v2664
        %v2685 = vmul.f32 %v2670, %v2665
        %v2686 = vmul.f32 %v2670, %v2666
        %v2687 = vxor.u32 %v2671, 2147483648
        %v2688 = vxor.u32 %v2672, 2147483648
        %v2689 = vxor.u32 %v2673, 2147483648
        %v2690 = vxor.u32 %v2674, 2147483648
        %v2691 = vxor.u32 %v2675, 2147483648
        %v2692 = vxor.u32 %v2676, 2147483648
        %v2693 = vxor.u32 %v2677, 2147483648
        %v2694 = vxor.u32 %v2678, 2147483648
        %v2695 = vxor.u32 %v2679, 2147483648
        %v2696 = vxor.u32 %v2680, 2147483648
        %v2697 = vxor.u32 %v2681, 2147483648
        %v2698 = vxor.u32 %v2682, 2147483648
        %v2699 = vxor.u32 %v2683, 2147483648
        %v2700 = vxor.u32 %v2684, 2147483648
        %v2701 = vxor.u32 %v2685, 2147483648
        %v2702 = vxor.u32 %v2686, 2147483648
        %v2703 = vmul.f32 %v2687, 1.442695
        %v2704 = vpow.pop %v2703
        %v2705 = vmul.f32 %v2688, 1.442695
        %v2706 = vpow.pop %v2705
        %v2707 = vmul.f32 %v2689, 1.442695
        %v2708 = vpow.pop %v2707
        %v2709 = vmul.f32 %v2690, 1.442695
        %v2710 = vpow.pop %v2709
        %v2711 = vmul.f32 %v2691, 1.442695
        %v2712 = vpow.pop %v2711
        %v2713 = vmul.f32 %v2692, 1.442695
        %v2714 = vpow.pop %v2713
        %v2715 = vmul.f32 %v2693, 1.442695
        %v2716 = vpow.pop %v2715
        %v2717 = vmul.f32 %v2694, 1.442695
        %v2718 = vpow.pop %v2717
        %v2719 = vmul.f32 %v2695, 1.442695
        %v2720 = vpow.pop %v2719
        %v2721 = vmul.f32 %v2696, 1.442695
        %v2722 = vpow.pop %v2721
        %v2723 = vmul.f32 %v2697, 1.442695
        %v2724 = vpow.pop %v2723
        %v2725 = vmul.f32 %v2698, 1.442695
        %v2726 = vpow.pop %v2725
        %v2727 = vmul.f32 %v2699, 1.442695
        %v2728 = vpow.pop %v2727
        %v2729 = vmul.f32 %v2700, 1.442695
        %v2730 = vpow.pop %v2729
        %v2731 = vmul.f32 %v2701, 1.442695
        %v2732 = vpow.pop %v2731
        %v2733 = vmul.f32 %v2702, 1.442695
        %v2734 = vpow.pop %v2733
        %v2735 = vadd.f32 %v2704, 1.0
        %v2736 = vadd.f32 %v2706, 1.0
        %v2737 = vadd.f32 %v2708, 1.0
        %v2738 = vadd.f32 %v2710, 1.0
        %v2739 = vadd.f32 %v2712, 1.0
        %v2740 = vadd.f32 %v2714, 1.0
        %v2741 = vadd.f32 %v2716, 1.0
        %v2742 = vadd.f32 %v2718, 1.0
        %v2743 = vadd.f32 %v2720, 1.0
        %v2744 = vadd.f32 %v2722, 1.0
        %v2745 = vadd.f32 %v2724, 1.0
        %v2746 = vadd.f32 %v2726, 1.0
        %v2747 = vadd.f32 %v2728, 1.0
        %v2748 = vadd.f32 %v2730, 1.0
        %v2749 = vadd.f32 %v2732, 1.0
        %v2750 = vadd.f32 %v2734, 1.0
        %v2751 = vrcp.pop %v2735
        %v2752 = vmul.f32 1.0, %v2751
        %v2753 = vrcp.pop %v2736
        %v2754 = vmul.f32 1.0, %v2753
        %v2755 = vrcp.pop %v2737
        %v2756 = vmul.f32 1.0, %v2755
        %v2757 = vrcp.pop %v2738
        %v2758 = vmul.f32 1.0, %v2757
        %v2759 = vrcp.pop %v2739
        %v2760 = vmul.f32 1.0, %v2759
        %v2761 = vrcp.pop %v2740
        %v2762 = vmul.f32 1.0, %v2761
        %v2763 = vrcp.pop %v2741
        %v2764 = vmul.f32 1.0, %v2763
        %v2765 = vrcp.pop %v2742
        %v2766 = vmul.f32 1.0, %v2765
        %v2767 = vrcp.pop %v2743
        %v2768 = vmul.f32 1.0, %v2767
        %v2769 = vrcp.pop %v2744
        %v2770 = vmul.f32 1.0, %v2769
        %v2771 = vrcp.pop %v2745
        %v2772 = vmul.f32 1.0, %v2771
        %v2773 = vrcp.pop %v2746
        %v2774 = vmul.f32 1.0, %v2773
        %v2775 = vrcp.pop %v2747
        %v2776 = vmul.f32 1.0, %v2775
        %v2777 = vrcp.pop %v2748
        %v2778 = vmul.f32 1.0, %v2777
        %v2779 = vrcp.pop %v2749
        %v2780 = vmul.f32 1.0, %v2779
        %v2781 = vrcp.pop %v2750
        %v2782 = vmul.f32 1.0, %v2781
        %v2783 = vsub.f32 1.0, %v1933
        %v2784 = vlaneseq
        %v2785 = vshrl.u32 %v2784, 7
        %v2786 = vsub.s32 0, %v2785
        %v2787 = vrot.slane %v2783, %v2786
        %v2788 = vmul.f32 %v2752, %v2787
        %v2789 = vmul.f32 %v2754, %v2787
        %v2790 = vmul.f32 %v2756, %v2787
        %v2791 = vmul.f32 %v2758, %v2787
        %v2792 = vmul.f32 %v2760, %v2787
        %v2793 = vmul.f32 %v2762, %v2787
        %v2794 = vmul.f32 %v2764, %v2787
        %v2795 = vmul.f32 %v2766, %v2787
        %v2796 = vmul.f32 %v2768, %v2787
        %v2797 = vmul.f32 %v2770, %v2787
        %v2798 = vmul.f32 %v2772, %v2787
        %v2799 = vmul.f32 %v2774, %v2787
        %v2800 = vmul.f32 %v2776, %v2787
        %v2801 = vmul.f32 %v2778, %v2787
        %v2802 = vmul.f32 %v2780, %v2787
        %v2803 = vmul.f32 %v2782, %v2787
        %v2804 = vlaneseq
        %v2805 = vshrl.u32 %v2804, 7
        %v2806 = vsub.s32 0, %v2805
        %v2807 = vrot.slane %v1933, %v2806
        %v2808 = vadd.f32 %v2807, %v2788
        %v2809 = vadd.f32 %v2807, %v2789
        %v2810 = vadd.f32 %v2807, %v2790
        %v2811 = vadd.f32 %v2807, %v2791
        %v2812 = vadd.f32 %v2807, %v2792
        %v2813 = vadd.f32 %v2807, %v2793
        %v2814 = vadd.f32 %v2807, %v2794
        %v2815 = vadd.f32 %v2807, %v2795
        %v2816 = vadd.f32 %v2807, %v2796
        %v2817 = vadd.f32 %v2807, %v2797
        %v2818 = vadd.f32 %v2807, %v2798
        %v2819 = vadd.f32 %v2807, %v2799
        %v2820 = vadd.f32 %v2807, %v2800
        %v2821 = vadd.f32 %v2807, %v2801
        %v2822 = vadd.f32 %v2807, %v2802
        %v2823 = vadd.f32 %v2807, %v2803
        %v2824 = vmul.f32 %v2808, %v2651
        %v2825 = vmul.f32 %v2809, %v2652
        %v2826 = vmul.f32 %v2810, %v2653
        %v2827 = vmul.f32 %v2811, %v2654
        %v2828 = vmul.f32 %v2812, %v2655
        %v2829 = vmul.f32 %v2813, %v2656
        %v2830 = vmul.f32 %v2814, %v2657
        %v2831 = vmul.f32 %v2815, %v2658
        %v2832 = vmul.f32 %v2816, %v2659
        %v2833 = vmul.f32 %v2817, %v2660
        %v2834 = vmul.f32 %v2818, %v2661
        %v2835 = vmul.f32 %v2819, %v2662
        %v2836 = vmul.f32 %v2820, %v2663
        %v2837 = vmul.f32 %v2821, %v2664
        %v2838 = vmul.f32 %v2822, %v2665
        %v2839 = vmul.f32 %v2823, %v2666
        %s2840 = sld [smem:[#allocation2]]
        %s2841 = sld [smem:[#allocation3]]
        %v2842 = vld [vmem:[%s13] sm:$0xff]
        %v2843 = vld [vmem:[%s13 + $0x8] sm:$0xff]
        %v2844 = vld [vmem:[%s13 + $0x10] sm:$0xff]
        %v2845 = vld [vmem:[%s13 + $0x18] sm:$0xff]
        %v2846 = vld [vmem:[%s13 + $0x20] sm:$0xff]
        %v2847 = vld [vmem:[%s13 + $0x28] sm:$0xff]
        %v2848 = vld [vmem:[%s13 + $0x30] sm:$0xff]
        %v2849 = vld [vmem:[%s13 + $0x38] sm:$0xff]
        %v2850 = vld [vmem:[%s13 + $0x40] sm:$0xff]
        %v2851 = vld [vmem:[%s13 + $0x48] sm:$0xff]
        %v2852 = vld [vmem:[%s13 + $0x50] sm:$0xff]
        %v2853 = vld [vmem:[%s13 + $0x58] sm:$0xff]
        %v2854 = vld [vmem:[%s13 + $0x60] sm:$0xff]
        %v2855 = vld [vmem:[%s13 + $0x68] sm:$0xff]
        %v2856 = vld [vmem:[%s13 + $0x70] sm:$0xff]
        %v2857 = vld [vmem:[%s13 + $0x78] sm:$0xff]
        %2858 = vmatprep.subr.mxu0 0.0
        %2859 = vmatpush1.msra.mxu0 %v2842
        %2860 = vmatprep.subr.mxu0 0.0
        %2861 = vmatpush1.msra.mxu0 %v2843
        %2862 = vmatprep.subr.mxu0 0.0
        %2863 = vmatpush1.msra.mxu0 %v2844
        %2864 = vmatprep.subr.mxu0 0.0
        %2865 = vmatpush1.msra.mxu0 %v2845
        %2866 = vmatprep.subr.mxu0 0.0
        %2867 = vmatpush1.msra.mxu0 %v2846
        %2868 = vmatprep.subr.mxu0 0.0
        %2869 = vmatpush1.msra.mxu0 %v2847
        %2870 = vmatprep.subr.mxu0 0.0
        %2871 = vmatpush1.msra.mxu0 %v2848
        %2872 = vmatprep.subr.mxu0 0.0
        %2873 = vmatpush1.msra.mxu0 %v2849
        %2874 = vmatprep.subr.mxu0 0.0
        %2875 = vmatpush1.msra.mxu0 %v2850
        %2876 = vmatprep.subr.mxu0 0.0
        %2877 = vmatpush1.msra.mxu0 %v2851
        %2878 = vmatprep.subr.mxu0 0.0
        %2879 = vmatpush1.msra.mxu0 %v2852
        %2880 = vmatprep.subr.mxu0 0.0
        %2881 = vmatpush1.msra.mxu0 %v2853
        %2882 = vmatprep.subr.mxu0 0.0
        %2883 = vmatpush1.msra.mxu0 %v2854
        %2884 = vmatprep.subr.mxu0 0.0
        %2885 = vmatpush1.msra.mxu0 %v2855
        %2886 = vmatprep.subr.mxu0 0.0
        %2887 = vmatpush1.msra.mxu0 %v2856
        %2888 = vmatprep.subr.mxu0 0.0
        %2889 = vmatpush1.msra.mxu0 %v2857
        %2890 = vmatprep.subr.mxu0 0.0
        %2891 = vmatpush1.msra.mxu0 0.0
        %2892 = vmatprep.subr.mxu0 0.0
        %2893 = vmatpush1.msra.mxu0 0.0
        %2894 = vmatprep.subr.mxu0 0.0
        %2895 = vmatpush1.msra.mxu0 0.0
        %2896 = vmatprep.subr.mxu0 0.0
        %2897 = vmatpush1.msra.mxu0 0.0
        %2898 = vmatprep.subr.mxu0 0.0
        %2899 = vmatpush1.msra.mxu0 0.0
        %2900 = vmatprep.subr.mxu0 0.0
        %2901 = vmatpush1.msra.mxu0 0.0
        %2902 = vmatprep.subr.mxu0 0.0
        %2903 = vmatpush1.msra.mxu0 0.0
        %2904 = vmatprep.subr.mxu0 0.0
        %2905 = vmatpush1.msra.mxu0 0.0
        %2906 = vmatprep.subr.mxu0 0.0
        %2907 = vmatpush1.msra.mxu0 0.0
        %2908 = vmatprep.subr.mxu0 0.0
        %2909 = vmatpush1.msra.mxu0 0.0
        %2910 = vmatprep.subr.mxu0 0.0
        %2911 = vmatpush1.msra.mxu0 0.0
        %2912 = vmatprep.subr.mxu0 0.0
        %2913 = vmatpush1.msra.mxu0 0.0
        %2914 = vmatprep.subr.mxu0 0.0
        %2915 = vmatpush1.msra.mxu0 0.0
        %2916 = vmatprep.subr.mxu0 0.0
        %2917 = vmatpush1.msra.mxu0 0.0
        %2918 = vmatprep.subr.mxu0 0.0
        %2919 = vmatpush1.msra.mxu0 0.0
        %2920 = vmatprep.subr.mxu0 0.0
        %2921 = vmatpush1.msra.mxu0 0.0
        %2922 = vmatprep.mubr.f32.mxu0 0.0
        %2923 = vmatmul.mubr.f32.gmra.mrb[0].mxu0 %v2824
        %v2924 = vpop.f32.mrb[0].mxu0
        %v2925 = vadd.f32 0.0, %v2924
        %v2926 = vpop.f32.mrb[0].mxu0
        %2927 = vmatprep.mubr.f32.mxu0 0.0
        %2928 = vmatmul.mubr.f32.gmra.mrb[0].mxu0 %v2825
        %v2929 = vpop.f32.mrb[0].mxu0
        %v2930 = vadd.f32 0.0, %v2929
        %v2931 = vpop.f32.mrb[0].mxu0
        %2932 = vmatprep.mubr.f32.mxu0 0.0
        %2933 = vmatmul.mubr.f32.gmra.mrb[0].mxu0 %v2826
        %v2934 = vpop.f32.mrb[0].mxu0
        %v2935 = vadd.f32 0.0, %v2934
        %v2936 = vpop.f32.mrb[0].mxu0
        %2937 = vmatprep.mubr.f32.mxu0 0.0
        %2938 = vmatmul.mubr.f32.gmra.mrb[0].mxu0 %v2827
        %v2939 = vpop.f32.mrb[0].mxu0
        %v2940 = vadd.f32 0.0, %v2939
        %v2941 = vpop.f32.mrb[0].mxu0
        %2942 = vmatprep.mubr.f32.mxu0 0.0
        %2943 = vmatmul.mubr.f32.gmra.mrb[0].mxu0 %v2828
        %v2944 = vpop.f32.mrb[0].mxu0
        %v2945 = vadd.f32 0.0, %v2944
        %v2946 = vpop.f32.mrb[0].mxu0
        %2947 = vmatprep.mubr.f32.mxu0 0.0
        %2948 = vmatmul.mubr.f32.gmra.mrb[0].mxu0 %v2829
        %v2949 = vpop.f32.mrb[0].mxu0
        %v2950 = vadd.f32 0.0, %v2949
        %v2951 = vpop.f32.mrb[0].mxu0
        %2952 = vmatprep.mubr.f32.mxu0 0.0
        %2953 = vmatmul.mubr.f32.gmra.mrb[0].mxu0 %v2830
        %v2954 = vpop.f32.mrb[0].mxu0
        %v2955 = vadd.f32 0.0, %v2954
        %v2956 = vpop.f32.mrb[0].mxu0
        %2957 = vmatprep.mubr.f32.mxu0 0.0
        %2958 = vmatmul.mubr.f32.gmra.mrb[0].mxu0 %v2831
        %v2959 = vpop.f32.mrb[0].mxu0
        %v2960 = vadd.f32 0.0, %v2959
        %v2961 = vpop.f32.mrb[0].mxu0
        %2962 = vmatprep.mubr.f32.mxu0 0.0
        %2963 = vmatmul.mubr.f32.gmra.mrb[0].mxu0 %v2832
        %v2964 = vpop.f32.mrb[0].mxu0
        %v2965 = vadd.f32 0.0, %v2964
        %v2966 = vpop.f32.mrb[0].mxu0
        %2967 = vmatprep.mubr.f32.mxu0 0.0
        %2968 = vmatmul.mubr.f32.gmra.mrb[0].mxu0 %v2833
        %v2969 = vpop.f32.mrb[0].mxu0
        %v2970 = vadd.f32 0.0, %v2969
        %v2971 = vpop.f32.mrb[0].mxu0
        %2972 = vmatprep.mubr.f32.mxu0 0.0
        %2973 = vmatmul.mubr.f32.gmra.mrb[0].mxu0 %v2834
        %v2974 = vpop.f32.mrb[0].mxu0
        %v2975 = vadd.f32 0.0, %v2974
        %v2976 = vpop.f32.mrb[0].mxu0
        %2977 = vmatprep.mubr.f32.mxu0 0.0
        %2978 = vmatmul.mubr.f32.gmra.mrb[0].mxu0 %v2835
        %v2979 = vpop.f32.mrb[0].mxu0
        %v2980 = vadd.f32 0.0, %v2979
        %v2981 = vpop.f32.mrb[0].mxu0
        %2982 = vmatprep.mubr.f32.mxu0 0.0
        %2983 = vmatmul.mubr.f32.gmra.mrb[0].mxu0 %v2836
        %v2984 = vpop.f32.mrb[0].mxu0
        %v2985 = vadd.f32 0.0, %v2984
        %v2986 = vpop.f32.mrb[0].mxu0
        %2987 = vmatprep.mubr.f32.mxu0 0.0
        %2988 = vmatmul.mubr.f32.gmra.mrb[0].mxu0 %v2837
        %v2989 = vpop.f32.mrb[0].mxu0
        %v2990 = vadd.f32 0.0, %v2989
        %v2991 = vpop.f32.mrb[0].mxu0
        %2992 = vmatprep.mubr.f32.mxu0 0.0
        %2993 = vmatmul.mubr.f32.gmra.mrb[0].mxu0 %v2838
        %v2994 = vpop.f32.mrb[0].mxu0
        %v2995 = vadd.f32 0.0, %v2994
        %v2996 = vpop.f32.mrb[0].mxu0
        %2997 = vmatprep.mubr.f32.mxu0 0.0
        %2998 = vmatmul.mubr.f32.gmra.mrb[0].mxu0 %v2839
        %v2999 = vpop.f32.mrb[0].mxu0
        %v3000 = vadd.f32 0.0, %v2999
        %v3001 = vpop.f32.mrb[0].mxu0
        %3002 = vdwg.mxu0
        %v3003 = vstv %s2840
        %v3004 = vmul.f32 %v2925, %v3003
        %v3005 = vmul.f32 %v2930, %v3003
        %v3006 = vmul.f32 %v2935, %v3003
        %v3007 = vmul.f32 %v2940, %v3003
        %v3008 = vmul.f32 %v2945, %v3003
        %v3009 = vmul.f32 %v2950, %v3003
        %v3010 = vmul.f32 %v2955, %v3003
        %v3011 = vmul.f32 %v2960, %v3003
        %v3012 = vmul.f32 %v2965, %v3003
        %v3013 = vmul.f32 %v2970, %v3003
        %v3014 = vmul.f32 %v2975, %v3003
        %v3015 = vmul.f32 %v2980, %v3003
        %v3016 = vmul.f32 %v2985, %v3003
        %v3017 = vmul.f32 %v2990, %v3003
        %v3018 = vmul.f32 %v2995, %v3003
        %v3019 = vmul.f32 %v3000, %v3003
        %v3020 = vld [vmem:[%s14] sm:$0x1]
        %v3021 = vmul.f32 %v3020, %v3003
        %v3022 = vstv %s2841
        %v3023 = vadd.f32 %v3021, %v3022
        %v3025 = vlaneseq
        %v3026 = vshrl.u32 %v3025, 7
        %v3027 = vsub.s32 0, %v3026
        %v3028 = vrot.slane %v3023, %v3027
        %v3030 = vadd.f32 %v3004, %v3028
        %v3031 = vadd.f32 %v3005, %v3028
        %v3032 = vadd.f32 %v3006, %v3028
        %v3033 = vadd.f32 %v3007, %v3028
        %v3034 = vadd.f32 %v3008, %v3028
        %v3035 = vadd.f32 %v3009, %v3028
        %v3036 = vadd.f32 %v3010, %v3028
        %v3037 = vadd.f32 %v3011, %v3028
        %v3038 = vadd.f32 %v3012, %v3028
        %v3039 = vadd.f32 %v3013, %v3028
        %v3040 = vadd.f32 %v3014, %v3028
        %v3041 = vadd.f32 %v3015, %v3028
        %v3042 = vadd.f32 %v3016, %v3028
        %v3043 = vadd.f32 %v3017, %v3028
        %v3044 = vadd.f32 %v3018, %v3028
        %v3045 = vadd.f32 %v3019, %v3028
        %vm3046 = vcmask 64512
        %3047 = vst.msk [vmem:[%s727] sm:$0xff] %vm3046, %v3030
        %3048 = vst.msk [vmem:[%s727 + $0x8] sm:$0xff] %vm3046, %v3031
        %3049 = vst.msk [vmem:[%s727 + $0x10] sm:$0xff] %vm3046, %v3032
        %3050 = vst.msk [vmem:[%s727 + $0x18] sm:$0xff] %vm3046, %v3033
        %3051 = vst.msk [vmem:[%s727 + $0x20] sm:$0xff] %vm3046, %v3034
        %3052 = vst.msk [vmem:[%s727 + $0x28] sm:$0xff] %vm3046, %v3035
        %3053 = vst.msk [vmem:[%s727 + $0x30] sm:$0xff] %vm3046, %v3036
        %3054 = vst.msk [vmem:[%s727 + $0x38] sm:$0xff] %vm3046, %v3037
        %3055 = vst.msk [vmem:[%s727 + $0x40] sm:$0xff] %vm3046, %v3038
        %3056 = vst.msk [vmem:[%s727 + $0x48] sm:$0xff] %vm3046, %v3039
        %3057 = vst.msk [vmem:[%s727 + $0x50] sm:$0xff] %vm3046, %v3040
        %3058 = vst.msk [vmem:[%s727 + $0x58] sm:$0xff] %vm3046, %v3041
        %3059 = vst.msk [vmem:[%s727 + $0x60] sm:$0xff] %vm3046, %v3042
        %3060 = vst.msk [vmem:[%s727 + $0x68] sm:$0xff] %vm3046, %v3043
        %3061 = vst.msk [vmem:[%s727 + $0x70] sm:$0xff] %vm3046, %v3044
        %3062 = vst.msk [vmem:[%s727 + $0x78] sm:$0xff] %vm3046, %v3045
        %s3063 = smul.u32 16, %s38
        %p3064 = scmp.lt.s32.totalorder %s3063, 31
        %s3065 = scalar_select %p3064, %s3063, 31
        %s3066 = smul.addr %s3065, 8
        %s3067 = scalar_lea.vmem %s21, %s3066
        // Predicated region
        $region125: #{resmlp_forward.1} parent=103 // pred_check
          %p3068 = pneg %p502
        $region126: #{resmlp_forward.1} parent=103 // pred_check_branch
          %3070 = sbr.rel (%p3068) target = $region128
        $region127: #{resmlp_forward.1} parent=103 // pred_region
          %s3071 = smul.u32 16, %s38
        $region128: #{resmlp_forward.1} parent=103 // pred_fallthru
          _
      $region104: #{resmlp_forward.1} parent=5 // pred_fallthru
        _
      %p3072 = scmp.le.s32.totalorder 2, %s33
      // Predicated region
      $region129: #{resmlp_forward.1} parent=5 // pred_check
        %p3073 = pneg %p3072
      $region130: #{resmlp_forward.1} parent=5 // pred_check_branch
        %3075 = sbr.rel (%p3073) target = $region132
      $region131: #{resmlp_forward.1} parent=5 // pred_region
        %s3076 = ssub.s32 %s33, 2
        // Predicated region
        $region133: #{resmlp_forward.1} parent=131 // pred_check
          %p3077 = pneg %p508
        $region134: #{resmlp_forward.1} parent=131 // pred_check_branch
          %3079 = sbr.rel (%p3077) target = $region136
        $region135: #{resmlp_forward.1} parent=131 // pred_region
          %s3080 = smul.u32 16, %s39
          %p3081 = scmp.lt.s32.totalorder %s3080, 31
          %s3082 = scalar_select %p3081, %s3080, 31
          %s3083 = smul.addr %s3082, 8
          %s3084 = scalar_lea.vmem %s21, %s3083
        $region136: #{resmlp_forward.1} parent=131 // pred_fallthru
          _
      $region132: #{resmlp_forward.1} parent=5 // pred_fallthru
        _
    $region6: #{resmlp_forward.1} parent=1 // loop_footer
      %s37 = sadd.s32 1, %s33
    $region7: #{resmlp_forward.1} parent=1 // loop_footer_branch
      %32 = sbr.rel target = $region3
    $region8: #{resmlp_forward.1} parent=1 // loop_exit
      _
    %3085 = vsyncpa [#allocation5], 1
    %s3086 = scalar_lea.sflag [#allocation5], 1
    %3087 = vsyncpa %s3086, 1
    %3088 = vsyncpa [#allocation6], 1
    %s3089 = scalar_lea.sflag [#allocation6], 1
    %3090 = vsyncpa %s3089, 1
    %3091 = vsyncpa [#allocation9], 1
    %3092 = vsyncpa [#allocation12], 1

</llo_original>
